<compile_context>
chip_gen: v6e
topology: v6e:2x2x1
jax: 0.10.0
libtpu: 0.0.40
codegen_flags: <defaults>
</compile_context>

<pallas_src>
import functools

import numpy as np
import jax
import jax.numpy as jnp
from jax import lax
from jax.experimental import pallas as pl
from jax.experimental.pallas import tpu as pltpu

LANE = 128  # one gate per 128-lane block


# -----------------------------------------------------------------------------
# Pallas kernel: full decoder forward (both LSTMs + hoisted output projection).
# -----------------------------------------------------------------------------
def _decoder_kernel(x_ref, wih1_ref, b1_ref, wfused_ref, whh2_ref, b2_ref,
                    wout_ref, bout_ref, o_ref, h2_buf, *,
                    seq_len, batch, e_dim, h_dim):
    B = batch
    G = 4 * LANE

    # Loop-invariant loads.
    wfused = wfused_ref[...]                    # (E, 8*LANE) = [wih2_p | whh1_p]
    whh2 = whh2_ref[...]                        # (H2, 4*LANE)
    b2 = b2_ref[...]                            # (1, 4*LANE)

    # rnn1 sees the same input vector every timestep -> hoist x @ Wih1 + b1.
    xg1 = jnp.dot(x_ref[...], wih1_ref[...],
                  preferred_element_type=jnp.float32) + b1_ref[...]   # (B, 4*LANE)

    # sigmoid(v) = 0.5*tanh(0.5*v) + 0.5.  The 0.5 pre-scale is already folded
    # into the packed i/f/o weight & bias columns [R7], so the whole
    # (B, 4*LANE) pre-activation slab goes through ONE tanh followed by a
    # per-lane affine (scale=1, offset=0 on the "g" gate block, lanes 256:384).
    lane = lax.broadcasted_iota(jnp.int32, (1, G), 1)
    is_g = jnp.logical_and(lane >= 2 * LANE, lane < 3 * LANE)
    g_scale = jnp.where(is_g, 1.0, 0.5).astype(jnp.float32)
    g_shift = jnp.where(is_g, 0.0, 0.5).astype(jnp.float32)

    def gates(pre):
        a = jnp.tanh(pre) * g_scale + g_shift
        # PyTorch gate order i, f, g, o — each gate is a full 128-lane block.
        return (a[:, 0 * LANE:1 * LANE], a[:, 1 * LANE:2 * LANE],
                a[:, 2 * LANE:3 * LANE], a[:, 3 * LANE:4 * LANE])

    zero_s = jnp.zeros((B, LANE), jnp.float32)
    zero_g = jnp.zeros((B, G), jnp.float32)
    c1 = zero_s
    c2 = zero_s
    rg1 = zero_g    # h1_{t-1} @ whh1 (gate-padded cols); zero because h1_0 = 0
    rg2 = zero_g    # h2_{t-1} @ whh2 (gate-padded cols); zero because h2_0 = 0

    # Fully unrolled time loop (seq_len is small & static).
    for t in range(seq_len):
        # ---- layer 1 (E -> E); recurrent matmul was produced last step -----
        i1, f1, gg1, o1 = gates(xg1 + rg1)
        c1 = f1 * c1 + i1 * gg1
        h1 = o1 * jnp.tanh(c1)                                  # (B, LANE)

        # Fused chained matmul (compact K = E rows [R2]): layer-2 input gates
        # for step t AND layer-1 recurrent term for step t+1 in one MXU op.
        m1 = jnp.dot(h1[:, :e_dim], wfused,
                     preferred_element_type=jnp.float32)        # (B, 8*LANE)
        xg2 = m1[:, :G]
        rg1 = m1[:, G:]

        # ---- layer 2 (E -> 2E) ---------------------------------------------
        i2, f2, gg2, o2 = gates(xg2 + b2 + rg2)
        c2 = f2 * c2 + i2 * gg2
        h2 = o2 * jnp.tanh(c2)                                  # (B, LANE)

        # Stash h2 for the hoisted output projection (off the critical chain).
        h2_buf[t * B:(t + 1) * B, :] = h2

        # Layer-2 recurrent term for the next step (compact K = H2 rows [R2];
        # parallel branch with one step of slack, skipped on the last step).
        if t + 1 < seq_len:
            rg2 = jnp.dot(h2[:, :h_dim], whh2,
                          preferred_element_type=jnp.float32)

    # ---- hoisted output projection: one matmul + one store ------------------
    out = jnp.dot(h2_buf[...], wout_ref[...],
                  preferred_element_type=jnp.float32) + bout_ref[...]
    o_ref[...] = out.astype(o_ref.dtype)                        # (S*B, F)


# -----------------------------------------------------------------------------
# Host-side weight packing (runs ONCE, outside jit) [R1, R2, R7].
#   * gate k of every weight/bias -> lanes [k*128, k*128 + H) (zero padded)
#   * i/f/o gate columns pre-scaled by 0.5 (sigmoid-via-tanh folding)
#   * contraction (row) dims kept compact — no zero rows shipped over HBM
# -----------------------------------------------------------------------------
def _pack_gate_cols(w, h, *, lane=LANE, ifo_scale=0.5):
    """(in, 4*h) -> (in, 4*lane), i/f/o columns pre-scaled by ifo_scale."""
    w = np.asarray(w, np.float32)
    in_dim = w.shape[0]
    wg = w.reshape(in_dim, 4, h).copy()
    for k in (0, 1, 3):              # PyTorch gate order i, f, g, o
        wg[:, k, :] *= ifo_scale
    out = np.zeros((in_dim, 4, lane), np.float32)
    out[:, :, :h] = wg
    return out.reshape(in_dim, 4 * lane)


def pack_params(params):
    """Pack/pad/pre-scale once on the host; returns device arrays."""
    wih1, whh1, b1, wih2, whh2, b2, wout, bout = (
        np.asarray(p, np.float32) for p in params)
    H1 = whh1.shape[0]
    H2 = whh2.shape[0]

    wih1_p = _pack_gate_cols(wih1, H1)                    # (E, 4*LANE)
    b1_p = _pack_gate_cols(b1, H1)                        # (1, 4*LANE)
    whh1_p = _pack_gate_cols(whh1, H1)                    # (H1=E, 4*LANE) compact rows
    wih2_p = _pack_gate_cols(wih2, H2)                    # (E,    4*LANE) compact rows
    whh2_p = _pack_gate_cols(whh2, H2)                    # (H2,   4*LANE) compact rows
    b2_p = _pack_gate_cols(b2, H2)                        # (1, 4*LANE)
    # Single fused RHS for the per-step chained matmul (compact K = E rows).
    wfused = np.concatenate([wih2_p, whh1_p], axis=1)     # (E, 8*LANE)
    # Output projection: rows padded to LANE (only 2 KiB) so the full padded
    # h2 slab can be used as LHS without slicing; padded rows are zero.
    wout_p = np.zeros((LANE, wout.shape[1]), np.float32)
    wout_p[:H2, :] = wout
    bout_p = bout.reshape(1, -1).astype(np.float32)

    packed = (wih1_p, b1_p, wfused, whh2_p, b2_p, wout_p, bout_p)
    return tuple(jax.device_put(jnp.asarray(a)) for a in packed)


def decoder_forward(x, packed_params, *, seq_len):
    """x: (B, E) float32, packed_params from pack_params().
    Returns (B, seq_len, n_features) float32."""
    B, E = x.shape
    wih1_p, b1_p, wfused, whh2_p, b2_p, wout_p, bout_p = packed_params
    H2 = whh2_p.shape[0]
    n_features = wout_p.shape[1]

    vmem = pl.BlockSpec(memory_space=pltpu.MemorySpace.VMEM)
    out_flat = pl.pallas_call(
        functools.partial(_decoder_kernel, seq_len=seq_len, batch=B,
                          e_dim=E, h_dim=H2),
        out_shape=jax.ShapeDtypeStruct((seq_len * B, n_features), jnp.float32),
        in_specs=[vmem] * 8,
        out_specs=vmem,
        scratch_shapes=[pltpu.VMEM((seq_len * B, LANE), jnp.float32)],
    )(x, wih1_p, b1_p, wfused, whh2_p, b2_p, wout_p, bout_p)
    # Kernel rows are (t, b) ordered; the module returns (B, S, F).  The
    # reorder of this 256-byte result is a single tiny fused XLA op — kept in
    # the wrapper to avoid sub-tile strided stores inside the kernel.
    return jnp.transpose(out_flat.reshape(seq_len, B, n_features), (1, 0, 2))


# -----------------------------------------------------------------------------
# Pure-JAX reference (same math, unpadded/unscaled weights) for a sanity check.
# -----------------------------------------------------------------------------
def decoder_reference(x, params, *, seq_len):
    (wih1, whh1, b1, wih2, whh2, b2, wout, bout) = params
    B = x.shape[0]
    H1 = whh1.shape[0]
    H2 = whh2.shape[0]

    def cell(h, c, gx, whh, H):
        g = gx + h @ whh
        i = jax.nn.sigmoid(g[:, 0 * H:1 * H])
        f = jax.nn.sigmoid(g[:, 1 * H:2 * H])
        gg = jnp.tanh(g[:, 2 * H:3 * H])
        o = jax.nn.sigmoid(g[:, 3 * H:4 * H])
        c = f * c + i * gg
        h = o * jnp.tanh(c)
        return h, c

    xg1 = x @ wih1 + b1
    h1 = jnp.zeros((B, H1)); c1 = jnp.zeros((B, H1))
    h2 = jnp.zeros((B, H2)); c2 = jnp.zeros((B, H2))
    outs = []
    for _ in range(seq_len):
        h1, c1 = cell(h1, c1, xg1, whh1, H1)
        xg2 = h1 @ wih2 + b2
        h2, c2 = cell(h2, c2, xg2, whh2, H2)
        outs.append(h2 @ wout + bout)
    return jnp.stack(outs, axis=1)  # (B, S, F)


# -----------------------------------------------------------------------------
# Deterministic parameter init + driver.
# -----------------------------------------------------------------------------
def make_params(key, embedding_dim, hidden_dim, n_features):
    ks = jax.random.split(key, 8)
    scale = 0.1
    # NOTE: weights are pre-transposed to (in, 4H); b_ih + b_hh are pre-summed
    # into a single bias.  Real PyTorch LSTM weights must be transposed and
    # the two biases folded before calling pack_params().
    wih1 = scale * jax.random.normal(ks[0], (embedding_dim, 4 * embedding_dim), jnp.float32)
    whh1 = scale * jax.random.normal(ks[1], (embedding_dim, 4 * embedding_dim), jnp.float32)
    b1 = scale * jax.random.normal(ks[2], (1, 4 * embedding_dim), jnp.float32)
    wih2 = scale * jax.random.normal(ks[3], (embedding_dim, 4 * hidden_dim), jnp.float32)
    whh2 = scale * jax.random.normal(ks[4], (hidden_dim, 4 * hidden_dim), jnp.float32)
    b2 = scale * jax.random.normal(ks[5], (1, 4 * hidden_dim), jnp.float32)
    wout = scale * jax.random.normal(ks[6], (hidden_dim, n_features), jnp.float32)
    bout = scale * jax.random.normal(ks[7], (1, n_features), jnp.float32)
    return (wih1, whh1, b1, wih2, whh2, b2, wout, bout)


if __name__ == "__main__":
    # Module hyperparameters (args.embedding_dim=32, args.n_layers=1).
    batch = 2
    seq_len = 8
    embedding_dim = 32
    hidden_dim = 2 * embedding_dim          # 64
    n_features = 4

    key = jax.random.PRNGKey(0)
    kx, kp = jax.random.split(key)
    x = jax.random.normal(kx, (batch, embedding_dim), jnp.float32)
    params = make_params(kp, embedding_dim, hidden_dim, n_features)

    # Pack ONCE on the host, outside jit [R1]; pass device arrays into jit.
    packed = pack_params(params)

    fwd = jax.jit(functools.partial(decoder_forward, seq_len=seq_len))
    out = fwd(x, packed)
    out = jax.block_until_ready(out)

    assert out.shape == (batch, seq_len, n_features), out.shape

    ref = decoder_reference(x, params, seq_len=seq_len)
    if not jnp.allclose(out, ref, rtol=1e-3, atol=1e-3):
        raise AssertionError("Pallas decoder output mismatch vs. reference")

    print("KERNEL_OK")
</pallas_src>

<mosaic_0001>
module attributes {stable_mosaic.version = 11 : i64} {
  func.func @_decoder_kernel(%arg0: memref<2x32xf32, #tpu.memory_space<vmem>>, %arg1: memref<32x512xf32, #tpu.memory_space<vmem>>, %arg2: memref<1x512xf32, #tpu.memory_space<vmem>>, %arg3: memref<32x1024xf32, #tpu.memory_space<vmem>>, %arg4: memref<64x512xf32, #tpu.memory_space<vmem>>, %arg5: memref<1x512xf32, #tpu.memory_space<vmem>>, %arg6: memref<128x4xf32, #tpu.memory_space<vmem>>, %arg7: memref<1x4xf32, #tpu.memory_space<vmem>>, %arg8: memref<16x4xf32, #tpu.memory_space<vmem>>, %arg9: memref<16x128xf32, #tpu.memory_space<vmem>>) attributes {dimension_semantics = [], scalar_prefetch = 0 : i64, scratch_operands = 1 : i64, tpu.core_type = #tpu.core_type<tc>} {
    %c0 = arith.constant 0 : index
    %c0_0 = arith.constant 0 : index
    %0 = vector.load %arg3[%c0, %c0_0] : memref<32x1024xf32, #tpu.memory_space<vmem>>, vector<32x1024xf32>
    %c0_1 = arith.constant 0 : index
    %c0_2 = arith.constant 0 : index
    %1 = vector.load %arg4[%c0_1, %c0_2] : memref<64x512xf32, #tpu.memory_space<vmem>>, vector<64x512xf32>
    %c0_3 = arith.constant 0 : index
    %c0_4 = arith.constant 0 : index
    %2 = vector.load %arg5[%c0_3, %c0_4] : memref<1x512xf32, #tpu.memory_space<vmem>>, vector<1x512xf32>
    %c0_5 = arith.constant 0 : index
    %c0_6 = arith.constant 0 : index
    %3 = vector.load %arg0[%c0_5, %c0_6] : memref<2x32xf32, #tpu.memory_space<vmem>>, vector<2x32xf32>
    %c0_7 = arith.constant 0 : index
    %c0_8 = arith.constant 0 : index
    %4 = vector.load %arg1[%c0_7, %c0_8] : memref<32x512xf32, #tpu.memory_space<vmem>>, vector<32x512xf32>
    %cst = arith.constant dense<0.000000e+00> : vector<2x512xf32>
    %5 = tpu.matmul %3, %4, %cst {dimension_numbers = #tpu.dot_dimension_numbers<[1], [0], [0], [1], [0, 0, 1, 1], [], []>} : vector<2x32xf32>, vector<32x512xf32>, vector<2x512xf32> -> vector<2x512xf32>
    %c0_9 = arith.constant 0 : index
    %c0_10 = arith.constant 0 : index
    %6 = vector.load %arg2[%c0_9, %c0_10] : memref<1x512xf32, #tpu.memory_space<vmem>>, vector<1x512xf32>
    %7 = vector.broadcast %6 : vector<1x512xf32> to vector<2x512xf32>
    %8 = arith.addf %5, %7 : vector<2x512xf32>
    %9 = tpu.iota {dimensions = array<i32: 1>} : vector<1x512xi32>
    %c256_i32 = arith.constant 256 : i32
    %10 = vector.broadcast %c256_i32 : i32 to vector<1x512xi32>
    %11 = arith.cmpi sge, %9, %10 : vector<1x512xi32>
    %c384_i32 = arith.constant 384 : i32
    %12 = vector.broadcast %c384_i32 : i32 to vector<1x512xi32>
    %13 = arith.cmpi slt, %9, %12 : vector<1x512xi32>
    %14 = arith.andi %11, %13 : vector<1x512xi1>
    %cst_11 = arith.constant 1.000000e+00 : f32
    %cst_12 = arith.constant 5.000000e-01 : f32
    %15 = vector.broadcast %cst_11 : f32 to vector<1x512xf32>
    %16 = vector.broadcast %cst_12 : f32 to vector<1x512xf32>
    %17 = arith.select %14, %15, %16 : vector<1x512xi1>, vector<1x512xf32>
    %cst_13 = arith.constant 0.000000e+00 : f32
    %cst_14 = arith.constant 5.000000e-01 : f32
    %18 = vector.broadcast %cst_13 : f32 to vector<1x512xf32>
    %19 = vector.broadcast %cst_14 : f32 to vector<1x512xf32>
    %20 = arith.select %14, %18, %19 : vector<1x512xi1>, vector<1x512xf32>
    %cst_15 = arith.constant 0.000000e+00 : f32
    %21 = vector.broadcast %cst_15 : f32 to vector<2x128xf32>
    %cst_16 = arith.constant 0.000000e+00 : f32
    %22 = vector.broadcast %cst_16 : f32 to vector<2x512xf32>
    %23 = arith.addf %8, %22 : vector<2x512xf32>
    %24 = math.tanh %23 : vector<2x512xf32>
    %25 = vector.broadcast %17 : vector<1x512xf32> to vector<2x512xf32>
    %26 = arith.mulf %24, %25 : vector<2x512xf32>
    %27 = vector.broadcast %20 : vector<1x512xf32> to vector<2x512xf32>
    %28 = arith.addf %26, %27 : vector<2x512xf32>
    %29 = vector.extract_strided_slice %28 {offsets = [0, 0], sizes = [2, 128], strides = [1, 1]} : vector<2x512xf32> to vector<2x128xf32>
    %30 = vector.extract_strided_slice %28 {offsets = [0, 128], sizes = [2, 128], strides = [1, 1]} : vector<2x512xf32> to vector<2x128xf32>
    %31 = vector.extract_strided_slice %28 {offsets = [0, 256], sizes = [2, 128], strides = [1, 1]} : vector<2x512xf32> to vector<2x128xf32>
    %32 = vector.extract_strided_slice %28 {offsets = [0, 384], sizes = [2, 128], strides = [1, 1]} : vector<2x512xf32> to vector<2x128xf32>
    %33 = arith.mulf %30, %21 : vector<2x128xf32>
    %34 = arith.mulf %29, %31 : vector<2x128xf32>
    %35 = arith.addf %33, %34 : vector<2x128xf32>
    %36 = math.tanh %35 : vector<2x128xf32>
    %37 = arith.mulf %32, %36 : vector<2x128xf32>
    %38 = vector.extract_strided_slice %37 {offsets = [0, 0], sizes = [2, 32], strides = [1, 1]} : vector<2x128xf32> to vector<2x32xf32>
    %cst_17 = arith.constant dense<0.000000e+00> : vector<2x1024xf32>
    %39 = tpu.matmul %38, %0, %cst_17 {dimension_numbers = #tpu.dot_dimension_numbers<[1], [0], [0], [1], [0, 0, 1, 1], [], []>} : vector<2x32xf32>, vector<32x1024xf32>, vector<2x1024xf32> -> vector<2x1024xf32>
    %40 = vector.extract_strided_slice %39 {offsets = [0, 0], sizes = [2, 512], strides = [1, 1]} : vector<2x1024xf32> to vector<2x512xf32>
    %41 = vector.extract_strided_slice %39 {offsets = [0, 512], sizes = [2, 512], strides = [1, 1]} : vector<2x1024xf32> to vector<2x512xf32>
    %42 = vector.broadcast %2 : vector<1x512xf32> to vector<2x512xf32>
    %43 = arith.addf %40, %42 : vector<2x512xf32>
    %44 = arith.addf %43, %22 : vector<2x512xf32>
    %45 = math.tanh %44 : vector<2x512xf32>
    %46 = vector.broadcast %17 : vector<1x512xf32> to vector<2x512xf32>
    %47 = arith.mulf %45, %46 : vector<2x512xf32>
    %48 = vector.broadcast %20 : vector<1x512xf32> to vector<2x512xf32>
    %49 = arith.addf %47, %48 : vector<2x512xf32>
    %50 = vector.extract_strided_slice %49 {offsets = [0, 0], sizes = [2, 128], strides = [1, 1]} : vector<2x512xf32> to vector<2x128xf32>
    %51 = vector.extract_strided_slice %49 {offsets = [0, 128], sizes = [2, 128], strides = [1, 1]} : vector<2x512xf32> to vector<2x128xf32>
    %52 = vector.extract_strided_slice %49 {offsets = [0, 256], sizes = [2, 128], strides = [1, 1]} : vector<2x512xf32> to vector<2x128xf32>
    %53 = vector.extract_strided_slice %49 {offsets = [0, 384], sizes = [2, 128], strides = [1, 1]} : vector<2x512xf32> to vector<2x128xf32>
    %54 = arith.mulf %51, %21 : vector<2x128xf32>
    %55 = arith.mulf %50, %52 : vector<2x128xf32>
    %56 = arith.addf %54, %55 : vector<2x128xf32>
    %57 = math.tanh %56 : vector<2x128xf32>
    %58 = arith.mulf %53, %57 : vector<2x128xf32>
    %c0_18 = arith.constant 0 : index
    %c0_19 = arith.constant 0 : index
    %59 = vector.load %arg9[%c0_18, %c0_19] : memref<16x128xf32, #tpu.memory_space<vmem>>, vector<2x128xf32>
    tpu.vector_store %arg9[%c0_18, %c0_19], %58 {strides = array<i32>} : memref<16x128xf32, #tpu.memory_space<vmem>>, vector<2x128xf32>,
    %60 = vector.extract_strided_slice %58 {offsets = [0, 0], sizes = [2, 64], strides = [1, 1]} : vector<2x128xf32> to vector<2x64xf32>
    %cst_20 = arith.constant dense<0.000000e+00> : vector<2x512xf32>
    %61 = tpu.matmul %60, %1, %cst_20 {dimension_numbers = #tpu.dot_dimension_numbers<[1], [0], [0], [1], [0, 0, 1, 1], [], []>} : vector<2x64xf32>, vector<64x512xf32>, vector<2x512xf32> -> vector<2x512xf32>
    %62 = arith.addf %8, %41 : vector<2x512xf32>
    %63 = math.tanh %62 : vector<2x512xf32>
    %64 = vector.broadcast %17 : vector<1x512xf32> to vector<2x512xf32>
    %65 = arith.mulf %63, %64 : vector<2x512xf32>
    %66 = vector.broadcast %20 : vector<1x512xf32> to vector<2x512xf32>
    %67 = arith.addf %65, %66 : vector<2x512xf32>
    %68 = vector.extract_strided_slice %67 {offsets = [0, 0], sizes = [2, 128], strides = [1, 1]} : vector<2x512xf32> to vector<2x128xf32>
    %69 = vector.extract_strided_slice %67 {offsets = [0, 128], sizes = [2, 128], strides = [1, 1]} : vector<2x512xf32> to vector<2x128xf32>
    %70 = vector.extract_strided_slice %67 {offsets = [0, 256], sizes = [2, 128], strides = [1, 1]} : vector<2x512xf32> to vector<2x128xf32>
    %71 = vector.extract_strided_slice %67 {offsets = [0, 384], sizes = [2, 128], strides = [1, 1]} : vector<2x512xf32> to vector<2x128xf32>
    %72 = arith.mulf %69, %35 : vector<2x128xf32>
    %73 = arith.mulf %68, %70 : vector<2x128xf32>
    %74 = arith.addf %72, %73 : vector<2x128xf32>
    %75 = math.tanh %74 : vector<2x128xf32>
    %76 = arith.mulf %71, %75 : vector<2x128xf32>
    %77 = vector.extract_strided_slice %76 {offsets = [0, 0], sizes = [2, 32], strides = [1, 1]} : vector<2x128xf32> to vector<2x32xf32>
    %cst_21 = arith.constant dense<0.000000e+00> : vector<2x1024xf32>
    %78 = tpu.matmul %77, %0, %cst_21 {dimension_numbers = #tpu.dot_dimension_numbers<[1], [0], [0], [1], [0, 0, 1, 1], [], []>} : vector<2x32xf32>, vector<32x1024xf32>, vector<2x1024xf32> -> vector<2x1024xf32>
    %79 = vector.extract_strided_slice %78 {offsets = [0, 0], sizes = [2, 512], strides = [1, 1]} : vector<2x1024xf32> to vector<2x512xf32>
    %80 = vector.extract_strided_slice %78 {offsets = [0, 512], sizes = [2, 512], strides = [1, 1]} : vector<2x1024xf32> to vector<2x512xf32>
    %81 = vector.broadcast %2 : vector<1x512xf32> to vector<2x512xf32>
    %82 = arith.addf %79, %81 : vector<2x512xf32>
    %83 = arith.addf %82, %61 : vector<2x512xf32>
    %84 = math.tanh %83 : vector<2x512xf32>
    %85 = vector.broadcast %17 : vector<1x512xf32> to vector<2x512xf32>
    %86 = arith.mulf %84, %85 : vector<2x512xf32>
    %87 = vector.broadcast %20 : vector<1x512xf32> to vector<2x512xf32>
    %88 = arith.addf %86, %87 : vector<2x512xf32>
    %89 = vector.extract_strided_slice %88 {offsets = [0, 0], sizes = [2, 128], strides = [1, 1]} : vector<2x512xf32> to vector<2x128xf32>
    %90 = vector.extract_strided_slice %88 {offsets = [0, 128], sizes = [2, 128], strides = [1, 1]} : vector<2x512xf32> to vector<2x128xf32>
    %91 = vector.extract_strided_slice %88 {offsets = [0, 256], sizes = [2, 128], strides = [1, 1]} : vector<2x512xf32> to vector<2x128xf32>
    %92 = vector.extract_strided_slice %88 {offsets = [0, 384], sizes = [2, 128], strides = [1, 1]} : vector<2x512xf32> to vector<2x128xf32>
    %93 = arith.mulf %90, %56 : vector<2x128xf32>
    %94 = arith.mulf %89, %91 : vector<2x128xf32>
    %95 = arith.addf %93, %94 : vector<2x128xf32>
    %96 = math.tanh %95 : vector<2x128xf32>
    %97 = arith.mulf %92, %96 : vector<2x128xf32>
    %c2 = arith.constant 2 : index
    %c0_22 = arith.constant 0 : index
    %98 = vector.load %arg9[%c2, %c0_22] : memref<16x128xf32, #tpu.memory_space<vmem>>, vector<2x128xf32>
    tpu.vector_store %arg9[%c2, %c0_22], %97 {strides = array<i32>} : memref<16x128xf32, #tpu.memory_space<vmem>>, vector<2x128xf32>,
    %99 = vector.extract_strided_slice %97 {offsets = [0, 0], sizes = [2, 64], strides = [1, 1]} : vector<2x128xf32> to vector<2x64xf32>
    %cst_23 = arith.constant dense<0.000000e+00> : vector<2x512xf32>
    %100 = tpu.matmul %99, %1, %cst_23 {dimension_numbers = #tpu.dot_dimension_numbers<[1], [0], [0], [1], [0, 0, 1, 1], [], []>} : vector<2x64xf32>, vector<64x512xf32>, vector<2x512xf32> -> vector<2x512xf32>
    %101 = arith.addf %8, %80 : vector<2x512xf32>
    %102 = math.tanh %101 : vector<2x512xf32>
    %103 = vector.broadcast %17 : vector<1x512xf32> to vector<2x512xf32>
    %104 = arith.mulf %102, %103 : vector<2x512xf32>
    %105 = vector.broadcast %20 : vector<1x512xf32> to vector<2x512xf32>
    %106 = arith.addf %104, %105 : vector<2x512xf32>
    %107 = vector.extract_strided_slice %106 {offsets = [0, 0], sizes = [2, 128], strides = [1, 1]} : vector<2x512xf32> to vector<2x128xf32>
    %108 = vector.extract_strided_slice %106 {offsets = [0, 128], sizes = [2, 128], strides = [1, 1]} : vector<2x512xf32> to vector<2x128xf32>
    %109 = vector.extract_strided_slice %106 {offsets = [0, 256], sizes = [2, 128], strides = [1, 1]} : vector<2x512xf32> to vector<2x128xf32>
    %110 = vector.extract_strided_slice %106 {offsets = [0, 384], sizes = [2, 128], strides = [1, 1]} : vector<2x512xf32> to vector<2x128xf32>
    %111 = arith.mulf %108, %74 : vector<2x128xf32>
    %112 = arith.mulf %107, %109 : vector<2x128xf32>
    %113 = arith.addf %111, %112 : vector<2x128xf32>
    %114 = math.tanh %113 : vector<2x128xf32>
    %115 = arith.mulf %110, %114 : vector<2x128xf32>
    %116 = vector.extract_strided_slice %115 {offsets = [0, 0], sizes = [2, 32], strides = [1, 1]} : vector<2x128xf32> to vector<2x32xf32>
    %cst_24 = arith.constant dense<0.000000e+00> : vector<2x1024xf32>
    %117 = tpu.matmul %116, %0, %cst_24 {dimension_numbers = #tpu.dot_dimension_numbers<[1], [0], [0], [1], [0, 0, 1, 1], [], []>} : vector<2x32xf32>, vector<32x1024xf32>, vector<2x1024xf32> -> vector<2x1024xf32>
    %118 = vector.extract_strided_slice %117 {offsets = [0, 0], sizes = [2, 512], strides = [1, 1]} : vector<2x1024xf32> to vector<2x512xf32>
    %119 = vector.extract_strided_slice %117 {offsets = [0, 512], sizes = [2, 512], strides = [1, 1]} : vector<2x1024xf32> to vector<2x512xf32>
    %120 = vector.broadcast %2 : vector<1x512xf32> to vector<2x512xf32>
    %121 = arith.addf %118, %120 : vector<2x512xf32>
    %122 = arith.addf %121, %100 : vector<2x512xf32>
    %123 = math.tanh %122 : vector<2x512xf32>
    %124 = vector.broadcast %17 : vector<1x512xf32> to vector<2x512xf32>
    %125 = arith.mulf %123, %124 : vector<2x512xf32>
    %126 = vector.broadcast %20 : vector<1x512xf32> to vector<2x512xf32>
    %127 = arith.addf %125, %126 : vector<2x512xf32>
    %128 = vector.extract_strided_slice %127 {offsets = [0, 0], sizes = [2, 128], strides = [1, 1]} : vector<2x512xf32> to vector<2x128xf32>
    %129 = vector.extract_strided_slice %127 {offsets = [0, 128], sizes = [2, 128], strides = [1, 1]} : vector<2x512xf32> to vector<2x128xf32>
    %130 = vector.extract_strided_slice %127 {offsets = [0, 256], sizes = [2, 128], strides = [1, 1]} : vector<2x512xf32> to vector<2x128xf32>
    %131 = vector.extract_strided_slice %127 {offsets = [0, 384], sizes = [2, 128], strides = [1, 1]} : vector<2x512xf32> to vector<2x128xf32>
    %132 = arith.mulf %129, %95 : vector<2x128xf32>
    %133 = arith.mulf %128, %130 : vector<2x128xf32>
    %134 = arith.addf %132, %133 : vector<2x128xf32>
    %135 = math.tanh %134 : vector<2x128xf32>
    %136 = arith.mulf %131, %135 : vector<2x128xf32>
    %c4 = arith.constant 4 : index
    %c0_25 = arith.constant 0 : index
    %137 = vector.load %arg9[%c4, %c0_25] : memref<16x128xf32, #tpu.memory_space<vmem>>, vector<2x128xf32>
    tpu.vector_store %arg9[%c4, %c0_25], %136 {strides = array<i32>} : memref<16x128xf32, #tpu.memory_space<vmem>>, vector<2x128xf32>,
    %138 = vector.extract_strided_slice %136 {offsets = [0, 0], sizes = [2, 64], strides = [1, 1]} : vector<2x128xf32> to vector<2x64xf32>
    %cst_26 = arith.constant dense<0.000000e+00> : vector<2x512xf32>
    %139 = tpu.matmul %138, %1, %cst_26 {dimension_numbers = #tpu.dot_dimension_numbers<[1], [0], [0], [1], [0, 0, 1, 1], [], []>} : vector<2x64xf32>, vector<64x512xf32>, vector<2x512xf32> -> vector<2x512xf32>
    %140 = arith.addf %8, %119 : vector<2x512xf32>
    %141 = math.tanh %140 : vector<2x512xf32>
    %142 = vector.broadcast %17 : vector<1x512xf32> to vector<2x512xf32>
    %143 = arith.mulf %141, %142 : vector<2x512xf32>
    %144 = vector.broadcast %20 : vector<1x512xf32> to vector<2x512xf32>
    %145 = arith.addf %143, %144 : vector<2x512xf32>
    %146 = vector.extract_strided_slice %145 {offsets = [0, 0], sizes = [2, 128], strides = [1, 1]} : vector<2x512xf32> to vector<2x128xf32>
    %147 = vector.extract_strided_slice %145 {offsets = [0, 128], sizes = [2, 128], strides = [1, 1]} : vector<2x512xf32> to vector<2x128xf32>
    %148 = vector.extract_strided_slice %145 {offsets = [0, 256], sizes = [2, 128], strides = [1, 1]} : vector<2x512xf32> to vector<2x128xf32>
    %149 = vector.extract_strided_slice %145 {offsets = [0, 384], sizes = [2, 128], strides = [1, 1]} : vector<2x512xf32> to vector<2x128xf32>
    %150 = arith.mulf %147, %113 : vector<2x128xf32>
    %151 = arith.mulf %146, %148 : vector<2x128xf32>
    %152 = arith.addf %150, %151 : vector<2x128xf32>
    %153 = math.tanh %152 : vector<2x128xf32>
    %154 = arith.mulf %149, %153 : vector<2x128xf32>
    %155 = vector.extract_strided_slice %154 {offsets = [0, 0], sizes = [2, 32], strides = [1, 1]} : vector<2x128xf32> to vector<2x32xf32>
    %cst_27 = arith.constant dense<0.000000e+00> : vector<2x1024xf32>
    %156 = tpu.matmul %155, %0, %cst_27 {dimension_numbers = #tpu.dot_dimension_numbers<[1], [0], [0], [1], [0, 0, 1, 1], [], []>} : vector<2x32xf32>, vector<32x1024xf32>, vector<2x1024xf32> -> vector<2x1024xf32>
    %157 = vector.extract_strided_slice %156 {offsets = [0, 0], sizes = [2, 512], strides = [1, 1]} : vector<2x1024xf32> to vector<2x512xf32>
    %158 = vector.extract_strided_slice %156 {offsets = [0, 512], sizes = [2, 512], strides = [1, 1]} : vector<2x1024xf32> to vector<2x512xf32>
    %159 = vector.broadcast %2 : vector<1x512xf32> to vector<2x512xf32>
    %160 = arith.addf %157, %159 : vector<2x512xf32>
    %161 = arith.addf %160, %139 : vector<2x512xf32>
    %162 = math.tanh %161 : vector<2x512xf32>
    %163 = vector.broadcast %17 : vector<1x512xf32> to vector<2x512xf32>
    %164 = arith.mulf %162, %163 : vector<2x512xf32>
    %165 = vector.broadcast %20 : vector<1x512xf32> to vector<2x512xf32>
    %166 = arith.addf %164, %165 : vector<2x512xf32>
    %167 = vector.extract_strided_slice %166 {offsets = [0, 0], sizes = [2, 128], strides = [1, 1]} : vector<2x512xf32> to vector<2x128xf32>
    %168 = vector.extract_strided_slice %166 {offsets = [0, 128], sizes = [2, 128], strides = [1, 1]} : vector<2x512xf32> to vector<2x128xf32>
    %169 = vector.extract_strided_slice %166 {offsets = [0, 256], sizes = [2, 128], strides = [1, 1]} : vector<2x512xf32> to vector<2x128xf32>
    %170 = vector.extract_strided_slice %166 {offsets = [0, 384], sizes = [2, 128], strides = [1, 1]} : vector<2x512xf32> to vector<2x128xf32>
    %171 = arith.mulf %168, %134 : vector<2x128xf32>
    %172 = arith.mulf %167, %169 : vector<2x128xf32>
    %173 = arith.addf %171, %172 : vector<2x128xf32>
    %174 = math.tanh %173 : vector<2x128xf32>
    %175 = arith.mulf %170, %174 : vector<2x128xf32>
    %c6 = arith.constant 6 : index
    %c0_28 = arith.constant 0 : index
    %176 = vector.load %arg9[%c6, %c0_28] : memref<16x128xf32, #tpu.memory_space<vmem>>, vector<2x128xf32>
    tpu.vector_store %arg9[%c6, %c0_28], %175 {strides = array<i32>} : memref<16x128xf32, #tpu.memory_space<vmem>>, vector<2x128xf32>,
    %177 = vector.extract_strided_slice %175 {offsets = [0, 0], sizes = [2, 64], strides = [1, 1]} : vector<2x128xf32> to vector<2x64xf32>
    %cst_29 = arith.constant dense<0.000000e+00> : vector<2x512xf32>
    %178 = tpu.matmul %177, %1, %cst_29 {dimension_numbers = #tpu.dot_dimension_numbers<[1], [0], [0], [1], [0, 0, 1, 1], [], []>} : vector<2x64xf32>, vector<64x512xf32>, vector<2x512xf32> -> vector<2x512xf32>
    %179 = arith.addf %8, %158 : vector<2x512xf32>
    %180 = math.tanh %179 : vector<2x512xf32>
    %181 = vector.broadcast %17 : vector<1x512xf32> to vector<2x512xf32>
    %182 = arith.mulf %180, %181 : vector<2x512xf32>
    %183 = vector.broadcast %20 : vector<1x512xf32> to vector<2x512xf32>
    %184 = arith.addf %182, %183 : vector<2x512xf32>
    %185 = vector.extract_strided_slice %184 {offsets = [0, 0], sizes = [2, 128], strides = [1, 1]} : vector<2x512xf32> to vector<2x128xf32>
    %186 = vector.extract_strided_slice %184 {offsets = [0, 128], sizes = [2, 128], strides = [1, 1]} : vector<2x512xf32> to vector<2x128xf32>
    %187 = vector.extract_strided_slice %184 {offsets = [0, 256], sizes = [2, 128], strides = [1, 1]} : vector<2x512xf32> to vector<2x128xf32>
    %188 = vector.extract_strided_slice %184 {offsets = [0, 384], sizes = [2, 128], strides = [1, 1]} : vector<2x512xf32> to vector<2x128xf32>
    %189 = arith.mulf %186, %152 : vector<2x128xf32>
    %190 = arith.mulf %185, %187 : vector<2x128xf32>
    %191 = arith.addf %189, %190 : vector<2x128xf32>
    %192 = math.tanh %191 : vector<2x128xf32>
    %193 = arith.mulf %188, %192 : vector<2x128xf32>
    %194 = vector.extract_strided_slice %193 {offsets = [0, 0], sizes = [2, 32], strides = [1, 1]} : vector<2x128xf32> to vector<2x32xf32>
    %cst_30 = arith.constant dense<0.000000e+00> : vector<2x1024xf32>
    %195 = tpu.matmul %194, %0, %cst_30 {dimension_numbers = #tpu.dot_dimension_numbers<[1], [0], [0], [1], [0, 0, 1, 1], [], []>} : vector<2x32xf32>, vector<32x1024xf32>, vector<2x1024xf32> -> vector<2x1024xf32>
    %196 = vector.extract_strided_slice %195 {offsets = [0, 0], sizes = [2, 512], strides = [1, 1]} : vector<2x1024xf32> to vector<2x512xf32>
    %197 = vector.extract_strided_slice %195 {offsets = [0, 512], sizes = [2, 512], strides = [1, 1]} : vector<2x1024xf32> to vector<2x512xf32>
    %198 = vector.broadcast %2 : vector<1x512xf32> to vector<2x512xf32>
    %199 = arith.addf %196, %198 : vector<2x512xf32>
    %200 = arith.addf %199, %178 : vector<2x512xf32>
    %201 = math.tanh %200 : vector<2x512xf32>
    %202 = vector.broadcast %17 : vector<1x512xf32> to vector<2x512xf32>
    %203 = arith.mulf %201, %202 : vector<2x512xf32>
    %204 = vector.broadcast %20 : vector<1x512xf32> to vector<2x512xf32>
    %205 = arith.addf %203, %204 : vector<2x512xf32>
    %206 = vector.extract_strided_slice %205 {offsets = [0, 0], sizes = [2, 128], strides = [1, 1]} : vector<2x512xf32> to vector<2x128xf32>
    %207 = vector.extract_strided_slice %205 {offsets = [0, 128], sizes = [2, 128], strides = [1, 1]} : vector<2x512xf32> to vector<2x128xf32>
    %208 = vector.extract_strided_slice %205 {offsets = [0, 256], sizes = [2, 128], strides = [1, 1]} : vector<2x512xf32> to vector<2x128xf32>
    %209 = vector.extract_strided_slice %205 {offsets = [0, 384], sizes = [2, 128], strides = [1, 1]} : vector<2x512xf32> to vector<2x128xf32>
    %210 = arith.mulf %207, %173 : vector<2x128xf32>
    %211 = arith.mulf %206, %208 : vector<2x128xf32>
    %212 = arith.addf %210, %211 : vector<2x128xf32>
    %213 = math.tanh %212 : vector<2x128xf32>
    %214 = arith.mulf %209, %213 : vector<2x128xf32>
    %c8 = arith.constant 8 : index
    %c0_31 = arith.constant 0 : index
    %215 = vector.load %arg9[%c8, %c0_31] : memref<16x128xf32, #tpu.memory_space<vmem>>, vector<2x128xf32>
    tpu.vector_store %arg9[%c8, %c0_31], %214 {strides = array<i32>} : memref<16x128xf32, #tpu.memory_space<vmem>>, vector<2x128xf32>,
    %216 = vector.extract_strided_slice %214 {offsets = [0, 0], sizes = [2, 64], strides = [1, 1]} : vector<2x128xf32> to vector<2x64xf32>
    %cst_32 = arith.constant dense<0.000000e+00> : vector<2x512xf32>
    %217 = tpu.matmul %216, %1, %cst_32 {dimension_numbers = #tpu.dot_dimension_numbers<[1], [0], [0], [1], [0, 0, 1, 1], [], []>} : vector<2x64xf32>, vector<64x512xf32>, vector<2x512xf32> -> vector<2x512xf32>
    %218 = arith.addf %8, %197 : vector<2x512xf32>
    %219 = math.tanh %218 : vector<2x512xf32>
    %220 = vector.broadcast %17 : vector<1x512xf32> to vector<2x512xf32>
    %221 = arith.mulf %219, %220 : vector<2x512xf32>
    %222 = vector.broadcast %20 : vector<1x512xf32> to vector<2x512xf32>
    %223 = arith.addf %221, %222 : vector<2x512xf32>
    %224 = vector.extract_strided_slice %223 {offsets = [0, 0], sizes = [2, 128], strides = [1, 1]} : vector<2x512xf32> to vector<2x128xf32>
    %225 = vector.extract_strided_slice %223 {offsets = [0, 128], sizes = [2, 128], strides = [1, 1]} : vector<2x512xf32> to vector<2x128xf32>
    %226 = vector.extract_strided_slice %223 {offsets = [0, 256], sizes = [2, 128], strides = [1, 1]} : vector<2x512xf32> to vector<2x128xf32>
    %227 = vector.extract_strided_slice %223 {offsets = [0, 384], sizes = [2, 128], strides = [1, 1]} : vector<2x512xf32> to vector<2x128xf32>
    %228 = arith.mulf %225, %191 : vector<2x128xf32>
    %229 = arith.mulf %224, %226 : vector<2x128xf32>
    %230 = arith.addf %228, %229 : vector<2x128xf32>
    %231 = math.tanh %230 : vector<2x128xf32>
    %232 = arith.mulf %227, %231 : vector<2x128xf32>
    %233 = vector.extract_strided_slice %232 {offsets = [0, 0], sizes = [2, 32], strides = [1, 1]} : vector<2x128xf32> to vector<2x32xf32>
    %cst_33 = arith.constant dense<0.000000e+00> : vector<2x1024xf32>
    %234 = tpu.matmul %233, %0, %cst_33 {dimension_numbers = #tpu.dot_dimension_numbers<[1], [0], [0], [1], [0, 0, 1, 1], [], []>} : vector<2x32xf32>, vector<32x1024xf32>, vector<2x1024xf32> -> vector<2x1024xf32>
    %235 = vector.extract_strided_slice %234 {offsets = [0, 0], sizes = [2, 512], strides = [1, 1]} : vector<2x1024xf32> to vector<2x512xf32>
    %236 = vector.extract_strided_slice %234 {offsets = [0, 512], sizes = [2, 512], strides = [1, 1]} : vector<2x1024xf32> to vector<2x512xf32>
    %237 = vector.broadcast %2 : vector<1x512xf32> to vector<2x512xf32>
    %238 = arith.addf %235, %237 : vector<2x512xf32>
    %239 = arith.addf %238, %217 : vector<2x512xf32>
    %240 = math.tanh %239 : vector<2x512xf32>
    %241 = vector.broadcast %17 : vector<1x512xf32> to vector<2x512xf32>
    %242 = arith.mulf %240, %241 : vector<2x512xf32>
    %243 = vector.broadcast %20 : vector<1x512xf32> to vector<2x512xf32>
    %244 = arith.addf %242, %243 : vector<2x512xf32>
    %245 = vector.extract_strided_slice %244 {offsets = [0, 0], sizes = [2, 128], strides = [1, 1]} : vector<2x512xf32> to vector<2x128xf32>
    %246 = vector.extract_strided_slice %244 {offsets = [0, 128], sizes = [2, 128], strides = [1, 1]} : vector<2x512xf32> to vector<2x128xf32>
    %247 = vector.extract_strided_slice %244 {offsets = [0, 256], sizes = [2, 128], strides = [1, 1]} : vector<2x512xf32> to vector<2x128xf32>
    %248 = vector.extract_strided_slice %244 {offsets = [0, 384], sizes = [2, 128], strides = [1, 1]} : vector<2x512xf32> to vector<2x128xf32>
    %249 = arith.mulf %246, %212 : vector<2x128xf32>
    %250 = arith.mulf %245, %247 : vector<2x128xf32>
    %251 = arith.addf %249, %250 : vector<2x128xf32>
    %252 = math.tanh %251 : vector<2x128xf32>
    %253 = arith.mulf %248, %252 : vector<2x128xf32>
    %c10 = arith.constant 10 : index
    %c0_34 = arith.constant 0 : index
    %254 = vector.load %arg9[%c10, %c0_34] : memref<16x128xf32, #tpu.memory_space<vmem>>, vector<2x128xf32>
    tpu.vector_store %arg9[%c10, %c0_34], %253 {strides = array<i32>} : memref<16x128xf32, #tpu.memory_space<vmem>>, vector<2x128xf32>,
    %255 = vector.extract_strided_slice %253 {offsets = [0, 0], sizes = [2, 64], strides = [1, 1]} : vector<2x128xf32> to vector<2x64xf32>
    %cst_35 = arith.constant dense<0.000000e+00> : vector<2x512xf32>
    %256 = tpu.matmul %255, %1, %cst_35 {dimension_numbers = #tpu.dot_dimension_numbers<[1], [0], [0], [1], [0, 0, 1, 1], [], []>} : vector<2x64xf32>, vector<64x512xf32>, vector<2x512xf32> -> vector<2x512xf32>
    %257 = arith.addf %8, %236 : vector<2x512xf32>
    %258 = math.tanh %257 : vector<2x512xf32>
    %259 = vector.broadcast %17 : vector<1x512xf32> to vector<2x512xf32>
    %260 = arith.mulf %258, %259 : vector<2x512xf32>
    %261 = vector.broadcast %20 : vector<1x512xf32> to vector<2x512xf32>
    %262 = arith.addf %260, %261 : vector<2x512xf32>
    %263 = vector.extract_strided_slice %262 {offsets = [0, 0], sizes = [2, 128], strides = [1, 1]} : vector<2x512xf32> to vector<2x128xf32>
    %264 = vector.extract_strided_slice %262 {offsets = [0, 128], sizes = [2, 128], strides = [1, 1]} : vector<2x512xf32> to vector<2x128xf32>
    %265 = vector.extract_strided_slice %262 {offsets = [0, 256], sizes = [2, 128], strides = [1, 1]} : vector<2x512xf32> to vector<2x128xf32>
    %266 = vector.extract_strided_slice %262 {offsets = [0, 384], sizes = [2, 128], strides = [1, 1]} : vector<2x512xf32> to vector<2x128xf32>
    %267 = arith.mulf %264, %230 : vector<2x128xf32>
    %268 = arith.mulf %263, %265 : vector<2x128xf32>
    %269 = arith.addf %267, %268 : vector<2x128xf32>
    %270 = math.tanh %269 : vector<2x128xf32>
    %271 = arith.mulf %266, %270 : vector<2x128xf32>
    %272 = vector.extract_strided_slice %271 {offsets = [0, 0], sizes = [2, 32], strides = [1, 1]} : vector<2x128xf32> to vector<2x32xf32>
    %cst_36 = arith.constant dense<0.000000e+00> : vector<2x1024xf32>
    %273 = tpu.matmul %272, %0, %cst_36 {dimension_numbers = #tpu.dot_dimension_numbers<[1], [0], [0], [1], [0, 0, 1, 1], [], []>} : vector<2x32xf32>, vector<32x1024xf32>, vector<2x1024xf32> -> vector<2x1024xf32>
    %274 = vector.extract_strided_slice %273 {offsets = [0, 0], sizes = [2, 512], strides = [1, 1]} : vector<2x1024xf32> to vector<2x512xf32>
    %275 = vector.extract_strided_slice %273 {offsets = [0, 512], sizes = [2, 512], strides = [1, 1]} : vector<2x1024xf32> to vector<2x512xf32>
    %276 = vector.broadcast %2 : vector<1x512xf32> to vector<2x512xf32>
    %277 = arith.addf %274, %276 : vector<2x512xf32>
    %278 = arith.addf %277, %256 : vector<2x512xf32>
    %279 = math.tanh %278 : vector<2x512xf32>
    %280 = vector.broadcast %17 : vector<1x512xf32> to vector<2x512xf32>
    %281 = arith.mulf %279, %280 : vector<2x512xf32>
    %282 = vector.broadcast %20 : vector<1x512xf32> to vector<2x512xf32>
    %283 = arith.addf %281, %282 : vector<2x512xf32>
    %284 = vector.extract_strided_slice %283 {offsets = [0, 0], sizes = [2, 128], strides = [1, 1]} : vector<2x512xf32> to vector<2x128xf32>
    %285 = vector.extract_strided_slice %283 {offsets = [0, 128], sizes = [2, 128], strides = [1, 1]} : vector<2x512xf32> to vector<2x128xf32>
    %286 = vector.extract_strided_slice %283 {offsets = [0, 256], sizes = [2, 128], strides = [1, 1]} : vector<2x512xf32> to vector<2x128xf32>
    %287 = vector.extract_strided_slice %283 {offsets = [0, 384], sizes = [2, 128], strides = [1, 1]} : vector<2x512xf32> to vector<2x128xf32>
    %288 = arith.mulf %285, %251 : vector<2x128xf32>
    %289 = arith.mulf %284, %286 : vector<2x128xf32>
    %290 = arith.addf %288, %289 : vector<2x128xf32>
    %291 = math.tanh %290 : vector<2x128xf32>
    %292 = arith.mulf %287, %291 : vector<2x128xf32>
    %c12 = arith.constant 12 : index
    %c0_37 = arith.constant 0 : index
    %293 = vector.load %arg9[%c12, %c0_37] : memref<16x128xf32, #tpu.memory_space<vmem>>, vector<2x128xf32>
    tpu.vector_store %arg9[%c12, %c0_37], %292 {strides = array<i32>} : memref<16x128xf32, #tpu.memory_space<vmem>>, vector<2x128xf32>,
    %294 = vector.extract_strided_slice %292 {offsets = [0, 0], sizes = [2, 64], strides = [1, 1]} : vector<2x128xf32> to vector<2x64xf32>
    %cst_38 = arith.constant dense<0.000000e+00> : vector<2x512xf32>
    %295 = tpu.matmul %294, %1, %cst_38 {dimension_numbers = #tpu.dot_dimension_numbers<[1], [0], [0], [1], [0, 0, 1, 1], [], []>} : vector<2x64xf32>, vector<64x512xf32>, vector<2x512xf32> -> vector<2x512xf32>
    %296 = arith.addf %8, %275 : vector<2x512xf32>
    %297 = math.tanh %296 : vector<2x512xf32>
    %298 = vector.broadcast %17 : vector<1x512xf32> to vector<2x512xf32>
    %299 = arith.mulf %297, %298 : vector<2x512xf32>
    %300 = vector.broadcast %20 : vector<1x512xf32> to vector<2x512xf32>
    %301 = arith.addf %299, %300 : vector<2x512xf32>
    %302 = vector.extract_strided_slice %301 {offsets = [0, 0], sizes = [2, 128], strides = [1, 1]} : vector<2x512xf32> to vector<2x128xf32>
    %303 = vector.extract_strided_slice %301 {offsets = [0, 128], sizes = [2, 128], strides = [1, 1]} : vector<2x512xf32> to vector<2x128xf32>
    %304 = vector.extract_strided_slice %301 {offsets = [0, 256], sizes = [2, 128], strides = [1, 1]} : vector<2x512xf32> to vector<2x128xf32>
    %305 = vector.extract_strided_slice %301 {offsets = [0, 384], sizes = [2, 128], strides = [1, 1]} : vector<2x512xf32> to vector<2x128xf32>
    %306 = arith.mulf %303, %269 : vector<2x128xf32>
    %307 = arith.mulf %302, %304 : vector<2x128xf32>
    %308 = arith.addf %306, %307 : vector<2x128xf32>
    %309 = math.tanh %308 : vector<2x128xf32>
    %310 = arith.mulf %305, %309 : vector<2x128xf32>
    %311 = vector.extract_strided_slice %310 {offsets = [0, 0], sizes = [2, 32], strides = [1, 1]} : vector<2x128xf32> to vector<2x32xf32>
    %cst_39 = arith.constant dense<0.000000e+00> : vector<2x1024xf32>
    %312 = tpu.matmul %311, %0, %cst_39 {dimension_numbers = #tpu.dot_dimension_numbers<[1], [0], [0], [1], [0, 0, 1, 1], [], []>} : vector<2x32xf32>, vector<32x1024xf32>, vector<2x1024xf32> -> vector<2x1024xf32>
    %313 = vector.extract_strided_slice %312 {offsets = [0, 0], sizes = [2, 512], strides = [1, 1]} : vector<2x1024xf32> to vector<2x512xf32>
    %314 = vector.broadcast %2 : vector<1x512xf32> to vector<2x512xf32>
    %315 = arith.addf %313, %314 : vector<2x512xf32>
    %316 = arith.addf %315, %295 : vector<2x512xf32>
    %317 = math.tanh %316 : vector<2x512xf32>
    %318 = vector.broadcast %17 : vector<1x512xf32> to vector<2x512xf32>
    %319 = arith.mulf %317, %318 : vector<2x512xf32>
    %320 = vector.broadcast %20 : vector<1x512xf32> to vector<2x512xf32>
    %321 = arith.addf %319, %320 : vector<2x512xf32>
    %322 = vector.extract_strided_slice %321 {offsets = [0, 0], sizes = [2, 128], strides = [1, 1]} : vector<2x512xf32> to vector<2x128xf32>
    %323 = vector.extract_strided_slice %321 {offsets = [0, 128], sizes = [2, 128], strides = [1, 1]} : vector<2x512xf32> to vector<2x128xf32>
    %324 = vector.extract_strided_slice %321 {offsets = [0, 256], sizes = [2, 128], strides = [1, 1]} : vector<2x512xf32> to vector<2x128xf32>
    %325 = vector.extract_strided_slice %321 {offsets = [0, 384], sizes = [2, 128], strides = [1, 1]} : vector<2x512xf32> to vector<2x128xf32>
    %326 = arith.mulf %323, %290 : vector<2x128xf32>
    %327 = arith.mulf %322, %324 : vector<2x128xf32>
    %328 = arith.addf %326, %327 : vector<2x128xf32>
    %329 = math.tanh %328 : vector<2x128xf32>
    %330 = arith.mulf %325, %329 : vector<2x128xf32>
    %c14 = arith.constant 14 : index
    %c0_40 = arith.constant 0 : index
    %331 = vector.load %arg9[%c14, %c0_40] : memref<16x128xf32, #tpu.memory_space<vmem>>, vector<2x128xf32>
    tpu.vector_store %arg9[%c14, %c0_40], %330 {strides = array<i32>} : memref<16x128xf32, #tpu.memory_space<vmem>>, vector<2x128xf32>,
    %c0_41 = arith.constant 0 : index
    %c0_42 = arith.constant 0 : index
    %332 = vector.load %arg9[%c0_41, %c0_42] : memref<16x128xf32, #tpu.memory_space<vmem>>, vector<16x128xf32>
    %c0_43 = arith.constant 0 : index
    %c0_44 = arith.constant 0 : index
    %333 = vector.load %arg6[%c0_43, %c0_44] : memref<128x4xf32, #tpu.memory_space<vmem>>, vector<128x4xf32>
    %cst_45 = arith.constant dense<0.000000e+00> : vector<16x4xf32>
    %334 = tpu.matmul %332, %333, %cst_45 {dimension_numbers = #tpu.dot_dimension_numbers<[1], [0], [0], [1], [0, 0, 1, 1], [], []>} : vector<16x128xf32>, vector<128x4xf32>, vector<16x4xf32> -> vector<16x4xf32>
    %c0_46 = arith.constant 0 : index
    %c0_47 = arith.constant 0 : index
    %335 = vector.load %arg7[%c0_46, %c0_47] : memref<1x4xf32, #tpu.memory_space<vmem>>, vector<1x4xf32>
    %336 = vector.broadcast %335 : vector<1x4xf32> to vector<16x4xf32>
    %337 = arith.addf %334, %336 : vector<16x4xf32>
    %c0_48 = arith.constant 0 : index
    %c0_49 = arith.constant 0 : index
    %338 = vector.load %arg8[%c0_48, %c0_49] : memref<16x4xf32, #tpu.memory_space<vmem>>, vector<16x4xf32>
    tpu.vector_store %arg8[%c0_48, %c0_49], %337 {strides = array<i32>} : memref<16x4xf32, #tpu.memory_space<vmem>>, vector<16x4xf32>,
    return
  }
}

</mosaic_0001>

<llo_original>
// kernel: decoder_forward.1
$region0: #{decoder_forward.1}
  #allocation0 [shape = 'u32[]', space=smem, size = 0x4, offset = 0x4, fixed_abs, tag = 'smem constant byte address 0x4 - core index']
  #allocation1 [shape = 'u32[144,128]{1,0:T(1,128)}', space=vmem, size = 0x12000, scoped, tag = 'internal scratch']
  #allocation2 [shape = 'f32[16,128]{1,0:T(8,128)}', space=vmem, size = 0x2000, scoped, tag = 'scratch operand']
  %s0 = inlined_call_operand.hbm [shape: f32[2,32], index: 0, kind: input, shape index: {}]
  %s1 = inlined_call_operand.vmem [shape: f32[32,512], index: 1, kind: input, shape index: {}]
  %s2 = inlined_call_operand.vmem [shape: f32[1,512], index: 2, kind: input, shape index: {}]
  %s3 = inlined_call_operand.hbm [shape: f32[32,1024], index: 3, kind: input, shape index: {}]
  %s4 = inlined_call_operand.hbm [shape: f32[64,512], index: 4, kind: input, shape index: {}]
  %s5 = inlined_call_operand.vmem [shape: f32[1,512], index: 5, kind: input, shape index: {}]
  %s6 = inlined_call_operand.vmem [shape: f32[128,4], index: 6, kind: input, shape index: {}]
  %s7 = inlined_call_operand.vmem [shape: f32[1,4], index: 7, kind: input, shape index: {}]
  %s8 = inlined_call_operand.vmem [shape: f32[16,4], index: 8, kind: output, shape index: {}]
  %s9 = sld [smem:[#allocation0]]
  $region54: #{decoder_forward.1} parent=0
    _
  %s11 = ssub.s32 1, %s9
  %s12 = scalar_select 0, %s11, %s9
  $region1: #{decoder_forward.1} parent=0
    #allocation3 [shape = 'u8[1024]{0}', space=vmem, size = 0x400, scoped, tag = 'input window, operand 0, single buffered']
    #allocation4 [shape = 's32[1]{0}', space=sflag, size = 0x4, scoped, tag = 'scoped memory for decoder_forward.1']
    #allocation5 [shape = 'u8[131072]{0}', space=vmem, size = 0x20000, scoped, tag = 'input window, operand 3, single buffered']
    #allocation6 [shape = 's32[1]{0}', space=sflag, size = 0x4, scoped, tag = 'scoped memory for decoder_forward.1']
    #allocation7 [shape = 'u8[131072]{0}', space=vmem, size = 0x20000, scoped, tag = 'input window, operand 4, single buffered']
    %13 = vsyncpa [#allocation4], 0
    %14 = vsyncpa [#allocation6], 0
    // Predicated region
    $region2: #{decoder_forward.1} parent=1 // pred_check
      _
    $region3: #{decoder_forward.1} parent=1 // pred_check_branch
      %16 = sbr.rel (0) target = $region5
    $region4: #{decoder_forward.1} parent=1 // pred_region
      %s18 = ssub.s32 32, 32
      %19 = vsyncadd [#allocation4], %s18
      %s21 = sshll.u32 [#allocation3], 4
      %s22 = int_to_ptr.vmem [resolvable:$true] %s21
      %24 = dma.hbm_to_vmem [thread:$0]  %s0, 32, %s22, [#allocation4]
    $region5: #{decoder_forward.1} parent=1 // pred_fallthru
      _
    // Predicated region
    $region6: #{decoder_forward.1} parent=1 // pred_check
      _
    $region7: #{decoder_forward.1} parent=1 // pred_check_branch
      %26 = sbr.rel (0) target = $region9
    $region8: #{decoder_forward.1} parent=1 // pred_region
      _
    $region9: #{decoder_forward.1} parent=1 // pred_fallthru
      _
    // Predicated region
    $region10: #{decoder_forward.1} parent=1 // pred_check
      _
    $region11: #{decoder_forward.1} parent=1 // pred_check_branch
      %28 = sbr.rel (0) target = $region13
    $region12: #{decoder_forward.1} parent=1 // pred_region
      _
    $region13: #{decoder_forward.1} parent=1 // pred_fallthru
      _
    // Predicated region
    $region14: #{decoder_forward.1} parent=1 // pred_check
      _
    $region15: #{decoder_forward.1} parent=1 // pred_check_branch
      %30 = sbr.rel (0) target = $region17
    $region16: #{decoder_forward.1} parent=1 // pred_region
      %s32 = ssub.s32 4096, 4096
      %33 = vsyncadd [#allocation6], %s32
      %s34 = sshll.u32 [#allocation5], 4
      %s35 = int_to_ptr.vmem [resolvable:$true] %s34
      %40 = dma.hbm_to_vmem [thread:$0]  %s3, 4096, %s35, [#allocation6], 1024, 1024, 64
    $region17: #{decoder_forward.1} parent=1 // pred_fallthru
      _
    // Predicated region
    $region18: #{decoder_forward.1} parent=1 // pred_check
      _
    $region19: #{decoder_forward.1} parent=1 // pred_check_branch
      %42 = sbr.rel (0) target = $region21
    $region20: #{decoder_forward.1} parent=1 // pred_region
      %s44 = ssub.s32 4096, 4096
      %45 = vsyncadd [#allocation6], %s44
      %s46 = sshll.u32 [#allocation7], 4
      %s47 = int_to_ptr.vmem [resolvable:$true] %s46
      %52 = dma.hbm_to_vmem [thread:$0]  %s4, 4096, %s47, [#allocation6], 512, 512, 32
    $region21: #{decoder_forward.1} parent=1 // pred_fallthru
      _
    // Predicated region
    $region22: #{decoder_forward.1} parent=1 // pred_check
      _
    $region23: #{decoder_forward.1} parent=1 // pred_check_branch
      %54 = sbr.rel (0) target = $region25
    $region24: #{decoder_forward.1} parent=1 // pred_region
      _
    $region25: #{decoder_forward.1} parent=1 // pred_fallthru
      _
    // Predicated region
    $region26: #{decoder_forward.1} parent=1 // pred_check
      _
    $region27: #{decoder_forward.1} parent=1 // pred_check_branch
      %56 = sbr.rel (0) target = $region29
    $region28: #{decoder_forward.1} parent=1 // pred_region
      _
    $region29: #{decoder_forward.1} parent=1 // pred_fallthru
      _
    // Predicated region
    $region30: #{decoder_forward.1} parent=1 // pred_check
      _
    $region31: #{decoder_forward.1} parent=1 // pred_check_branch
      %58 = sbr.rel (0) target = $region33
    $region32: #{decoder_forward.1} parent=1 // pred_region
      _
    $region33: #{decoder_forward.1} parent=1 // pred_fallthru
      _
    // Predicated region
    $region34: #{decoder_forward.1} parent=1 // pred_check
      _
    $region35: #{decoder_forward.1} parent=1 // pred_check_branch
      %60 = sbr.rel (0) target = $region37
    $region36: #{decoder_forward.1} parent=1 // pred_region
      %61 = dma.done [#allocation4], 32
    $region37: #{decoder_forward.1} parent=1 // pred_fallthru
      _
    // Predicated region
    $region38: #{decoder_forward.1} parent=1 // pred_check
      _
    $region39: #{decoder_forward.1} parent=1 // pred_check_branch
      %63 = sbr.rel (0) target = $region41
    $region40: #{decoder_forward.1} parent=1 // pred_region
      %64 = dma.done [#allocation6], 4096
    $region41: #{decoder_forward.1} parent=1 // pred_fallthru
      _
    // Predicated region
    $region42: #{decoder_forward.1} parent=1 // pred_check
      _
    $region43: #{decoder_forward.1} parent=1 // pred_check_branch
      %66 = sbr.rel (0) target = $region45
    $region44: #{decoder_forward.1} parent=1 // pred_region
      %67 = dma.done [#allocation6], 4096
    $region45: #{decoder_forward.1} parent=1 // pred_fallthru
      _
    %v68 = vld [vmem:[#allocation5] sm:$0xff]
    %v69 = vld [vmem:[#allocation5 + $0x8] sm:$0xff]
    %v70 = vld [vmem:[#allocation5 + $0x10] sm:$0xff]
    %v71 = vld [vmem:[#allocation5 + $0x18] sm:$0xff]
    %v72 = vld [vmem:[#allocation5 + $0x20] sm:$0xff]
    %v73 = vld [vmem:[#allocation5 + $0x28] sm:$0xff]
    %v74 = vld [vmem:[#allocation5 + $0x30] sm:$0xff]
    %v75 = vld [vmem:[#allocation5 + $0x38] sm:$0xff]
    %v76 = vld [vmem:[#allocation5 + $0x40] sm:$0xff]
    %v77 = vld [vmem:[#allocation5 + $0x48] sm:$0xff]
    %v78 = vld [vmem:[#allocation5 + $0x50] sm:$0xff]
    %v79 = vld [vmem:[#allocation5 + $0x58] sm:$0xff]
    %v80 = vld [vmem:[#allocation5 + $0x60] sm:$0xff]
    %v81 = vld [vmem:[#allocation5 + $0x68] sm:$0xff]
    %v82 = vld [vmem:[#allocation5 + $0x70] sm:$0xff]
    %v83 = vld [vmem:[#allocation5 + $0x78] sm:$0xff]
    %v84 = vld [vmem:[#allocation5 + $0x80] sm:$0xff]
    %v85 = vld [vmem:[#allocation5 + $0x88] sm:$0xff]
    %v86 = vld [vmem:[#allocation5 + $0x90] sm:$0xff]
    %v87 = vld [vmem:[#allocation5 + $0x98] sm:$0xff]
    %v88 = vld [vmem:[#allocation5 + $0xa0] sm:$0xff]
    %v89 = vld [vmem:[#allocation5 + $0xa8] sm:$0xff]
    %v90 = vld [vmem:[#allocation5 + $0xb0] sm:$0xff]
    %v91 = vld [vmem:[#allocation5 + $0xb8] sm:$0xff]
    %v92 = vld [vmem:[#allocation5 + $0xc0] sm:$0xff]
    %v93 = vld [vmem:[#allocation5 + $0xc8] sm:$0xff]
    %v94 = vld [vmem:[#allocation5 + $0xd0] sm:$0xff]
    %v95 = vld [vmem:[#allocation5 + $0xd8] sm:$0xff]
    %v96 = vld [vmem:[#allocation5 + $0xe0] sm:$0xff]
    %v97 = vld [vmem:[#allocation5 + $0xe8] sm:$0xff]
    %v98 = vld [vmem:[#allocation5 + $0xf0] sm:$0xff]
    %v99 = vld [vmem:[#allocation5 + $0xf8] sm:$0xff]
    %v100 = vld [vmem:[#allocation7] sm:$0xff]
    %v101 = vld [vmem:[#allocation7 + $0x8] sm:$0xff]
    %v102 = vld [vmem:[#allocation7 + $0x10] sm:$0xff]
    %v103 = vld [vmem:[#allocation7 + $0x18] sm:$0xff]
    %v104 = vld [vmem:[#allocation7 + $0x20] sm:$0xff]
    %v105 = vld [vmem:[#allocation7 + $0x28] sm:$0xff]
    %v106 = vld [vmem:[#allocation7 + $0x30] sm:$0xff]
    %v107 = vld [vmem:[#allocation7 + $0x38] sm:$0xff]
    %v108 = vld [vmem:[#allocation7 + $0x40] sm:$0xff]
    %v109 = vld [vmem:[#allocation7 + $0x48] sm:$0xff]
    %v110 = vld [vmem:[#allocation7 + $0x50] sm:$0xff]
    %v111 = vld [vmem:[#allocation7 + $0x58] sm:$0xff]
    %v112 = vld [vmem:[#allocation7 + $0x60] sm:$0xff]
    %v113 = vld [vmem:[#allocation7 + $0x68] sm:$0xff]
    %v114 = vld [vmem:[#allocation7 + $0x70] sm:$0xff]
    %v115 = vld [vmem:[#allocation7 + $0x78] sm:$0xff]
    %v116 = vld [vmem:[#allocation7 + $0x80] sm:$0xff]
    %v117 = vld [vmem:[#allocation7 + $0x88] sm:$0xff]
    %v118 = vld [vmem:[#allocation7 + $0x90] sm:$0xff]
    %v119 = vld [vmem:[#allocation7 + $0x98] sm:$0xff]
    %v120 = vld [vmem:[#allocation7 + $0xa0] sm:$0xff]
    %v121 = vld [vmem:[#allocation7 + $0xa8] sm:$0xff]
    %v122 = vld [vmem:[#allocation7 + $0xb0] sm:$0xff]
    %v123 = vld [vmem:[#allocation7 + $0xb8] sm:$0xff]
    %v124 = vld [vmem:[#allocation7 + $0xc0] sm:$0xff]
    %v125 = vld [vmem:[#allocation7 + $0xc8] sm:$0xff]
    %v126 = vld [vmem:[#allocation7 + $0xd0] sm:$0xff]
    %v127 = vld [vmem:[#allocation7 + $0xd8] sm:$0xff]
    %v128 = vld [vmem:[#allocation7 + $0xe0] sm:$0xff]
    %v129 = vld [vmem:[#allocation7 + $0xe8] sm:$0xff]
    %v130 = vld [vmem:[#allocation7 + $0xf0] sm:$0xff]
    %v131 = vld [vmem:[#allocation7 + $0xf8] sm:$0xff]
    %v132 = vld [vmem:[%s5] sm:$0xf]
    %v133 = vld [vmem:[#allocation3] sm:$0x3]
    %v134 = vld [vmem:[%s1] sm:$0xff]
    %v135 = vld [vmem:[%s1 + $0x8] sm:$0xff]
    %v136 = vld [vmem:[%s1 + $0x10] sm:$0xff]
    %v137 = vld [vmem:[%s1 + $0x18] sm:$0xff]
    %v138 = vld [vmem:[%s1 + $0x20] sm:$0xff]
    %v139 = vld [vmem:[%s1 + $0x28] sm:$0xff]
    %v140 = vld [vmem:[%s1 + $0x30] sm:$0xff]
    %v141 = vld [vmem:[%s1 + $0x38] sm:$0xff]
    %v142 = vld [vmem:[%s1 + $0x40] sm:$0xff]
    %v143 = vld [vmem:[%s1 + $0x48] sm:$0xff]
    %v144 = vld [vmem:[%s1 + $0x50] sm:$0xff]
    %v145 = vld [vmem:[%s1 + $0x58] sm:$0xff]
    %v146 = vld [vmem:[%s1 + $0x60] sm:$0xff]
    %v147 = vld [vmem:[%s1 + $0x68] sm:$0xff]
    %v148 = vld [vmem:[%s1 + $0x70] sm:$0xff]
    %v149 = vld [vmem:[%s1 + $0x78] sm:$0xff]
    %v150 = vld [vmem:[%s2] sm:$0xf]
    %v152 = vlaneseq
    %v153 = vshrl.u32 %v152, 7
    %v154 = vsub.s32 0, %v153
    %v155 = vrot.slane %v150, %v154
    %v156 = vlaneseq
    %v157 = vshrl.u32 %v156, 7
    %v158 = vsub.s32 1, %v157
    %v159 = vrot.slane %v150, %v158
    %v160 = vlaneseq
    %v161 = vshrl.u32 %v160, 7
    %v162 = vsub.s32 2, %v161
    %v163 = vrot.slane %v150, %v162
    %v164 = vlaneseq
    %v165 = vshrl.u32 %v164, 7
    %v166 = vsub.s32 3, %v165
    %v167 = vrot.slane %v150, %v166
    %vm172 = vcmask 261120
    %v174 = vsel %vm172, %v133, 0
    %176 = vmatprep.subr.mxu0 0.0
    %177 = vmatpush1.msra.mxu0 0.0
    %178 = vmatprep.subr.mxu0 0.0
    %179 = vmatpush1.msra.mxu0 0.0
    %180 = vmatprep.subr.mxu0 0.0
    %181 = vmatpush1.msra.mxu0 0.0
    %182 = vmatprep.subr.mxu0 0.0
    %183 = vmatpush1.msra.mxu0 0.0
    %184 = vmatprep.subr.mxu0 0.0
    %185 = vmatpush1.msra.mxu0 0.0
    %186 = vmatprep.subr.mxu0 0.0
    %187 = vmatpush1.msra.mxu0 0.0
    %188 = vmatprep.subr.mxu0 0.0
    %189 = vmatpush1.msra.mxu0 0.0
    %190 = vmatprep.subr.mxu0 0.0
    %191 = vmatpush1.msra.mxu0 0.0
    %192 = vmatprep.subr.mxu0 0.0
    %193 = vmatpush1.msra.mxu0 0.0
    %194 = vmatprep.subr.mxu0 0.0
    %195 = vmatpush1.msra.mxu0 0.0
    %196 = vmatprep.subr.mxu0 0.0
    %197 = vmatpush1.msra.mxu0 0.0
    %198 = vmatprep.subr.mxu0 0.0
    %199 = vmatpush1.msra.mxu0 0.0
    %200 = vmatprep.subr.mxu0 %v147
    %201 = vmatpush1.msra.mxu0 %v146
    %202 = vmatprep.subr.mxu0 %v143
    %203 = vmatpush1.msra.mxu0 %v142
    %204 = vmatprep.subr.mxu0 %v139
    %205 = vmatpush1.msra.mxu0 %v138
    %206 = vmatprep.subr.mxu0 %v135
    %207 = vmatpush1.msra.mxu0 %v134
    %208 = vmatprep.subr.mxu0 0.0
    %209 = vmatpush2.msra.mxu0 0.0
    %210 = vmatprep.subr.mxu0 0.0
    %211 = vmatpush2.msra.mxu0 0.0
    %212 = vmatprep.subr.mxu0 0.0
    %213 = vmatpush2.msra.mxu0 0.0
    %214 = vmatprep.subr.mxu0 0.0
    %215 = vmatpush2.msra.mxu0 0.0
    %216 = vmatprep.subr.mxu0 0.0
    %217 = vmatpush2.msra.mxu0 0.0
    %218 = vmatprep.subr.mxu0 0.0
    %219 = vmatpush2.msra.mxu0 0.0
    %220 = vmatprep.subr.mxu0 0.0
    %221 = vmatpush2.msra.mxu0 0.0
    %222 = vmatprep.subr.mxu0 0.0
    %223 = vmatpush2.msra.mxu0 0.0
    %224 = vmatprep.subr.mxu0 0.0
    %225 = vmatpush2.msra.mxu0 0.0
    %226 = vmatprep.subr.mxu0 0.0
    %227 = vmatpush2.msra.mxu0 0.0
    %228 = vmatprep.subr.mxu0 0.0
    %229 = vmatpush2.msra.mxu0 0.0
    %230 = vmatprep.subr.mxu0 0.0
    %231 = vmatpush2.msra.mxu0 0.0
    %232 = vmatprep.subr.mxu0 0.0
    %233 = vmatpush2.msra.mxu0 0.0
    %234 = vmatprep.subr.mxu0 0.0
    %235 = vmatpush2.msra.mxu0 0.0
    %236 = vmatprep.subr.mxu0 0.0
    %237 = vmatpush2.msra.mxu0 0.0
    %238 = vmatprep.subr.mxu0 0.0
    %239 = vmatpush2.msra.mxu0 0.0
    %240 = vmatprep.mubr.f32.mxu0 0.0
    %241 = vmatmul.mubr.f32.gmra.mxu0 %v174
    %v242 = vpop.f32.mrf.mxu0
    %v243 = vadd.f32 %v155, %v242
    %v244 = vpop.f32.mrf.mxu0
    %v245 = vadd.f32 %v159, %v244
    %246 = vdwg.mxu0
    %247 = vmatprep.subr.mxu0 0.0
    %248 = vmatpush1.msra.mxu0 0.0
    %249 = vmatprep.subr.mxu0 0.0
    %250 = vmatpush1.msra.mxu0 0.0
    %251 = vmatprep.subr.mxu0 0.0
    %252 = vmatpush1.msra.mxu0 0.0
    %253 = vmatprep.subr.mxu0 0.0
    %254 = vmatpush1.msra.mxu0 0.0
    %255 = vmatprep.subr.mxu0 0.0
    %256 = vmatpush1.msra.mxu0 0.0
    %257 = vmatprep.subr.mxu0 0.0
    %258 = vmatpush1.msra.mxu0 0.0
    %259 = vmatprep.subr.mxu0 0.0
    %260 = vmatpush1.msra.mxu0 0.0
    %261 = vmatprep.subr.mxu0 0.0
    %262 = vmatpush1.msra.mxu0 0.0
    %263 = vmatprep.subr.mxu0 0.0
    %264 = vmatpush1.msra.mxu0 0.0
    %265 = vmatprep.subr.mxu0 0.0
    %266 = vmatpush1.msra.mxu0 0.0
    %267 = vmatprep.subr.mxu0 0.0
    %268 = vmatpush1.msra.mxu0 0.0
    %269 = vmatprep.subr.mxu0 0.0
    %270 = vmatpush1.msra.mxu0 0.0
    %271 = vmatprep.subr.mxu0 %v149
    %272 = vmatpush1.msra.mxu0 %v148
    %273 = vmatprep.subr.mxu0 %v145
    %274 = vmatpush1.msra.mxu0 %v144
    %275 = vmatprep.subr.mxu0 %v141
    %276 = vmatpush1.msra.mxu0 %v140
    %277 = vmatprep.subr.mxu0 %v137
    %278 = vmatpush1.msra.mxu0 %v136
    %279 = vmatprep.subr.mxu0 0.0
    %280 = vmatpush2.msra.mxu0 0.0
    %281 = vmatprep.subr.mxu0 0.0
    %282 = vmatpush2.msra.mxu0 0.0
    %283 = vmatprep.subr.mxu0 0.0
    %284 = vmatpush2.msra.mxu0 0.0
    %285 = vmatprep.subr.mxu0 0.0
    %286 = vmatpush2.msra.mxu0 0.0
    %287 = vmatprep.subr.mxu0 0.0
    %288 = vmatpush2.msra.mxu0 0.0
    %289 = vmatprep.subr.mxu0 0.0
    %290 = vmatpush2.msra.mxu0 0.0
    %291 = vmatprep.subr.mxu0 0.0
    %292 = vmatpush2.msra.mxu0 0.0
    %293 = vmatprep.subr.mxu0 0.0
    %294 = vmatpush2.msra.mxu0 0.0
    %295 = vmatprep.subr.mxu0 0.0
    %296 = vmatpush2.msra.mxu0 0.0
    %297 = vmatprep.subr.mxu0 0.0
    %298 = vmatpush2.msra.mxu0 0.0
    %299 = vmatprep.subr.mxu0 0.0
    %300 = vmatpush2.msra.mxu0 0.0
    %301 = vmatprep.subr.mxu0 0.0
    %302 = vmatpush2.msra.mxu0 0.0
    %303 = vmatprep.subr.mxu0 0.0
    %304 = vmatpush2.msra.mxu0 0.0
    %305 = vmatprep.subr.mxu0 0.0
    %306 = vmatpush2.msra.mxu0 0.0
    %307 = vmatprep.subr.mxu0 0.0
    %308 = vmatpush2.msra.mxu0 0.0
    %309 = vmatprep.subr.mxu0 0.0
    %310 = vmatpush2.msra.mxu0 0.0
    %311 = vmatprep.mubr.f32.mxu0 0.0
    %312 = vmatmul.mubr.f32.gmra.mxu0 %v174
    %v313 = vpop.f32.mrf.mxu0
    %v314 = vadd.f32 %v163, %v313
    %v315 = vpop.f32.mrf.mxu0
    %v316 = vadd.f32 %v167, %v315
    %317 = vdwg.mxu0
    %v318 = vlaneseq
    %v319 = vand.u32 %v318, 127
    %v320 = vadd.s32 %v319, 128
    %v321 = vadd.s32 %v319, 256
    %v322 = vadd.s32 %v319, 384
    %vm323 = vcmp.ge.s32.totalorder %v319, 256
    %vm324 = vcmp.ge.s32.totalorder %v320, 256
    %vm325 = vcmp.ge.s32.totalorder %v321, 256
    %vm326 = vcmp.ge.s32.totalorder %v322, 256
    %vm327 = vcmp.lt.s32.totalorder %v319, 384
    %vm328 = vcmp.lt.s32.totalorder %v320, 384
    %vm329 = vcmp.lt.s32.totalorder %v321, 384
    %vm330 = vcmp.lt.s32.totalorder %v322, 384
    %vm331 = vmand %vm323, %vm327
    %vm332 = vmand %vm324, %vm328
    %vm333 = vmand %vm325, %vm329
    %vm334 = vmand %vm326, %vm330
    %v335 = vsel %vm331, 1.0, 0.5
    %v336 = vsel %vm332, 1.0, 0.5
    %v337 = vsel %vm333, 1.0, 0.5
    %v338 = vsel %vm334, 1.0, 0.5
    %v339 = vsel %vm331, 0.0, 0.5
    %v340 = vsel %vm332, 0.0, 0.5
    %v341 = vsel %vm333, 0.0, 0.5
    %v342 = vsel %vm334, 0.0, 0.5
    %v343 = vadd.f32 %v243, 0.0
    %v344 = vadd.f32 %v245, 0.0
    %v345 = vadd.f32 %v314, 0.0
    %v346 = vadd.f32 %v316, 0.0
    %v347 = vtanh.pop %v343
    %v348 = vtanh.pop %v344
    %v349 = vtanh.pop %v345
    %v350 = vtanh.pop %v346
    %v351 = vmul.f32 %v347, %v335
    %v352 = vmul.f32 %v348, %v336
    %v353 = vmul.f32 %v349, %v337
    %v354 = vmul.f32 %v350, %v338
    %v355 = vadd.f32 %v351, %v339
    %v356 = vadd.f32 %v352, %v340
    %v357 = vadd.f32 %v353, %v341
    %v358 = vadd.f32 %v354, %v342
    %v359 = vmul.f32 %v356, 0.0
    %v360 = vmul.f32 %v355, %v357
    %v361 = vadd.f32 %v359, %v360
    %v362 = vtanh.pop %v361
    %v363 = vmul.f32 %v358, %v362
    %v365 = vsel %vm172, %v363, 0
    %367 = vmatprep.subr.mxu0 0.0
    %368 = vmatpush1.msra.mxu0 0.0
    %369 = vmatprep.subr.mxu0 0.0
    %370 = vmatpush1.msra.mxu0 0.0
    %371 = vmatprep.subr.mxu0 0.0
    %372 = vmatpush1.msra.mxu0 0.0
    %373 = vmatprep.subr.mxu0 0.0
    %374 = vmatpush1.msra.mxu0 0.0
    %375 = vmatprep.subr.mxu0 0.0
    %376 = vmatpush1.msra.mxu0 0.0
    %377 = vmatprep.subr.mxu0 0.0
    %378 = vmatpush1.msra.mxu0 0.0
    %379 = vmatprep.subr.mxu0 0.0
    %380 = vmatpush1.msra.mxu0 0.0
    %381 = vmatprep.subr.mxu0 0.0
    %382 = vmatpush1.msra.mxu0 0.0
    %383 = vmatprep.subr.mxu0 0.0
    %384 = vmatpush1.msra.mxu0 0.0
    %385 = vmatprep.subr.mxu0 0.0
    %386 = vmatpush1.msra.mxu0 0.0
    %387 = vmatprep.subr.mxu0 0.0
    %388 = vmatpush1.msra.mxu0 0.0
    %389 = vmatprep.subr.mxu0 0.0
    %390 = vmatpush1.msra.mxu0 0.0
    %391 = vmatprep.subr.mxu0 %v93
    %392 = vmatpush1.msra.mxu0 %v92
    %393 = vmatprep.subr.mxu0 %v85
    %394 = vmatpush1.msra.mxu0 %v84
    %395 = vmatprep.subr.mxu0 %v77
    %396 = vmatpush1.msra.mxu0 %v76
    %397 = vmatprep.subr.mxu0 %v69
    %398 = vmatpush1.msra.mxu0 %v68
    %399 = vmatprep.subr.mxu0 0.0
    %400 = vmatpush2.msra.mxu0 0.0
    %401 = vmatprep.subr.mxu0 0.0
    %402 = vmatpush2.msra.mxu0 0.0
    %403 = vmatprep.subr.mxu0 0.0
    %404 = vmatpush2.msra.mxu0 0.0
    %405 = vmatprep.subr.mxu0 0.0
    %406 = vmatpush2.msra.mxu0 0.0
    %407 = vmatprep.subr.mxu0 0.0
    %408 = vmatpush2.msra.mxu0 0.0
    %409 = vmatprep.subr.mxu0 0.0
    %410 = vmatpush2.msra.mxu0 0.0
    %411 = vmatprep.subr.mxu0 0.0
    %412 = vmatpush2.msra.mxu0 0.0
    %413 = vmatprep.subr.mxu0 0.0
    %414 = vmatpush2.msra.mxu0 0.0
    %415 = vmatprep.subr.mxu0 0.0
    %416 = vmatpush2.msra.mxu0 0.0
    %417 = vmatprep.subr.mxu0 0.0
    %418 = vmatpush2.msra.mxu0 0.0
    %419 = vmatprep.subr.mxu0 0.0
    %420 = vmatpush2.msra.mxu0 0.0
    %421 = vmatprep.subr.mxu0 0.0
    %422 = vmatpush2.msra.mxu0 0.0
    %423 = vmatprep.subr.mxu0 0.0
    %424 = vmatpush2.msra.mxu0 0.0
    %425 = vmatprep.subr.mxu0 0.0
    %426 = vmatpush2.msra.mxu0 0.0
    %427 = vmatprep.subr.mxu0 0.0
    %428 = vmatpush2.msra.mxu0 0.0
    %429 = vmatprep.subr.mxu0 0.0
    %430 = vmatpush2.msra.mxu0 0.0
    %431 = vmatprep.mubr.f32.mxu0 0.0
    %432 = vmatmul.mubr.f32.gmra.mxu0 %v365
    %v433 = vpop.f32.mrf.mxu0
    %v434 = vadd.f32 0.0, %v433
    %v435 = vpop.f32.mrf.mxu0
    %v436 = vadd.f32 0.0, %v435
    %437 = vdwg.mxu0
    %438 = vmatprep.subr.mxu0 0.0
    %439 = vmatpush1.msra.mxu0 0.0
    %440 = vmatprep.subr.mxu0 0.0
    %441 = vmatpush1.msra.mxu0 0.0
    %442 = vmatprep.subr.mxu0 0.0
    %443 = vmatpush1.msra.mxu0 0.0
    %444 = vmatprep.subr.mxu0 0.0
    %445 = vmatpush1.msra.mxu0 0.0
    %446 = vmatprep.subr.mxu0 0.0
    %447 = vmatpush1.msra.mxu0 0.0
    %448 = vmatprep.subr.mxu0 0.0
    %449 = vmatpush1.msra.mxu0 0.0
    %450 = vmatprep.subr.mxu0 0.0
    %451 = vmatpush1.msra.mxu0 0.0
    %452 = vmatprep.subr.mxu0 0.0
    %453 = vmatpush1.msra.mxu0 0.0
    %454 = vmatprep.subr.mxu0 0.0
    %455 = vmatpush1.msra.mxu0 0.0
    %456 = vmatprep.subr.mxu0 0.0
    %457 = vmatpush1.msra.mxu0 0.0
    %458 = vmatprep.subr.mxu0 0.0
    %459 = vmatpush1.msra.mxu0 0.0
    %460 = vmatprep.subr.mxu0 0.0
    %461 = vmatpush1.msra.mxu0 0.0
    %462 = vmatprep.subr.mxu0 %v95
    %463 = vmatpush1.msra.mxu0 %v94
    %464 = vmatprep.subr.mxu0 %v87
    %465 = vmatpush1.msra.mxu0 %v86
    %466 = vmatprep.subr.mxu0 %v79
    %467 = vmatpush1.msra.mxu0 %v78
    %468 = vmatprep.subr.mxu0 %v71
    %469 = vmatpush1.msra.mxu0 %v70
    %470 = vmatprep.subr.mxu0 0.0
    %471 = vmatpush2.msra.mxu0 0.0
    %472 = vmatprep.subr.mxu0 0.0
    %473 = vmatpush2.msra.mxu0 0.0
    %474 = vmatprep.subr.mxu0 0.0
    %475 = vmatpush2.msra.mxu0 0.0
    %476 = vmatprep.subr.mxu0 0.0
    %477 = vmatpush2.msra.mxu0 0.0
    %478 = vmatprep.subr.mxu0 0.0
    %479 = vmatpush2.msra.mxu0 0.0
    %480 = vmatprep.subr.mxu0 0.0
    %481 = vmatpush2.msra.mxu0 0.0
    %482 = vmatprep.subr.mxu0 0.0
    %483 = vmatpush2.msra.mxu0 0.0
    %484 = vmatprep.subr.mxu0 0.0
    %485 = vmatpush2.msra.mxu0 0.0
    %486 = vmatprep.subr.mxu0 0.0
    %487 = vmatpush2.msra.mxu0 0.0
    %488 = vmatprep.subr.mxu0 0.0
    %489 = vmatpush2.msra.mxu0 0.0
    %490 = vmatprep.subr.mxu0 0.0
    %491 = vmatpush2.msra.mxu0 0.0
    %492 = vmatprep.subr.mxu0 0.0
    %493 = vmatpush2.msra.mxu0 0.0
    %494 = vmatprep.subr.mxu0 0.0
    %495 = vmatpush2.msra.mxu0 0.0
    %496 = vmatprep.subr.mxu0 0.0
    %497 = vmatpush2.msra.mxu0 0.0
    %498 = vmatprep.subr.mxu0 0.0
    %499 = vmatpush2.msra.mxu0 0.0
    %500 = vmatprep.subr.mxu0 0.0
    %501 = vmatpush2.msra.mxu0 0.0
    %502 = vmatprep.mubr.f32.mxu0 0.0
    %503 = vmatmul.mubr.f32.gmra.mxu0 %v365
    %v504 = vpop.f32.mrf.mxu0
    %v505 = vadd.f32 0.0, %v504
    %v506 = vpop.f32.mrf.mxu0
    %v507 = vadd.f32 0.0, %v506
    %508 = vdwg.mxu0
    %509 = vmatprep.subr.mxu0 0.0
    %510 = vmatpush1.msra.mxu0 0.0
    %511 = vmatprep.subr.mxu0 0.0
    %512 = vmatpush1.msra.mxu0 0.0
    %513 = vmatprep.subr.mxu0 0.0
    %514 = vmatpush1.msra.mxu0 0.0
    %515 = vmatprep.subr.mxu0 0.0
    %516 = vmatpush1.msra.mxu0 0.0
    %517 = vmatprep.subr.mxu0 0.0
    %518 = vmatpush1.msra.mxu0 0.0
    %519 = vmatprep.subr.mxu0 0.0
    %520 = vmatpush1.msra.mxu0 0.0
    %521 = vmatprep.subr.mxu0 0.0
    %522 = vmatpush1.msra.mxu0 0.0
    %523 = vmatprep.subr.mxu0 0.0
    %524 = vmatpush1.msra.mxu0 0.0
    %525 = vmatprep.subr.mxu0 0.0
    %526 = vmatpush1.msra.mxu0 0.0
    %527 = vmatprep.subr.mxu0 0.0
    %528 = vmatpush1.msra.mxu0 0.0
    %529 = vmatprep.subr.mxu0 0.0
    %530 = vmatpush1.msra.mxu0 0.0
    %531 = vmatprep.subr.mxu0 0.0
    %532 = vmatpush1.msra.mxu0 0.0
    %533 = vmatprep.subr.mxu0 %v97
    %534 = vmatpush1.msra.mxu0 %v96
    %535 = vmatprep.subr.mxu0 %v89
    %536 = vmatpush1.msra.mxu0 %v88
    %537 = vmatprep.subr.mxu0 %v81
    %538 = vmatpush1.msra.mxu0 %v80
    %539 = vmatprep.subr.mxu0 %v73
    %540 = vmatpush1.msra.mxu0 %v72
    %541 = vmatprep.subr.mxu0 0.0
    %542 = vmatpush2.msra.mxu0 0.0
    %543 = vmatprep.subr.mxu0 0.0
    %544 = vmatpush2.msra.mxu0 0.0
    %545 = vmatprep.subr.mxu0 0.0
    %546 = vmatpush2.msra.mxu0 0.0
    %547 = vmatprep.subr.mxu0 0.0
    %548 = vmatpush2.msra.mxu0 0.0
    %549 = vmatprep.subr.mxu0 0.0
    %550 = vmatpush2.msra.mxu0 0.0
    %551 = vmatprep.subr.mxu0 0.0
    %552 = vmatpush2.msra.mxu0 0.0
    %553 = vmatprep.subr.mxu0 0.0
    %554 = vmatpush2.msra.mxu0 0.0
    %555 = vmatprep.subr.mxu0 0.0
    %556 = vmatpush2.msra.mxu0 0.0
    %557 = vmatprep.subr.mxu0 0.0
    %558 = vmatpush2.msra.mxu0 0.0
    %559 = vmatprep.subr.mxu0 0.0
    %560 = vmatpush2.msra.mxu0 0.0
    %561 = vmatprep.subr.mxu0 0.0
    %562 = vmatpush2.msra.mxu0 0.0
    %563 = vmatprep.subr.mxu0 0.0
    %564 = vmatpush2.msra.mxu0 0.0
    %565 = vmatprep.subr.mxu0 0.0
    %566 = vmatpush2.msra.mxu0 0.0
    %567 = vmatprep.subr.mxu0 0.0
    %568 = vmatpush2.msra.mxu0 0.0
    %569 = vmatprep.subr.mxu0 0.0
    %570 = vmatpush2.msra.mxu0 0.0
    %571 = vmatprep.subr.mxu0 0.0
    %572 = vmatpush2.msra.mxu0 0.0
    %573 = vmatprep.mubr.f32.mxu0 0.0
    %574 = vmatmul.mubr.f32.gmra.mxu0 %v365
    %v575 = vpop.f32.mrf.mxu0
    %v576 = vadd.f32 0.0, %v575
    %v577 = vpop.f32.mrf.mxu0
    %v578 = vadd.f32 0.0, %v577
    %579 = vdwg.mxu0
    %580 = vmatprep.subr.mxu0 0.0
    %581 = vmatpush1.msra.mxu0 0.0
    %582 = vmatprep.subr.mxu0 0.0
    %583 = vmatpush1.msra.mxu0 0.0
    %584 = vmatprep.subr.mxu0 0.0
    %585 = vmatpush1.msra.mxu0 0.0
    %586 = vmatprep.subr.mxu0 0.0
    %587 = vmatpush1.msra.mxu0 0.0
    %588 = vmatprep.subr.mxu0 0.0
    %589 = vmatpush1.msra.mxu0 0.0
    %590 = vmatprep.subr.mxu0 0.0
    %591 = vmatpush1.msra.mxu0 0.0
    %592 = vmatprep.subr.mxu0 0.0
    %593 = vmatpush1.msra.mxu0 0.0
    %594 = vmatprep.subr.mxu0 0.0
    %595 = vmatpush1.msra.mxu0 0.0
    %596 = vmatprep.subr.mxu0 0.0
    %597 = vmatpush1.msra.mxu0 0.0
    %598 = vmatprep.subr.mxu0 0.0
    %599 = vmatpush1.msra.mxu0 0.0
    %600 = vmatprep.subr.mxu0 0.0
    %601 = vmatpush1.msra.mxu0 0.0
    %602 = vmatprep.subr.mxu0 0.0
    %603 = vmatpush1.msra.mxu0 0.0
    %604 = vmatprep.subr.mxu0 %v99
    %605 = vmatpush1.msra.mxu0 %v98
    %606 = vmatprep.subr.mxu0 %v91
    %607 = vmatpush1.msra.mxu0 %v90
    %608 = vmatprep.subr.mxu0 %v83
    %609 = vmatpush1.msra.mxu0 %v82
    %610 = vmatprep.subr.mxu0 %v75
    %611 = vmatpush1.msra.mxu0 %v74
    %612 = vmatprep.subr.mxu0 0.0
    %613 = vmatpush2.msra.mxu0 0.0
    %614 = vmatprep.subr.mxu0 0.0
    %615 = vmatpush2.msra.mxu0 0.0
    %616 = vmatprep.subr.mxu0 0.0
    %617 = vmatpush2.msra.mxu0 0.0
    %618 = vmatprep.subr.mxu0 0.0
    %619 = vmatpush2.msra.mxu0 0.0
    %620 = vmatprep.subr.mxu0 0.0
    %621 = vmatpush2.msra.mxu0 0.0
    %622 = vmatprep.subr.mxu0 0.0
    %623 = vmatpush2.msra.mxu0 0.0
    %624 = vmatprep.subr.mxu0 0.0
    %625 = vmatpush2.msra.mxu0 0.0
    %626 = vmatprep.subr.mxu0 0.0
    %627 = vmatpush2.msra.mxu0 0.0
    %628 = vmatprep.subr.mxu0 0.0
    %629 = vmatpush2.msra.mxu0 0.0
    %630 = vmatprep.subr.mxu0 0.0
    %631 = vmatpush2.msra.mxu0 0.0
    %632 = vmatprep.subr.mxu0 0.0
    %633 = vmatpush2.msra.mxu0 0.0
    %634 = vmatprep.subr.mxu0 0.0
    %635 = vmatpush2.msra.mxu0 0.0
    %636 = vmatprep.subr.mxu0 0.0
    %637 = vmatpush2.msra.mxu0 0.0
    %638 = vmatprep.subr.mxu0 0.0
    %639 = vmatpush2.msra.mxu0 0.0
    %640 = vmatprep.subr.mxu0 0.0
    %641 = vmatpush2.msra.mxu0 0.0
    %642 = vmatprep.subr.mxu0 0.0
    %643 = vmatpush2.msra.mxu0 0.0
    %644 = vmatprep.mubr.f32.mxu0 0.0
    %645 = vmatmul.mubr.f32.gmra.mxu0 %v365
    %v646 = vpop.f32.mrf.mxu0
    %v647 = vadd.f32 0.0, %v646
    %v648 = vpop.f32.mrf.mxu0
    %v649 = vadd.f32 0.0, %v648
    %650 = vdwg.mxu0
    %v652 = vlaneseq
    %v653 = vshrl.u32 %v652, 7
    %v654 = vsub.s32 0, %v653
    %v655 = vrot.slane %v132, %v654
    %v656 = vlaneseq
    %v657 = vshrl.u32 %v656, 7
    %v658 = vsub.s32 1, %v657
    %v659 = vrot.slane %v132, %v658
    %v660 = vlaneseq
    %v661 = vshrl.u32 %v660, 7
    %v662 = vsub.s32 2, %v661
    %v663 = vrot.slane %v132, %v662
    %v664 = vlaneseq
    %v665 = vshrl.u32 %v664, 7
    %v666 = vsub.s32 3, %v665
    %v667 = vrot.slane %v132, %v666
    %v672 = vadd.f32 %v434, %v655
    %v673 = vadd.f32 %v436, %v659
    %v674 = vadd.f32 %v505, %v663
    %v675 = vadd.f32 %v507, %v667
    %v676 = vadd.f32 %v672, 0.0
    %v677 = vadd.f32 %v673, 0.0
    %v678 = vadd.f32 %v674, 0.0
    %v679 = vadd.f32 %v675, 0.0
    %v680 = vtanh.pop %v676
    %v681 = vtanh.pop %v677
    %v682 = vtanh.pop %v678
    %v683 = vtanh.pop %v679
    %v684 = vmul.f32 %v680, %v335
    %v685 = vmul.f32 %v681, %v336
    %v686 = vmul.f32 %v682, %v337
    %v687 = vmul.f32 %v683, %v338
    %v688 = vadd.f32 %v684, %v339
    %v689 = vadd.f32 %v685, %v340
    %v690 = vadd.f32 %v686, %v341
    %v691 = vadd.f32 %v687, %v342
    %v692 = vmul.f32 %v689, 0.0
    %v693 = vmul.f32 %v688, %v690
    %v694 = vadd.f32 %v692, %v693
    %v695 = vtanh.pop %v694
    %v696 = vmul.f32 %v691, %v695
    %697 = vst [vmem:[#allocation2] sm:$0x3] %v696
    %vm698 = vcmask 523264
    %v700 = vsel %vm698, %v696, 0
    %702 = vmatprep.subr.mxu0 0.0
    %703 = vmatpush1.msra.mxu0 0.0
    %704 = vmatprep.subr.mxu0 0.0
    %705 = vmatpush1.msra.mxu0 0.0
    %706 = vmatprep.subr.mxu0 0.0
    %707 = vmatpush1.msra.mxu0 0.0
    %708 = vmatprep.subr.mxu0 0.0
    %709 = vmatpush1.msra.mxu0 0.0
    %710 = vmatprep.subr.mxu0 0.0
    %711 = vmatpush1.msra.mxu0 0.0
    %712 = vmatprep.subr.mxu0 0.0
    %713 = vmatpush1.msra.mxu0 0.0
    %714 = vmatprep.subr.mxu0 0.0
    %715 = vmatpush1.msra.mxu0 0.0
    %716 = vmatprep.subr.mxu0 0.0
    %717 = vmatpush1.msra.mxu0 0.0
    %718 = vmatprep.subr.mxu0 %v129
    %719 = vmatpush1.msra.mxu0 %v128
    %720 = vmatprep.subr.mxu0 %v125
    %721 = vmatpush1.msra.mxu0 %v124
    %722 = vmatprep.subr.mxu0 %v121
    %723 = vmatpush1.msra.mxu0 %v120
    %724 = vmatprep.subr.mxu0 %v117
    %725 = vmatpush1.msra.mxu0 %v116
    %726 = vmatprep.subr.mxu0 %v113
    %727 = vmatpush1.msra.mxu0 %v112
    %728 = vmatprep.subr.mxu0 %v109
    %729 = vmatpush1.msra.mxu0 %v108
    %730 = vmatprep.subr.mxu0 %v105
    %731 = vmatpush1.msra.mxu0 %v104
    %732 = vmatprep.subr.mxu0 %v101
    %733 = vmatpush1.msra.mxu0 %v100
    %734 = vmatprep.subr.mxu0 0.0
    %735 = vmatpush2.msra.mxu0 0.0
    %736 = vmatprep.subr.mxu0 0.0
    %737 = vmatpush2.msra.mxu0 0.0
    %738 = vmatprep.subr.mxu0 0.0
    %739 = vmatpush2.msra.mxu0 0.0
    %740 = vmatprep.subr.mxu0 0.0
    %741 = vmatpush2.msra.mxu0 0.0
    %742 = vmatprep.subr.mxu0 0.0
    %743 = vmatpush2.msra.mxu0 0.0
    %744 = vmatprep.subr.mxu0 0.0
    %745 = vmatpush2.msra.mxu0 0.0
    %746 = vmatprep.subr.mxu0 0.0
    %747 = vmatpush2.msra.mxu0 0.0
    %748 = vmatprep.subr.mxu0 0.0
    %749 = vmatpush2.msra.mxu0 0.0
    %750 = vmatprep.subr.mxu0 0.0
    %751 = vmatpush2.msra.mxu0 0.0
    %752 = vmatprep.subr.mxu0 0.0
    %753 = vmatpush2.msra.mxu0 0.0
    %754 = vmatprep.subr.mxu0 0.0
    %755 = vmatpush2.msra.mxu0 0.0
    %756 = vmatprep.subr.mxu0 0.0
    %757 = vmatpush2.msra.mxu0 0.0
    %758 = vmatprep.subr.mxu0 0.0
    %759 = vmatpush2.msra.mxu0 0.0
    %760 = vmatprep.subr.mxu0 0.0
    %761 = vmatpush2.msra.mxu0 0.0
    %762 = vmatprep.subr.mxu0 0.0
    %763 = vmatpush2.msra.mxu0 0.0
    %764 = vmatprep.subr.mxu0 0.0
    %765 = vmatpush2.msra.mxu0 0.0
    %766 = vmatprep.mubr.f32.mxu0 0.0
    %767 = vmatmul.mubr.f32.gmra.mxu0 %v700
    %v768 = vpop.f32.mrf.mxu0
    %v769 = vadd.f32 0.0, %v768
    %v770 = vpop.f32.mrf.mxu0
    %v771 = vadd.f32 0.0, %v770
    %772 = vdwg.mxu0
    %773 = vmatprep.subr.mxu0 0.0
    %774 = vmatpush1.msra.mxu0 0.0
    %775 = vmatprep.subr.mxu0 0.0
    %776 = vmatpush1.msra.mxu0 0.0
    %777 = vmatprep.subr.mxu0 0.0
    %778 = vmatpush1.msra.mxu0 0.0
    %779 = vmatprep.subr.mxu0 0.0
    %780 = vmatpush1.msra.mxu0 0.0
    %781 = vmatprep.subr.mxu0 0.0
    %782 = vmatpush1.msra.mxu0 0.0
    %783 = vmatprep.subr.mxu0 0.0
    %784 = vmatpush1.msra.mxu0 0.0
    %785 = vmatprep.subr.mxu0 0.0
    %786 = vmatpush1.msra.mxu0 0.0
    %787 = vmatprep.subr.mxu0 0.0
    %788 = vmatpush1.msra.mxu0 0.0
    %789 = vmatprep.subr.mxu0 %v131
    %790 = vmatpush1.msra.mxu0 %v130
    %791 = vmatprep.subr.mxu0 %v127
    %792 = vmatpush1.msra.mxu0 %v126
    %793 = vmatprep.subr.mxu0 %v123
    %794 = vmatpush1.msra.mxu0 %v122
    %795 = vmatprep.subr.mxu0 %v119
    %796 = vmatpush1.msra.mxu0 %v118
    %797 = vmatprep.subr.mxu0 %v115
    %798 = vmatpush1.msra.mxu0 %v114
    %799 = vmatprep.subr.mxu0 %v111
    %800 = vmatpush1.msra.mxu0 %v110
    %801 = vmatprep.subr.mxu0 %v107
    %802 = vmatpush1.msra.mxu0 %v106
    %803 = vmatprep.subr.mxu0 %v103
    %804 = vmatpush1.msra.mxu0 %v102
    %805 = vmatprep.subr.mxu0 0.0
    %806 = vmatpush2.msra.mxu0 0.0
    %807 = vmatprep.subr.mxu0 0.0
    %808 = vmatpush2.msra.mxu0 0.0
    %809 = vmatprep.subr.mxu0 0.0
    %810 = vmatpush2.msra.mxu0 0.0
    %811 = vmatprep.subr.mxu0 0.0
    %812 = vmatpush2.msra.mxu0 0.0
    %813 = vmatprep.subr.mxu0 0.0
    %814 = vmatpush2.msra.mxu0 0.0
    %815 = vmatprep.subr.mxu0 0.0
    %816 = vmatpush2.msra.mxu0 0.0
    %817 = vmatprep.subr.mxu0 0.0
    %818 = vmatpush2.msra.mxu0 0.0
    %819 = vmatprep.subr.mxu0 0.0
    %820 = vmatpush2.msra.mxu0 0.0
    %821 = vmatprep.subr.mxu0 0.0
    %822 = vmatpush2.msra.mxu0 0.0
    %823 = vmatprep.subr.mxu0 0.0
    %824 = vmatpush2.msra.mxu0 0.0
    %825 = vmatprep.subr.mxu0 0.0
    %826 = vmatpush2.msra.mxu0 0.0
    %827 = vmatprep.subr.mxu0 0.0
    %828 = vmatpush2.msra.mxu0 0.0
    %829 = vmatprep.subr.mxu0 0.0
    %830 = vmatpush2.msra.mxu0 0.0
    %831 = vmatprep.subr.mxu0 0.0
    %832 = vmatpush2.msra.mxu0 0.0
    %833 = vmatprep.subr.mxu0 0.0
    %834 = vmatpush2.msra.mxu0 0.0
    %835 = vmatprep.subr.mxu0 0.0
    %836 = vmatpush2.msra.mxu0 0.0
    %837 = vmatprep.mubr.f32.mxu0 0.0
    %838 = vmatmul.mubr.f32.gmra.mxu0 %v700
    %v839 = vpop.f32.mrf.mxu0
    %v840 = vadd.f32 0.0, %v839
    %v841 = vpop.f32.mrf.mxu0
    %v842 = vadd.f32 0.0, %v841
    %843 = vdwg.mxu0
    %v844 = vadd.f32 %v243, %v576
    %v845 = vadd.f32 %v245, %v578
    %v846 = vadd.f32 %v314, %v647
    %v847 = vadd.f32 %v316, %v649
    %v848 = vtanh.pop %v844
    %v849 = vtanh.pop %v845
    %v850 = vtanh.pop %v846
    %v851 = vtanh.pop %v847
    %v852 = vmul.f32 %v848, %v335
    %v853 = vmul.f32 %v849, %v336
    %v854 = vmul.f32 %v850, %v337
    %v855 = vmul.f32 %v851, %v338
    %v856 = vadd.f32 %v852, %v339
    %v857 = vadd.f32 %v853, %v340
    %v858 = vadd.f32 %v854, %v341
    %v859 = vadd.f32 %v855, %v342
    %v860 = vmul.f32 %v857, %v361
    %v861 = vmul.f32 %v856, %v858
    %v862 = vadd.f32 %v860, %v861
    %v863 = vtanh.pop %v862
    %v864 = vmul.f32 %v859, %v863
    %v866 = vsel %vm172, %v864, 0
    %868 = vmatprep.subr.mxu0 0.0
    %869 = vmatpush1.msra.mxu0 0.0
    %870 = vmatprep.subr.mxu0 0.0
    %871 = vmatpush1.msra.mxu0 0.0
    %872 = vmatprep.subr.mxu0 0.0
    %873 = vmatpush1.msra.mxu0 0.0
    %874 = vmatprep.subr.mxu0 0.0
    %875 = vmatpush1.msra.mxu0 0.0
    %876 = vmatprep.subr.mxu0 0.0
    %877 = vmatpush1.msra.mxu0 0.0
    %878 = vmatprep.subr.mxu0 0.0
    %879 = vmatpush1.msra.mxu0 0.0
    %880 = vmatprep.subr.mxu0 0.0
    %881 = vmatpush1.msra.mxu0 0.0
    %882 = vmatprep.subr.mxu0 0.0
    %883 = vmatpush1.msra.mxu0 0.0
    %884 = vmatprep.subr.mxu0 0.0
    %885 = vmatpush1.msra.mxu0 0.0
    %886 = vmatprep.subr.mxu0 0.0
    %887 = vmatpush1.msra.mxu0 0.0
    %888 = vmatprep.subr.mxu0 0.0
    %889 = vmatpush1.msra.mxu0 0.0
    %890 = vmatprep.subr.mxu0 0.0
    %891 = vmatpush1.msra.mxu0 0.0
    %892 = vmatprep.subr.mxu0 %v93
    %893 = vmatpush1.msra.mxu0 %v92
    %894 = vmatprep.subr.mxu0 %v85
    %895 = vmatpush1.msra.mxu0 %v84
    %896 = vmatprep.subr.mxu0 %v77
    %897 = vmatpush1.msra.mxu0 %v76
    %898 = vmatprep.subr.mxu0 %v69
    %899 = vmatpush1.msra.mxu0 %v68
    %900 = vmatprep.subr.mxu0 0.0
    %901 = vmatpush2.msra.mxu0 0.0
    %902 = vmatprep.subr.mxu0 0.0
    %903 = vmatpush2.msra.mxu0 0.0
    %904 = vmatprep.subr.mxu0 0.0
    %905 = vmatpush2.msra.mxu0 0.0
    %906 = vmatprep.subr.mxu0 0.0
    %907 = vmatpush2.msra.mxu0 0.0
    %908 = vmatprep.subr.mxu0 0.0
    %909 = vmatpush2.msra.mxu0 0.0
    %910 = vmatprep.subr.mxu0 0.0
    %911 = vmatpush2.msra.mxu0 0.0
    %912 = vmatprep.subr.mxu0 0.0
    %913 = vmatpush2.msra.mxu0 0.0
    %914 = vmatprep.subr.mxu0 0.0
    %915 = vmatpush2.msra.mxu0 0.0
    %916 = vmatprep.subr.mxu0 0.0
    %917 = vmatpush2.msra.mxu0 0.0
    %918 = vmatprep.subr.mxu0 0.0
    %919 = vmatpush2.msra.mxu0 0.0
    %920 = vmatprep.subr.mxu0 0.0
    %921 = vmatpush2.msra.mxu0 0.0
    %922 = vmatprep.subr.mxu0 0.0
    %923 = vmatpush2.msra.mxu0 0.0
    %924 = vmatprep.subr.mxu0 0.0
    %925 = vmatpush2.msra.mxu0 0.0
    %926 = vmatprep.subr.mxu0 0.0
    %927 = vmatpush2.msra.mxu0 0.0
    %928 = vmatprep.subr.mxu0 0.0
    %929 = vmatpush2.msra.mxu0 0.0
    %930 = vmatprep.subr.mxu0 0.0
    %931 = vmatpush2.msra.mxu0 0.0
    %932 = vmatprep.mubr.f32.mxu0 0.0
    %933 = vmatmul.mubr.f32.gmra.mxu0 %v866
    %v934 = vpop.f32.mrf.mxu0
    %v935 = vadd.f32 0.0, %v934
    %v936 = vpop.f32.mrf.mxu0
    %v937 = vadd.f32 0.0, %v936
    %938 = vdwg.mxu0
    %939 = vmatprep.subr.mxu0 0.0
    %940 = vmatpush1.msra.mxu0 0.0
    %941 = vmatprep.subr.mxu0 0.0
    %942 = vmatpush1.msra.mxu0 0.0
    %943 = vmatprep.subr.mxu0 0.0
    %944 = vmatpush1.msra.mxu0 0.0
    %945 = vmatprep.subr.mxu0 0.0
    %946 = vmatpush1.msra.mxu0 0.0
    %947 = vmatprep.subr.mxu0 0.0
    %948 = vmatpush1.msra.mxu0 0.0
    %949 = vmatprep.subr.mxu0 0.0
    %950 = vmatpush1.msra.mxu0 0.0
    %951 = vmatprep.subr.mxu0 0.0
    %952 = vmatpush1.msra.mxu0 0.0
    %953 = vmatprep.subr.mxu0 0.0
    %954 = vmatpush1.msra.mxu0 0.0
    %955 = vmatprep.subr.mxu0 0.0
    %956 = vmatpush1.msra.mxu0 0.0
    %957 = vmatprep.subr.mxu0 0.0
    %958 = vmatpush1.msra.mxu0 0.0
    %959 = vmatprep.subr.mxu0 0.0
    %960 = vmatpush1.msra.mxu0 0.0
    %961 = vmatprep.subr.mxu0 0.0
    %962 = vmatpush1.msra.mxu0 0.0
    %963 = vmatprep.subr.mxu0 %v95
    %964 = vmatpush1.msra.mxu0 %v94
    %965 = vmatprep.subr.mxu0 %v87
    %966 = vmatpush1.msra.mxu0 %v86
    %967 = vmatprep.subr.mxu0 %v79
    %968 = vmatpush1.msra.mxu0 %v78
    %969 = vmatprep.subr.mxu0 %v71
    %970 = vmatpush1.msra.mxu0 %v70
    %971 = vmatprep.subr.mxu0 0.0
    %972 = vmatpush2.msra.mxu0 0.0
    %973 = vmatprep.subr.mxu0 0.0
    %974 = vmatpush2.msra.mxu0 0.0
    %975 = vmatprep.subr.mxu0 0.0
    %976 = vmatpush2.msra.mxu0 0.0
    %977 = vmatprep.subr.mxu0 0.0
    %978 = vmatpush2.msra.mxu0 0.0
    %979 = vmatprep.subr.mxu0 0.0
    %980 = vmatpush2.msra.mxu0 0.0
    %981 = vmatprep.subr.mxu0 0.0
    %982 = vmatpush2.msra.mxu0 0.0
    %983 = vmatprep.subr.mxu0 0.0
    %984 = vmatpush2.msra.mxu0 0.0
    %985 = vmatprep.subr.mxu0 0.0
    %986 = vmatpush2.msra.mxu0 0.0
    %987 = vmatprep.subr.mxu0 0.0
    %988 = vmatpush2.msra.mxu0 0.0
    %989 = vmatprep.subr.mxu0 0.0
    %990 = vmatpush2.msra.mxu0 0.0
    %991 = vmatprep.subr.mxu0 0.0
    %992 = vmatpush2.msra.mxu0 0.0
    %993 = vmatprep.subr.mxu0 0.0
    %994 = vmatpush2.msra.mxu0 0.0
    %995 = vmatprep.subr.mxu0 0.0
    %996 = vmatpush2.msra.mxu0 0.0
    %997 = vmatprep.subr.mxu0 0.0
    %998 = vmatpush2.msra.mxu0 0.0
    %999 = vmatprep.subr.mxu0 0.0
    %1000 = vmatpush2.msra.mxu0 0.0
    %1001 = vmatprep.subr.mxu0 0.0
    %1002 = vmatpush2.msra.mxu0 0.0
    %1003 = vmatprep.mubr.f32.mxu0 0.0
    %1004 = vmatmul.mubr.f32.gmra.mxu0 %v866
    %v1005 = vpop.f32.mrf.mxu0
    %v1006 = vadd.f32 0.0, %v1005
    %v1007 = vpop.f32.mrf.mxu0
    %v1008 = vadd.f32 0.0, %v1007
    %1009 = vdwg.mxu0
    %1010 = vmatprep.subr.mxu0 0.0
    %1011 = vmatpush1.msra.mxu0 0.0
    %1012 = vmatprep.subr.mxu0 0.0
    %1013 = vmatpush1.msra.mxu0 0.0
    %1014 = vmatprep.subr.mxu0 0.0
    %1015 = vmatpush1.msra.mxu0 0.0
    %1016 = vmatprep.subr.mxu0 0.0
    %1017 = vmatpush1.msra.mxu0 0.0
    %1018 = vmatprep.subr.mxu0 0.0
    %1019 = vmatpush1.msra.mxu0 0.0
    %1020 = vmatprep.subr.mxu0 0.0
    %1021 = vmatpush1.msra.mxu0 0.0
    %1022 = vmatprep.subr.mxu0 0.0
    %1023 = vmatpush1.msra.mxu0 0.0
    %1024 = vmatprep.subr.mxu0 0.0
    %1025 = vmatpush1.msra.mxu0 0.0
    %1026 = vmatprep.subr.mxu0 0.0
    %1027 = vmatpush1.msra.mxu0 0.0
    %1028 = vmatprep.subr.mxu0 0.0
    %1029 = vmatpush1.msra.mxu0 0.0
    %1030 = vmatprep.subr.mxu0 0.0
    %1031 = vmatpush1.msra.mxu0 0.0
    %1032 = vmatprep.subr.mxu0 0.0
    %1033 = vmatpush1.msra.mxu0 0.0
    %1034 = vmatprep.subr.mxu0 %v97
    %1035 = vmatpush1.msra.mxu0 %v96
    %1036 = vmatprep.subr.mxu0 %v89
    %1037 = vmatpush1.msra.mxu0 %v88
    %1038 = vmatprep.subr.mxu0 %v81
    %1039 = vmatpush1.msra.mxu0 %v80
    %1040 = vmatprep.subr.mxu0 %v73
    %1041 = vmatpush1.msra.mxu0 %v72
    %1042 = vmatprep.subr.mxu0 0.0
    %1043 = vmatpush2.msra.mxu0 0.0
    %1044 = vmatprep.subr.mxu0 0.0
    %1045 = vmatpush2.msra.mxu0 0.0
    %1046 = vmatprep.subr.mxu0 0.0
    %1047 = vmatpush2.msra.mxu0 0.0
    %1048 = vmatprep.subr.mxu0 0.0
    %1049 = vmatpush2.msra.mxu0 0.0
    %1050 = vmatprep.subr.mxu0 0.0
    %1051 = vmatpush2.msra.mxu0 0.0
    %1052 = vmatprep.subr.mxu0 0.0
    %1053 = vmatpush2.msra.mxu0 0.0
    %1054 = vmatprep.subr.mxu0 0.0
    %1055 = vmatpush2.msra.mxu0 0.0
    %1056 = vmatprep.subr.mxu0 0.0
    %1057 = vmatpush2.msra.mxu0 0.0
    %1058 = vmatprep.subr.mxu0 0.0
    %1059 = vmatpush2.msra.mxu0 0.0
    %1060 = vmatprep.subr.mxu0 0.0
    %1061 = vmatpush2.msra.mxu0 0.0
    %1062 = vmatprep.subr.mxu0 0.0
    %1063 = vmatpush2.msra.mxu0 0.0
    %1064 = vmatprep.subr.mxu0 0.0
    %1065 = vmatpush2.msra.mxu0 0.0
    %1066 = vmatprep.subr.mxu0 0.0
    %1067 = vmatpush2.msra.mxu0 0.0
    %1068 = vmatprep.subr.mxu0 0.0
    %1069 = vmatpush2.msra.mxu0 0.0
    %1070 = vmatprep.subr.mxu0 0.0
    %1071 = vmatpush2.msra.mxu0 0.0
    %1072 = vmatprep.subr.mxu0 0.0
    %1073 = vmatpush2.msra.mxu0 0.0
    %1074 = vmatprep.mubr.f32.mxu0 0.0
    %1075 = vmatmul.mubr.f32.gmra.mxu0 %v866
    %v1076 = vpop.f32.mrf.mxu0
    %v1077 = vadd.f32 0.0, %v1076
    %v1078 = vpop.f32.mrf.mxu0
    %v1079 = vadd.f32 0.0, %v1078
    %1080 = vdwg.mxu0
    %1081 = vmatprep.subr.mxu0 0.0
    %1082 = vmatpush1.msra.mxu0 0.0
    %1083 = vmatprep.subr.mxu0 0.0
    %1084 = vmatpush1.msra.mxu0 0.0
    %1085 = vmatprep.subr.mxu0 0.0
    %1086 = vmatpush1.msra.mxu0 0.0
    %1087 = vmatprep.subr.mxu0 0.0
    %1088 = vmatpush1.msra.mxu0 0.0
    %1089 = vmatprep.subr.mxu0 0.0
    %1090 = vmatpush1.msra.mxu0 0.0
    %1091 = vmatprep.subr.mxu0 0.0
    %1092 = vmatpush1.msra.mxu0 0.0
    %1093 = vmatprep.subr.mxu0 0.0
    %1094 = vmatpush1.msra.mxu0 0.0
    %1095 = vmatprep.subr.mxu0 0.0
    %1096 = vmatpush1.msra.mxu0 0.0
    %1097 = vmatprep.subr.mxu0 0.0
    %1098 = vmatpush1.msra.mxu0 0.0
    %1099 = vmatprep.subr.mxu0 0.0
    %1100 = vmatpush1.msra.mxu0 0.0
    %1101 = vmatprep.subr.mxu0 0.0
    %1102 = vmatpush1.msra.mxu0 0.0
    %1103 = vmatprep.subr.mxu0 0.0
    %1104 = vmatpush1.msra.mxu0 0.0
    %1105 = vmatprep.subr.mxu0 %v99
    %1106 = vmatpush1.msra.mxu0 %v98
    %1107 = vmatprep.subr.mxu0 %v91
    %1108 = vmatpush1.msra.mxu0 %v90
    %1109 = vmatprep.subr.mxu0 %v83
    %1110 = vmatpush1.msra.mxu0 %v82
    %1111 = vmatprep.subr.mxu0 %v75
    %1112 = vmatpush1.msra.mxu0 %v74
    %1113 = vmatprep.subr.mxu0 0.0
    %1114 = vmatpush2.msra.mxu0 0.0
    %1115 = vmatprep.subr.mxu0 0.0
    %1116 = vmatpush2.msra.mxu0 0.0
    %1117 = vmatprep.subr.mxu0 0.0
    %1118 = vmatpush2.msra.mxu0 0.0
    %1119 = vmatprep.subr.mxu0 0.0
    %1120 = vmatpush2.msra.mxu0 0.0
    %1121 = vmatprep.subr.mxu0 0.0
    %1122 = vmatpush2.msra.mxu0 0.0
    %1123 = vmatprep.subr.mxu0 0.0
    %1124 = vmatpush2.msra.mxu0 0.0
    %1125 = vmatprep.subr.mxu0 0.0
    %1126 = vmatpush2.msra.mxu0 0.0
    %1127 = vmatprep.subr.mxu0 0.0
    %1128 = vmatpush2.msra.mxu0 0.0
    %1129 = vmatprep.subr.mxu0 0.0
    %1130 = vmatpush2.msra.mxu0 0.0
    %1131 = vmatprep.subr.mxu0 0.0
    %1132 = vmatpush2.msra.mxu0 0.0
    %1133 = vmatprep.subr.mxu0 0.0
    %1134 = vmatpush2.msra.mxu0 0.0
    %1135 = vmatprep.subr.mxu0 0.0
    %1136 = vmatpush2.msra.mxu0 0.0
    %1137 = vmatprep.subr.mxu0 0.0
    %1138 = vmatpush2.msra.mxu0 0.0
    %1139 = vmatprep.subr.mxu0 0.0
    %1140 = vmatpush2.msra.mxu0 0.0
    %1141 = vmatprep.subr.mxu0 0.0
    %1142 = vmatpush2.msra.mxu0 0.0
    %1143 = vmatprep.subr.mxu0 0.0
    %1144 = vmatpush2.msra.mxu0 0.0
    %1145 = vmatprep.mubr.f32.mxu0 0.0
    %1146 = vmatmul.mubr.f32.gmra.mxu0 %v866
    %v1147 = vpop.f32.mrf.mxu0
    %v1148 = vadd.f32 0.0, %v1147
    %v1149 = vpop.f32.mrf.mxu0
    %v1150 = vadd.f32 0.0, %v1149
    %1151 = vdwg.mxu0
    %v1152 = vadd.f32 %v935, %v655
    %v1153 = vadd.f32 %v937, %v659
    %v1154 = vadd.f32 %v1006, %v663
    %v1155 = vadd.f32 %v1008, %v667
    %v1156 = vadd.f32 %v1152, %v769
    %v1157 = vadd.f32 %v1153, %v771
    %v1158 = vadd.f32 %v1154, %v840
    %v1159 = vadd.f32 %v1155, %v842
    %v1160 = vtanh.pop %v1156
    %v1161 = vtanh.pop %v1157
    %v1162 = vtanh.pop %v1158
    %v1163 = vtanh.pop %v1159
    %v1164 = vmul.f32 %v1160, %v335
    %v1165 = vmul.f32 %v1161, %v336
    %v1166 = vmul.f32 %v1162, %v337
    %v1167 = vmul.f32 %v1163, %v338
    %v1168 = vadd.f32 %v1164, %v339
    %v1169 = vadd.f32 %v1165, %v340
    %v1170 = vadd.f32 %v1166, %v341
    %v1171 = vadd.f32 %v1167, %v342
    %v1172 = vmul.f32 %v1169, %v694
    %v1173 = vmul.f32 %v1168, %v1170
    %v1174 = vadd.f32 %v1172, %v1173
    %v1175 = vtanh.pop %v1174
    %v1176 = vmul.f32 %v1171, %v1175
    %1177 = vst [vmem:[#allocation2 + $0x2] sm:$0x3] %v1176
    %v1179 = vsel %vm698, %v1176, 0
    %1181 = vmatprep.subr.mxu0 0.0
    %1182 = vmatpush1.msra.mxu0 0.0
    %1183 = vmatprep.subr.mxu0 0.0
    %1184 = vmatpush1.msra.mxu0 0.0
    %1185 = vmatprep.subr.mxu0 0.0
    %1186 = vmatpush1.msra.mxu0 0.0
    %1187 = vmatprep.subr.mxu0 0.0
    %1188 = vmatpush1.msra.mxu0 0.0
    %1189 = vmatprep.subr.mxu0 0.0
    %1190 = vmatpush1.msra.mxu0 0.0
    %1191 = vmatprep.subr.mxu0 0.0
    %1192 = vmatpush1.msra.mxu0 0.0
    %1193 = vmatprep.subr.mxu0 0.0
    %1194 = vmatpush1.msra.mxu0 0.0
    %1195 = vmatprep.subr.mxu0 0.0
    %1196 = vmatpush1.msra.mxu0 0.0
    %1197 = vmatprep.subr.mxu0 %v129
    %1198 = vmatpush1.msra.mxu0 %v128
    %1199 = vmatprep.subr.mxu0 %v125
    %1200 = vmatpush1.msra.mxu0 %v124
    %1201 = vmatprep.subr.mxu0 %v121
    %1202 = vmatpush1.msra.mxu0 %v120
    %1203 = vmatprep.subr.mxu0 %v117
    %1204 = vmatpush1.msra.mxu0 %v116
    %1205 = vmatprep.subr.mxu0 %v113
    %1206 = vmatpush1.msra.mxu0 %v112
    %1207 = vmatprep.subr.mxu0 %v109
    %1208 = vmatpush1.msra.mxu0 %v108
    %1209 = vmatprep.subr.mxu0 %v105
    %1210 = vmatpush1.msra.mxu0 %v104
    %1211 = vmatprep.subr.mxu0 %v101
    %1212 = vmatpush1.msra.mxu0 %v100
    %1213 = vmatprep.subr.mxu0 0.0
    %1214 = vmatpush2.msra.mxu0 0.0
    %1215 = vmatprep.subr.mxu0 0.0
    %1216 = vmatpush2.msra.mxu0 0.0
    %1217 = vmatprep.subr.mxu0 0.0
    %1218 = vmatpush2.msra.mxu0 0.0
    %1219 = vmatprep.subr.mxu0 0.0
    %1220 = vmatpush2.msra.mxu0 0.0
    %1221 = vmatprep.subr.mxu0 0.0
    %1222 = vmatpush2.msra.mxu0 0.0
    %1223 = vmatprep.subr.mxu0 0.0
    %1224 = vmatpush2.msra.mxu0 0.0
    %1225 = vmatprep.subr.mxu0 0.0
    %1226 = vmatpush2.msra.mxu0 0.0
    %1227 = vmatprep.subr.mxu0 0.0
    %1228 = vmatpush2.msra.mxu0 0.0
    %1229 = vmatprep.subr.mxu0 0.0
    %1230 = vmatpush2.msra.mxu0 0.0
    %1231 = vmatprep.subr.mxu0 0.0
    %1232 = vmatpush2.msra.mxu0 0.0
    %1233 = vmatprep.subr.mxu0 0.0
    %1234 = vmatpush2.msra.mxu0 0.0
    %1235 = vmatprep.subr.mxu0 0.0
    %1236 = vmatpush2.msra.mxu0 0.0
    %1237 = vmatprep.subr.mxu0 0.0
    %1238 = vmatpush2.msra.mxu0 0.0
    %1239 = vmatprep.subr.mxu0 0.0
    %1240 = vmatpush2.msra.mxu0 0.0
    %1241 = vmatprep.subr.mxu0 0.0
    %1242 = vmatpush2.msra.mxu0 0.0
    %1243 = vmatprep.subr.mxu0 0.0
    %1244 = vmatpush2.msra.mxu0 0.0
    %1245 = vmatprep.mubr.f32.mxu0 0.0
    %1246 = vmatmul.mubr.f32.gmra.mxu0 %v1179
    %v1247 = vpop.f32.mrf.mxu0
    %v1248 = vadd.f32 0.0, %v1247
    %v1249 = vpop.f32.mrf.mxu0
    %v1250 = vadd.f32 0.0, %v1249
    %1251 = vdwg.mxu0
    %1252 = vmatprep.subr.mxu0 0.0
    %1253 = vmatpush1.msra.mxu0 0.0
    %1254 = vmatprep.subr.mxu0 0.0
    %1255 = vmatpush1.msra.mxu0 0.0
    %1256 = vmatprep.subr.mxu0 0.0
    %1257 = vmatpush1.msra.mxu0 0.0
    %1258 = vmatprep.subr.mxu0 0.0
    %1259 = vmatpush1.msra.mxu0 0.0
    %1260 = vmatprep.subr.mxu0 0.0
    %1261 = vmatpush1.msra.mxu0 0.0
    %1262 = vmatprep.subr.mxu0 0.0
    %1263 = vmatpush1.msra.mxu0 0.0
    %1264 = vmatprep.subr.mxu0 0.0
    %1265 = vmatpush1.msra.mxu0 0.0
    %1266 = vmatprep.subr.mxu0 0.0
    %1267 = vmatpush1.msra.mxu0 0.0
    %1268 = vmatprep.subr.mxu0 %v131
    %1269 = vmatpush1.msra.mxu0 %v130
    %1270 = vmatprep.subr.mxu0 %v127
    %1271 = vmatpush1.msra.mxu0 %v126
    %1272 = vmatprep.subr.mxu0 %v123
    %1273 = vmatpush1.msra.mxu0 %v122
    %1274 = vmatprep.subr.mxu0 %v119
    %1275 = vmatpush1.msra.mxu0 %v118
    %1276 = vmatprep.subr.mxu0 %v115
    %1277 = vmatpush1.msra.mxu0 %v114
    %1278 = vmatprep.subr.mxu0 %v111
    %1279 = vmatpush1.msra.mxu0 %v110
    %1280 = vmatprep.subr.mxu0 %v107
    %1281 = vmatpush1.msra.mxu0 %v106
    %1282 = vmatprep.subr.mxu0 %v103
    %1283 = vmatpush1.msra.mxu0 %v102
    %1284 = vmatprep.subr.mxu0 0.0
    %1285 = vmatpush2.msra.mxu0 0.0
    %1286 = vmatprep.subr.mxu0 0.0
    %1287 = vmatpush2.msra.mxu0 0.0
    %1288 = vmatprep.subr.mxu0 0.0
    %1289 = vmatpush2.msra.mxu0 0.0
    %1290 = vmatprep.subr.mxu0 0.0
    %1291 = vmatpush2.msra.mxu0 0.0
    %1292 = vmatprep.subr.mxu0 0.0
    %1293 = vmatpush2.msra.mxu0 0.0
    %1294 = vmatprep.subr.mxu0 0.0
    %1295 = vmatpush2.msra.mxu0 0.0
    %1296 = vmatprep.subr.mxu0 0.0
    %1297 = vmatpush2.msra.mxu0 0.0
    %1298 = vmatprep.subr.mxu0 0.0
    %1299 = vmatpush2.msra.mxu0 0.0
    %1300 = vmatprep.subr.mxu0 0.0
    %1301 = vmatpush2.msra.mxu0 0.0
    %1302 = vmatprep.subr.mxu0 0.0
    %1303 = vmatpush2.msra.mxu0 0.0
    %1304 = vmatprep.subr.mxu0 0.0
    %1305 = vmatpush2.msra.mxu0 0.0
    %1306 = vmatprep.subr.mxu0 0.0
    %1307 = vmatpush2.msra.mxu0 0.0
    %1308 = vmatprep.subr.mxu0 0.0
    %1309 = vmatpush2.msra.mxu0 0.0
    %1310 = vmatprep.subr.mxu0 0.0
    %1311 = vmatpush2.msra.mxu0 0.0
    %1312 = vmatprep.subr.mxu0 0.0
    %1313 = vmatpush2.msra.mxu0 0.0
    %1314 = vmatprep.subr.mxu0 0.0
    %1315 = vmatpush2.msra.mxu0 0.0
    %1316 = vmatprep.mubr.f32.mxu0 0.0
    %1317 = vmatmul.mubr.f32.gmra.mxu0 %v1179
    %v1318 = vpop.f32.mrf.mxu0
    %v1319 = vadd.f32 0.0, %v1318
    %v1320 = vpop.f32.mrf.mxu0
    %v1321 = vadd.f32 0.0, %v1320
    %1322 = vdwg.mxu0
    %v1323 = vadd.f32 %v243, %v1077
    %v1324 = vadd.f32 %v245, %v1079
    %v1325 = vadd.f32 %v314, %v1148
    %v1326 = vadd.f32 %v316, %v1150
    %v1327 = vtanh.pop %v1323
    %v1328 = vtanh.pop %v1324
    %v1329 = vtanh.pop %v1325
    %v1330 = vtanh.pop %v1326
    %v1331 = vmul.f32 %v1327, %v335
    %v1332 = vmul.f32 %v1328, %v336
    %v1333 = vmul.f32 %v1329, %v337
    %v1334 = vmul.f32 %v1330, %v338
    %v1335 = vadd.f32 %v1331, %v339
    %v1336 = vadd.f32 %v1332, %v340
    %v1337 = vadd.f32 %v1333, %v341
    %v1338 = vadd.f32 %v1334, %v342
    %v1339 = vmul.f32 %v1336, %v862
    %v1340 = vmul.f32 %v1335, %v1337
    %v1341 = vadd.f32 %v1339, %v1340
    %v1342 = vtanh.pop %v1341
    %v1343 = vmul.f32 %v1338, %v1342
    %v1345 = vsel %vm172, %v1343, 0
    %1347 = vmatprep.subr.mxu0 0.0
    %1348 = vmatpush1.msra.mxu0 0.0
    %1349 = vmatprep.subr.mxu0 0.0
    %1350 = vmatpush1.msra.mxu0 0.0
    %1351 = vmatprep.subr.mxu0 0.0
    %1352 = vmatpush1.msra.mxu0 0.0
    %1353 = vmatprep.subr.mxu0 0.0
    %1354 = vmatpush1.msra.mxu0 0.0
    %1355 = vmatprep.subr.mxu0 0.0
    %1356 = vmatpush1.msra.mxu0 0.0
    %1357 = vmatprep.subr.mxu0 0.0
    %1358 = vmatpush1.msra.mxu0 0.0
    %1359 = vmatprep.subr.mxu0 0.0
    %1360 = vmatpush1.msra.mxu0 0.0
    %1361 = vmatprep.subr.mxu0 0.0
    %1362 = vmatpush1.msra.mxu0 0.0
    %1363 = vmatprep.subr.mxu0 0.0
    %1364 = vmatpush1.msra.mxu0 0.0
    %1365 = vmatprep.subr.mxu0 0.0
    %1366 = vmatpush1.msra.mxu0 0.0
    %1367 = vmatprep.subr.mxu0 0.0
    %1368 = vmatpush1.msra.mxu0 0.0
    %1369 = vmatprep.subr.mxu0 0.0
    %1370 = vmatpush1.msra.mxu0 0.0
    %1371 = vmatprep.subr.mxu0 %v93
    %1372 = vmatpush1.msra.mxu0 %v92
    %1373 = vmatprep.subr.mxu0 %v85
    %1374 = vmatpush1.msra.mxu0 %v84
    %1375 = vmatprep.subr.mxu0 %v77
    %1376 = vmatpush1.msra.mxu0 %v76
    %1377 = vmatprep.subr.mxu0 %v69
    %1378 = vmatpush1.msra.mxu0 %v68
    %1379 = vmatprep.subr.mxu0 0.0
    %1380 = vmatpush2.msra.mxu0 0.0
    %1381 = vmatprep.subr.mxu0 0.0
    %1382 = vmatpush2.msra.mxu0 0.0
    %1383 = vmatprep.subr.mxu0 0.0
    %1384 = vmatpush2.msra.mxu0 0.0
    %1385 = vmatprep.subr.mxu0 0.0
    %1386 = vmatpush2.msra.mxu0 0.0
    %1387 = vmatprep.subr.mxu0 0.0
    %1388 = vmatpush2.msra.mxu0 0.0
    %1389 = vmatprep.subr.mxu0 0.0
    %1390 = vmatpush2.msra.mxu0 0.0
    %1391 = vmatprep.subr.mxu0 0.0
    %1392 = vmatpush2.msra.mxu0 0.0
    %1393 = vmatprep.subr.mxu0 0.0
    %1394 = vmatpush2.msra.mxu0 0.0
    %1395 = vmatprep.subr.mxu0 0.0
    %1396 = vmatpush2.msra.mxu0 0.0
    %1397 = vmatprep.subr.mxu0 0.0
    %1398 = vmatpush2.msra.mxu0 0.0
    %1399 = vmatprep.subr.mxu0 0.0
    %1400 = vmatpush2.msra.mxu0 0.0
    %1401 = vmatprep.subr.mxu0 0.0
    %1402 = vmatpush2.msra.mxu0 0.0
    %1403 = vmatprep.subr.mxu0 0.0
    %1404 = vmatpush2.msra.mxu0 0.0
    %1405 = vmatprep.subr.mxu0 0.0
    %1406 = vmatpush2.msra.mxu0 0.0
    %1407 = vmatprep.subr.mxu0 0.0
    %1408 = vmatpush2.msra.mxu0 0.0
    %1409 = vmatprep.subr.mxu0 0.0
    %1410 = vmatpush2.msra.mxu0 0.0
    %1411 = vmatprep.mubr.f32.mxu0 0.0
    %1412 = vmatmul.mubr.f32.gmra.mxu0 %v1345
    %v1413 = vpop.f32.mrf.mxu0
    %v1414 = vadd.f32 0.0, %v1413
    %v1415 = vpop.f32.mrf.mxu0
    %v1416 = vadd.f32 0.0, %v1415
    %1417 = vdwg.mxu0
    %1418 = vmatprep.subr.mxu0 0.0
    %1419 = vmatpush1.msra.mxu0 0.0
    %1420 = vmatprep.subr.mxu0 0.0
    %1421 = vmatpush1.msra.mxu0 0.0
    %1422 = vmatprep.subr.mxu0 0.0
    %1423 = vmatpush1.msra.mxu0 0.0
    %1424 = vmatprep.subr.mxu0 0.0
    %1425 = vmatpush1.msra.mxu0 0.0
    %1426 = vmatprep.subr.mxu0 0.0
    %1427 = vmatpush1.msra.mxu0 0.0
    %1428 = vmatprep.subr.mxu0 0.0
    %1429 = vmatpush1.msra.mxu0 0.0
    %1430 = vmatprep.subr.mxu0 0.0
    %1431 = vmatpush1.msra.mxu0 0.0
    %1432 = vmatprep.subr.mxu0 0.0
    %1433 = vmatpush1.msra.mxu0 0.0
    %1434 = vmatprep.subr.mxu0 0.0
    %1435 = vmatpush1.msra.mxu0 0.0
    %1436 = vmatprep.subr.mxu0 0.0
    %1437 = vmatpush1.msra.mxu0 0.0
    %1438 = vmatprep.subr.mxu0 0.0
    %1439 = vmatpush1.msra.mxu0 0.0
    %1440 = vmatprep.subr.mxu0 0.0
    %1441 = vmatpush1.msra.mxu0 0.0
    %1442 = vmatprep.subr.mxu0 %v95
    %1443 = vmatpush1.msra.mxu0 %v94
    %1444 = vmatprep.subr.mxu0 %v87
    %1445 = vmatpush1.msra.mxu0 %v86
    %1446 = vmatprep.subr.mxu0 %v79
    %1447 = vmatpush1.msra.mxu0 %v78
    %1448 = vmatprep.subr.mxu0 %v71
    %1449 = vmatpush1.msra.mxu0 %v70
    %1450 = vmatprep.subr.mxu0 0.0
    %1451 = vmatpush2.msra.mxu0 0.0
    %1452 = vmatprep.subr.mxu0 0.0
    %1453 = vmatpush2.msra.mxu0 0.0
    %1454 = vmatprep.subr.mxu0 0.0
    %1455 = vmatpush2.msra.mxu0 0.0
    %1456 = vmatprep.subr.mxu0 0.0
    %1457 = vmatpush2.msra.mxu0 0.0
    %1458 = vmatprep.subr.mxu0 0.0
    %1459 = vmatpush2.msra.mxu0 0.0
    %1460 = vmatprep.subr.mxu0 0.0
    %1461 = vmatpush2.msra.mxu0 0.0
    %1462 = vmatprep.subr.mxu0 0.0
    %1463 = vmatpush2.msra.mxu0 0.0
    %1464 = vmatprep.subr.mxu0 0.0
    %1465 = vmatpush2.msra.mxu0 0.0
    %1466 = vmatprep.subr.mxu0 0.0
    %1467 = vmatpush2.msra.mxu0 0.0
    %1468 = vmatprep.subr.mxu0 0.0
    %1469 = vmatpush2.msra.mxu0 0.0
    %1470 = vmatprep.subr.mxu0 0.0
    %1471 = vmatpush2.msra.mxu0 0.0
    %1472 = vmatprep.subr.mxu0 0.0
    %1473 = vmatpush2.msra.mxu0 0.0
    %1474 = vmatprep.subr.mxu0 0.0
    %1475 = vmatpush2.msra.mxu0 0.0
    %1476 = vmatprep.subr.mxu0 0.0
    %1477 = vmatpush2.msra.mxu0 0.0
    %1478 = vmatprep.subr.mxu0 0.0
    %1479 = vmatpush2.msra.mxu0 0.0
    %1480 = vmatprep.subr.mxu0 0.0
    %1481 = vmatpush2.msra.mxu0 0.0
    %1482 = vmatprep.mubr.f32.mxu0 0.0
    %1483 = vmatmul.mubr.f32.gmra.mxu0 %v1345
    %v1484 = vpop.f32.mrf.mxu0
    %v1485 = vadd.f32 0.0, %v1484
    %v1486 = vpop.f32.mrf.mxu0
    %v1487 = vadd.f32 0.0, %v1486
    %1488 = vdwg.mxu0
    %1489 = vmatprep.subr.mxu0 0.0
    %1490 = vmatpush1.msra.mxu0 0.0
    %1491 = vmatprep.subr.mxu0 0.0
    %1492 = vmatpush1.msra.mxu0 0.0
    %1493 = vmatprep.subr.mxu0 0.0
    %1494 = vmatpush1.msra.mxu0 0.0
    %1495 = vmatprep.subr.mxu0 0.0
    %1496 = vmatpush1.msra.mxu0 0.0
    %1497 = vmatprep.subr.mxu0 0.0
    %1498 = vmatpush1.msra.mxu0 0.0
    %1499 = vmatprep.subr.mxu0 0.0
    %1500 = vmatpush1.msra.mxu0 0.0
    %1501 = vmatprep.subr.mxu0 0.0
    %1502 = vmatpush1.msra.mxu0 0.0
    %1503 = vmatprep.subr.mxu0 0.0
    %1504 = vmatpush1.msra.mxu0 0.0
    %1505 = vmatprep.subr.mxu0 0.0
    %1506 = vmatpush1.msra.mxu0 0.0
    %1507 = vmatprep.subr.mxu0 0.0
    %1508 = vmatpush1.msra.mxu0 0.0
    %1509 = vmatprep.subr.mxu0 0.0
    %1510 = vmatpush1.msra.mxu0 0.0
    %1511 = vmatprep.subr.mxu0 0.0
    %1512 = vmatpush1.msra.mxu0 0.0
    %1513 = vmatprep.subr.mxu0 %v97
    %1514 = vmatpush1.msra.mxu0 %v96
    %1515 = vmatprep.subr.mxu0 %v89
    %1516 = vmatpush1.msra.mxu0 %v88
    %1517 = vmatprep.subr.mxu0 %v81
    %1518 = vmatpush1.msra.mxu0 %v80
    %1519 = vmatprep.subr.mxu0 %v73
    %1520 = vmatpush1.msra.mxu0 %v72
    %1521 = vmatprep.subr.mxu0 0.0
    %1522 = vmatpush2.msra.mxu0 0.0
    %1523 = vmatprep.subr.mxu0 0.0
    %1524 = vmatpush2.msra.mxu0 0.0
    %1525 = vmatprep.subr.mxu0 0.0
    %1526 = vmatpush2.msra.mxu0 0.0
    %1527 = vmatprep.subr.mxu0 0.0
    %1528 = vmatpush2.msra.mxu0 0.0
    %1529 = vmatprep.subr.mxu0 0.0
    %1530 = vmatpush2.msra.mxu0 0.0
    %1531 = vmatprep.subr.mxu0 0.0
    %1532 = vmatpush2.msra.mxu0 0.0
    %1533 = vmatprep.subr.mxu0 0.0
    %1534 = vmatpush2.msra.mxu0 0.0
    %1535 = vmatprep.subr.mxu0 0.0
    %1536 = vmatpush2.msra.mxu0 0.0
    %1537 = vmatprep.subr.mxu0 0.0
    %1538 = vmatpush2.msra.mxu0 0.0
    %1539 = vmatprep.subr.mxu0 0.0
    %1540 = vmatpush2.msra.mxu0 0.0
    %1541 = vmatprep.subr.mxu0 0.0
    %1542 = vmatpush2.msra.mxu0 0.0
    %1543 = vmatprep.subr.mxu0 0.0
    %1544 = vmatpush2.msra.mxu0 0.0
    %1545 = vmatprep.subr.mxu0 0.0
    %1546 = vmatpush2.msra.mxu0 0.0
    %1547 = vmatprep.subr.mxu0 0.0
    %1548 = vmatpush2.msra.mxu0 0.0
    %1549 = vmatprep.subr.mxu0 0.0
    %1550 = vmatpush2.msra.mxu0 0.0
    %1551 = vmatprep.subr.mxu0 0.0
    %1552 = vmatpush2.msra.mxu0 0.0
    %1553 = vmatprep.mubr.f32.mxu0 0.0
    %1554 = vmatmul.mubr.f32.gmra.mxu0 %v1345
    %v1555 = vpop.f32.mrf.mxu0
    %v1556 = vadd.f32 0.0, %v1555
    %v1557 = vpop.f32.mrf.mxu0
    %v1558 = vadd.f32 0.0, %v1557
    %1559 = vdwg.mxu0
    %1560 = vmatprep.subr.mxu0 0.0
    %1561 = vmatpush1.msra.mxu0 0.0
    %1562 = vmatprep.subr.mxu0 0.0
    %1563 = vmatpush1.msra.mxu0 0.0
    %1564 = vmatprep.subr.mxu0 0.0
    %1565 = vmatpush1.msra.mxu0 0.0
    %1566 = vmatprep.subr.mxu0 0.0
    %1567 = vmatpush1.msra.mxu0 0.0
    %1568 = vmatprep.subr.mxu0 0.0
    %1569 = vmatpush1.msra.mxu0 0.0
    %1570 = vmatprep.subr.mxu0 0.0
    %1571 = vmatpush1.msra.mxu0 0.0
    %1572 = vmatprep.subr.mxu0 0.0
    %1573 = vmatpush1.msra.mxu0 0.0
    %1574 = vmatprep.subr.mxu0 0.0
    %1575 = vmatpush1.msra.mxu0 0.0
    %1576 = vmatprep.subr.mxu0 0.0
    %1577 = vmatpush1.msra.mxu0 0.0
    %1578 = vmatprep.subr.mxu0 0.0
    %1579 = vmatpush1.msra.mxu0 0.0
    %1580 = vmatprep.subr.mxu0 0.0
    %1581 = vmatpush1.msra.mxu0 0.0
    %1582 = vmatprep.subr.mxu0 0.0
    %1583 = vmatpush1.msra.mxu0 0.0
    %1584 = vmatprep.subr.mxu0 %v99
    %1585 = vmatpush1.msra.mxu0 %v98
    %1586 = vmatprep.subr.mxu0 %v91
    %1587 = vmatpush1.msra.mxu0 %v90
    %1588 = vmatprep.subr.mxu0 %v83
    %1589 = vmatpush1.msra.mxu0 %v82
    %1590 = vmatprep.subr.mxu0 %v75
    %1591 = vmatpush1.msra.mxu0 %v74
    %1592 = vmatprep.subr.mxu0 0.0
    %1593 = vmatpush2.msra.mxu0 0.0
    %1594 = vmatprep.subr.mxu0 0.0
    %1595 = vmatpush2.msra.mxu0 0.0
    %1596 = vmatprep.subr.mxu0 0.0
    %1597 = vmatpush2.msra.mxu0 0.0
    %1598 = vmatprep.subr.mxu0 0.0
    %1599 = vmatpush2.msra.mxu0 0.0
    %1600 = vmatprep.subr.mxu0 0.0
    %1601 = vmatpush2.msra.mxu0 0.0
    %1602 = vmatprep.subr.mxu0 0.0
    %1603 = vmatpush2.msra.mxu0 0.0
    %1604 = vmatprep.subr.mxu0 0.0
    %1605 = vmatpush2.msra.mxu0 0.0
    %1606 = vmatprep.subr.mxu0 0.0
    %1607 = vmatpush2.msra.mxu0 0.0
    %1608 = vmatprep.subr.mxu0 0.0
    %1609 = vmatpush2.msra.mxu0 0.0
    %1610 = vmatprep.subr.mxu0 0.0
    %1611 = vmatpush2.msra.mxu0 0.0
    %1612 = vmatprep.subr.mxu0 0.0
    %1613 = vmatpush2.msra.mxu0 0.0
    %1614 = vmatprep.subr.mxu0 0.0
    %1615 = vmatpush2.msra.mxu0 0.0
    %1616 = vmatprep.subr.mxu0 0.0
    %1617 = vmatpush2.msra.mxu0 0.0
    %1618 = vmatprep.subr.mxu0 0.0
    %1619 = vmatpush2.msra.mxu0 0.0
    %1620 = vmatprep.subr.mxu0 0.0
    %1621 = vmatpush2.msra.mxu0 0.0
    %1622 = vmatprep.subr.mxu0 0.0
    %1623 = vmatpush2.msra.mxu0 0.0
    %1624 = vmatprep.mubr.f32.mxu0 0.0
    %1625 = vmatmul.mubr.f32.gmra.mxu0 %v1345
    %v1626 = vpop.f32.mrf.mxu0
    %v1627 = vadd.f32 0.0, %v1626
    %v1628 = vpop.f32.mrf.mxu0
    %v1629 = vadd.f32 0.0, %v1628
    %1630 = vdwg.mxu0
    %v1631 = vadd.f32 %v1414, %v655
    %v1632 = vadd.f32 %v1416, %v659
    %v1633 = vadd.f32 %v1485, %v663
    %v1634 = vadd.f32 %v1487, %v667
    %v1635 = vadd.f32 %v1631, %v1248
    %v1636 = vadd.f32 %v1632, %v1250
    %v1637 = vadd.f32 %v1633, %v1319
    %v1638 = vadd.f32 %v1634, %v1321
    %v1639 = vtanh.pop %v1635
    %v1640 = vtanh.pop %v1636
    %v1641 = vtanh.pop %v1637
    %v1642 = vtanh.pop %v1638
    %v1643 = vmul.f32 %v1639, %v335
    %v1644 = vmul.f32 %v1640, %v336
    %v1645 = vmul.f32 %v1641, %v337
    %v1646 = vmul.f32 %v1642, %v338
    %v1647 = vadd.f32 %v1643, %v339
    %v1648 = vadd.f32 %v1644, %v340
    %v1649 = vadd.f32 %v1645, %v341
    %v1650 = vadd.f32 %v1646, %v342
    %v1651 = vmul.f32 %v1648, %v1174
    %v1652 = vmul.f32 %v1647, %v1649
    %v1653 = vadd.f32 %v1651, %v1652
    %v1654 = vtanh.pop %v1653
    %v1655 = vmul.f32 %v1650, %v1654
    %1656 = vst [vmem:[#allocation2 + $0x4] sm:$0x3] %v1655
    %v1658 = vsel %vm698, %v1655, 0
    %1660 = vmatprep.subr.mxu0 0.0
    %1661 = vmatpush1.msra.mxu0 0.0
    %1662 = vmatprep.subr.mxu0 0.0
    %1663 = vmatpush1.msra.mxu0 0.0
    %1664 = vmatprep.subr.mxu0 0.0
    %1665 = vmatpush1.msra.mxu0 0.0
    %1666 = vmatprep.subr.mxu0 0.0
    %1667 = vmatpush1.msra.mxu0 0.0
    %1668 = vmatprep.subr.mxu0 0.0
    %1669 = vmatpush1.msra.mxu0 0.0
    %1670 = vmatprep.subr.mxu0 0.0
    %1671 = vmatpush1.msra.mxu0 0.0
    %1672 = vmatprep.subr.mxu0 0.0
    %1673 = vmatpush1.msra.mxu0 0.0
    %1674 = vmatprep.subr.mxu0 0.0
    %1675 = vmatpush1.msra.mxu0 0.0
    %1676 = vmatprep.subr.mxu0 %v129
    %1677 = vmatpush1.msra.mxu0 %v128
    %1678 = vmatprep.subr.mxu0 %v125
    %1679 = vmatpush1.msra.mxu0 %v124
    %1680 = vmatprep.subr.mxu0 %v121
    %1681 = vmatpush1.msra.mxu0 %v120
    %1682 = vmatprep.subr.mxu0 %v117
    %1683 = vmatpush1.msra.mxu0 %v116
    %1684 = vmatprep.subr.mxu0 %v113
    %1685 = vmatpush1.msra.mxu0 %v112
    %1686 = vmatprep.subr.mxu0 %v109
    %1687 = vmatpush1.msra.mxu0 %v108
    %1688 = vmatprep.subr.mxu0 %v105
    %1689 = vmatpush1.msra.mxu0 %v104
    %1690 = vmatprep.subr.mxu0 %v101
    %1691 = vmatpush1.msra.mxu0 %v100
    %1692 = vmatprep.subr.mxu0 0.0
    %1693 = vmatpush2.msra.mxu0 0.0
    %1694 = vmatprep.subr.mxu0 0.0
    %1695 = vmatpush2.msra.mxu0 0.0
    %1696 = vmatprep.subr.mxu0 0.0
    %1697 = vmatpush2.msra.mxu0 0.0
    %1698 = vmatprep.subr.mxu0 0.0
    %1699 = vmatpush2.msra.mxu0 0.0
    %1700 = vmatprep.subr.mxu0 0.0
    %1701 = vmatpush2.msra.mxu0 0.0
    %1702 = vmatprep.subr.mxu0 0.0
    %1703 = vmatpush2.msra.mxu0 0.0
    %1704 = vmatprep.subr.mxu0 0.0
    %1705 = vmatpush2.msra.mxu0 0.0
    %1706 = vmatprep.subr.mxu0 0.0
    %1707 = vmatpush2.msra.mxu0 0.0
    %1708 = vmatprep.subr.mxu0 0.0
    %1709 = vmatpush2.msra.mxu0 0.0
    %1710 = vmatprep.subr.mxu0 0.0
    %1711 = vmatpush2.msra.mxu0 0.0
    %1712 = vmatprep.subr.mxu0 0.0
    %1713 = vmatpush2.msra.mxu0 0.0
    %1714 = vmatprep.subr.mxu0 0.0
    %1715 = vmatpush2.msra.mxu0 0.0
    %1716 = vmatprep.subr.mxu0 0.0
    %1717 = vmatpush2.msra.mxu0 0.0
    %1718 = vmatprep.subr.mxu0 0.0
    %1719 = vmatpush2.msra.mxu0 0.0
    %1720 = vmatprep.subr.mxu0 0.0
    %1721 = vmatpush2.msra.mxu0 0.0
    %1722 = vmatprep.subr.mxu0 0.0
    %1723 = vmatpush2.msra.mxu0 0.0
    %1724 = vmatprep.mubr.f32.mxu0 0.0
    %1725 = vmatmul.mubr.f32.gmra.mxu0 %v1658
    %v1726 = vpop.f32.mrf.mxu0
    %v1727 = vadd.f32 0.0, %v1726
    %v1728 = vpop.f32.mrf.mxu0
    %v1729 = vadd.f32 0.0, %v1728
    %1730 = vdwg.mxu0
    %1731 = vmatprep.subr.mxu0 0.0
    %1732 = vmatpush1.msra.mxu0 0.0
    %1733 = vmatprep.subr.mxu0 0.0
    %1734 = vmatpush1.msra.mxu0 0.0
    %1735 = vmatprep.subr.mxu0 0.0
    %1736 = vmatpush1.msra.mxu0 0.0
    %1737 = vmatprep.subr.mxu0 0.0
    %1738 = vmatpush1.msra.mxu0 0.0
    %1739 = vmatprep.subr.mxu0 0.0
    %1740 = vmatpush1.msra.mxu0 0.0
    %1741 = vmatprep.subr.mxu0 0.0
    %1742 = vmatpush1.msra.mxu0 0.0
    %1743 = vmatprep.subr.mxu0 0.0
    %1744 = vmatpush1.msra.mxu0 0.0
    %1745 = vmatprep.subr.mxu0 0.0
    %1746 = vmatpush1.msra.mxu0 0.0
    %1747 = vmatprep.subr.mxu0 %v131
    %1748 = vmatpush1.msra.mxu0 %v130
    %1749 = vmatprep.subr.mxu0 %v127
    %1750 = vmatpush1.msra.mxu0 %v126
    %1751 = vmatprep.subr.mxu0 %v123
    %1752 = vmatpush1.msra.mxu0 %v122
    %1753 = vmatprep.subr.mxu0 %v119
    %1754 = vmatpush1.msra.mxu0 %v118
    %1755 = vmatprep.subr.mxu0 %v115
    %1756 = vmatpush1.msra.mxu0 %v114
    %1757 = vmatprep.subr.mxu0 %v111
    %1758 = vmatpush1.msra.mxu0 %v110
    %1759 = vmatprep.subr.mxu0 %v107
    %1760 = vmatpush1.msra.mxu0 %v106
    %1761 = vmatprep.subr.mxu0 %v103
    %1762 = vmatpush1.msra.mxu0 %v102
    %1763 = vmatprep.subr.mxu0 0.0
    %1764 = vmatpush2.msra.mxu0 0.0
    %1765 = vmatprep.subr.mxu0 0.0
    %1766 = vmatpush2.msra.mxu0 0.0
    %1767 = vmatprep.subr.mxu0 0.0
    %1768 = vmatpush2.msra.mxu0 0.0
    %1769 = vmatprep.subr.mxu0 0.0
    %1770 = vmatpush2.msra.mxu0 0.0
    %1771 = vmatprep.subr.mxu0 0.0
    %1772 = vmatpush2.msra.mxu0 0.0
    %1773 = vmatprep.subr.mxu0 0.0
    %1774 = vmatpush2.msra.mxu0 0.0
    %1775 = vmatprep.subr.mxu0 0.0
    %1776 = vmatpush2.msra.mxu0 0.0
    %1777 = vmatprep.subr.mxu0 0.0
    %1778 = vmatpush2.msra.mxu0 0.0
    %1779 = vmatprep.subr.mxu0 0.0
    %1780 = vmatpush2.msra.mxu0 0.0
    %1781 = vmatprep.subr.mxu0 0.0
    %1782 = vmatpush2.msra.mxu0 0.0
    %1783 = vmatprep.subr.mxu0 0.0
    %1784 = vmatpush2.msra.mxu0 0.0
    %1785 = vmatprep.subr.mxu0 0.0
    %1786 = vmatpush2.msra.mxu0 0.0
    %1787 = vmatprep.subr.mxu0 0.0
    %1788 = vmatpush2.msra.mxu0 0.0
    %1789 = vmatprep.subr.mxu0 0.0
    %1790 = vmatpush2.msra.mxu0 0.0
    %1791 = vmatprep.subr.mxu0 0.0
    %1792 = vmatpush2.msra.mxu0 0.0
    %1793 = vmatprep.subr.mxu0 0.0
    %1794 = vmatpush2.msra.mxu0 0.0
    %1795 = vmatprep.mubr.f32.mxu0 0.0
    %1796 = vmatmul.mubr.f32.gmra.mxu0 %v1658
    %v1797 = vpop.f32.mrf.mxu0
    %v1798 = vadd.f32 0.0, %v1797
    %v1799 = vpop.f32.mrf.mxu0
    %v1800 = vadd.f32 0.0, %v1799
    %1801 = vdwg.mxu0
    %v1802 = vadd.f32 %v243, %v1556
    %v1803 = vadd.f32 %v245, %v1558
    %v1804 = vadd.f32 %v314, %v1627
    %v1805 = vadd.f32 %v316, %v1629
    %v1806 = vtanh.pop %v1802
    %v1807 = vtanh.pop %v1803
    %v1808 = vtanh.pop %v1804
    %v1809 = vtanh.pop %v1805
    %v1810 = vmul.f32 %v1806, %v335
    %v1811 = vmul.f32 %v1807, %v336
    %v1812 = vmul.f32 %v1808, %v337
    %v1813 = vmul.f32 %v1809, %v338
    %v1814 = vadd.f32 %v1810, %v339
    %v1815 = vadd.f32 %v1811, %v340
    %v1816 = vadd.f32 %v1812, %v341
    %v1817 = vadd.f32 %v1813, %v342
    %v1818 = vmul.f32 %v1815, %v1341
    %v1819 = vmul.f32 %v1814, %v1816
    %v1820 = vadd.f32 %v1818, %v1819
    %v1821 = vtanh.pop %v1820
    %v1822 = vmul.f32 %v1817, %v1821
    %v1824 = vsel %vm172, %v1822, 0
    %1826 = vmatprep.subr.mxu0 0.0
    %1827 = vmatpush1.msra.mxu0 0.0
    %1828 = vmatprep.subr.mxu0 0.0
    %1829 = vmatpush1.msra.mxu0 0.0
    %1830 = vmatprep.subr.mxu0 0.0
    %1831 = vmatpush1.msra.mxu0 0.0
    %1832 = vmatprep.subr.mxu0 0.0
    %1833 = vmatpush1.msra.mxu0 0.0
    %1834 = vmatprep.subr.mxu0 0.0
    %1835 = vmatpush1.msra.mxu0 0.0
    %1836 = vmatprep.subr.mxu0 0.0
    %1837 = vmatpush1.msra.mxu0 0.0
    %1838 = vmatprep.subr.mxu0 0.0
    %1839 = vmatpush1.msra.mxu0 0.0
    %1840 = vmatprep.subr.mxu0 0.0
    %1841 = vmatpush1.msra.mxu0 0.0
    %1842 = vmatprep.subr.mxu0 0.0
    %1843 = vmatpush1.msra.mxu0 0.0
    %1844 = vmatprep.subr.mxu0 0.0
    %1845 = vmatpush1.msra.mxu0 0.0
    %1846 = vmatprep.subr.mxu0 0.0
    %1847 = vmatpush1.msra.mxu0 0.0
    %1848 = vmatprep.subr.mxu0 0.0
    %1849 = vmatpush1.msra.mxu0 0.0
    %1850 = vmatprep.subr.mxu0 %v93
    %1851 = vmatpush1.msra.mxu0 %v92
    %1852 = vmatprep.subr.mxu0 %v85
    %1853 = vmatpush1.msra.mxu0 %v84
    %1854 = vmatprep.subr.mxu0 %v77
    %1855 = vmatpush1.msra.mxu0 %v76
    %1856 = vmatprep.subr.mxu0 %v69
    %1857 = vmatpush1.msra.mxu0 %v68
    %1858 = vmatprep.subr.mxu0 0.0
    %1859 = vmatpush2.msra.mxu0 0.0
    %1860 = vmatprep.subr.mxu0 0.0
    %1861 = vmatpush2.msra.mxu0 0.0
    %1862 = vmatprep.subr.mxu0 0.0
    %1863 = vmatpush2.msra.mxu0 0.0
    %1864 = vmatprep.subr.mxu0 0.0
    %1865 = vmatpush2.msra.mxu0 0.0
    %1866 = vmatprep.subr.mxu0 0.0
    %1867 = vmatpush2.msra.mxu0 0.0
    %1868 = vmatprep.subr.mxu0 0.0
    %1869 = vmatpush2.msra.mxu0 0.0
    %1870 = vmatprep.subr.mxu0 0.0
    %1871 = vmatpush2.msra.mxu0 0.0
    %1872 = vmatprep.subr.mxu0 0.0
    %1873 = vmatpush2.msra.mxu0 0.0
    %1874 = vmatprep.subr.mxu0 0.0
    %1875 = vmatpush2.msra.mxu0 0.0
    %1876 = vmatprep.subr.mxu0 0.0
    %1877 = vmatpush2.msra.mxu0 0.0
    %1878 = vmatprep.subr.mxu0 0.0
    %1879 = vmatpush2.msra.mxu0 0.0
    %1880 = vmatprep.subr.mxu0 0.0
    %1881 = vmatpush2.msra.mxu0 0.0
    %1882 = vmatprep.subr.mxu0 0.0
    %1883 = vmatpush2.msra.mxu0 0.0
    %1884 = vmatprep.subr.mxu0 0.0
    %1885 = vmatpush2.msra.mxu0 0.0
    %1886 = vmatprep.subr.mxu0 0.0
    %1887 = vmatpush2.msra.mxu0 0.0
    %1888 = vmatprep.subr.mxu0 0.0
    %1889 = vmatpush2.msra.mxu0 0.0
    %1890 = vmatprep.mubr.f32.mxu0 0.0
    %1891 = vmatmul.mubr.f32.gmra.mxu0 %v1824
    %v1892 = vpop.f32.mrf.mxu0
    %v1893 = vadd.f32 0.0, %v1892
    %v1894 = vpop.f32.mrf.mxu0
    %v1895 = vadd.f32 0.0, %v1894
    %1896 = vdwg.mxu0
    %1897 = vmatprep.subr.mxu0 0.0
    %1898 = vmatpush1.msra.mxu0 0.0
    %1899 = vmatprep.subr.mxu0 0.0
    %1900 = vmatpush1.msra.mxu0 0.0
    %1901 = vmatprep.subr.mxu0 0.0
    %1902 = vmatpush1.msra.mxu0 0.0
    %1903 = vmatprep.subr.mxu0 0.0
    %1904 = vmatpush1.msra.mxu0 0.0
    %1905 = vmatprep.subr.mxu0 0.0
    %1906 = vmatpush1.msra.mxu0 0.0
    %1907 = vmatprep.subr.mxu0 0.0
    %1908 = vmatpush1.msra.mxu0 0.0
    %1909 = vmatprep.subr.mxu0 0.0
    %1910 = vmatpush1.msra.mxu0 0.0
    %1911 = vmatprep.subr.mxu0 0.0
    %1912 = vmatpush1.msra.mxu0 0.0
    %1913 = vmatprep.subr.mxu0 0.0
    %1914 = vmatpush1.msra.mxu0 0.0
    %1915 = vmatprep.subr.mxu0 0.0
    %1916 = vmatpush1.msra.mxu0 0.0
    %1917 = vmatprep.subr.mxu0 0.0
    %1918 = vmatpush1.msra.mxu0 0.0
    %1919 = vmatprep.subr.mxu0 0.0
    %1920 = vmatpush1.msra.mxu0 0.0
    %1921 = vmatprep.subr.mxu0 %v95
    %1922 = vmatpush1.msra.mxu0 %v94
    %1923 = vmatprep.subr.mxu0 %v87
    %1924 = vmatpush1.msra.mxu0 %v86
    %1925 = vmatprep.subr.mxu0 %v79
    %1926 = vmatpush1.msra.mxu0 %v78
    %1927 = vmatprep.subr.mxu0 %v71
    %1928 = vmatpush1.msra.mxu0 %v70
    %1929 = vmatprep.subr.mxu0 0.0
    %1930 = vmatpush2.msra.mxu0 0.0
    %1931 = vmatprep.subr.mxu0 0.0
    %1932 = vmatpush2.msra.mxu0 0.0
    %1933 = vmatprep.subr.mxu0 0.0
    %1934 = vmatpush2.msra.mxu0 0.0
    %1935 = vmatprep.subr.mxu0 0.0
    %1936 = vmatpush2.msra.mxu0 0.0
    %1937 = vmatprep.subr.mxu0 0.0
    %1938 = vmatpush2.msra.mxu0 0.0
    %1939 = vmatprep.subr.mxu0 0.0
    %1940 = vmatpush2.msra.mxu0 0.0
    %1941 = vmatprep.subr.mxu0 0.0
    %1942 = vmatpush2.msra.mxu0 0.0
    %1943 = vmatprep.subr.mxu0 0.0
    %1944 = vmatpush2.msra.mxu0 0.0
    %1945 = vmatprep.subr.mxu0 0.0
    %1946 = vmatpush2.msra.mxu0 0.0
    %1947 = vmatprep.subr.mxu0 0.0
    %1948 = vmatpush2.msra.mxu0 0.0
    %1949 = vmatprep.subr.mxu0 0.0
    %1950 = vmatpush2.msra.mxu0 0.0
    %1951 = vmatprep.subr.mxu0 0.0
    %1952 = vmatpush2.msra.mxu0 0.0
    %1953 = vmatprep.subr.mxu0 0.0
    %1954 = vmatpush2.msra.mxu0 0.0
    %1955 = vmatprep.subr.mxu0 0.0
    %1956 = vmatpush2.msra.mxu0 0.0
    %1957 = vmatprep.subr.mxu0 0.0
    %1958 = vmatpush2.msra.mxu0 0.0
    %1959 = vmatprep.subr.mxu0 0.0
    %1960 = vmatpush2.msra.mxu0 0.0
    %1961 = vmatprep.mubr.f32.mxu0 0.0
    %1962 = vmatmul.mubr.f32.gmra.mxu0 %v1824
    %v1963 = vpop.f32.mrf.mxu0
    %v1964 = vadd.f32 0.0, %v1963
    %v1965 = vpop.f32.mrf.mxu0
    %v1966 = vadd.f32 0.0, %v1965
    %1967 = vdwg.mxu0
    %1968 = vmatprep.subr.mxu0 0.0
    %1969 = vmatpush1.msra.mxu0 0.0
    %1970 = vmatprep.subr.mxu0 0.0
    %1971 = vmatpush1.msra.mxu0 0.0
    %1972 = vmatprep.subr.mxu0 0.0
    %1973 = vmatpush1.msra.mxu0 0.0
    %1974 = vmatprep.subr.mxu0 0.0
    %1975 = vmatpush1.msra.mxu0 0.0
    %1976 = vmatprep.subr.mxu0 0.0
    %1977 = vmatpush1.msra.mxu0 0.0
    %1978 = vmatprep.subr.mxu0 0.0
    %1979 = vmatpush1.msra.mxu0 0.0
    %1980 = vmatprep.subr.mxu0 0.0
    %1981 = vmatpush1.msra.mxu0 0.0
    %1982 = vmatprep.subr.mxu0 0.0
    %1983 = vmatpush1.msra.mxu0 0.0
    %1984 = vmatprep.subr.mxu0 0.0
    %1985 = vmatpush1.msra.mxu0 0.0
    %1986 = vmatprep.subr.mxu0 0.0
    %1987 = vmatpush1.msra.mxu0 0.0
    %1988 = vmatprep.subr.mxu0 0.0
    %1989 = vmatpush1.msra.mxu0 0.0
    %1990 = vmatprep.subr.mxu0 0.0
    %1991 = vmatpush1.msra.mxu0 0.0
    %1992 = vmatprep.subr.mxu0 %v97
    %1993 = vmatpush1.msra.mxu0 %v96
    %1994 = vmatprep.subr.mxu0 %v89
    %1995 = vmatpush1.msra.mxu0 %v88
    %1996 = vmatprep.subr.mxu0 %v81
    %1997 = vmatpush1.msra.mxu0 %v80
    %1998 = vmatprep.subr.mxu0 %v73
    %1999 = vmatpush1.msra.mxu0 %v72
    %2000 = vmatprep.subr.mxu0 0.0
    %2001 = vmatpush2.msra.mxu0 0.0
    %2002 = vmatprep.subr.mxu0 0.0
    %2003 = vmatpush2.msra.mxu0 0.0
    %2004 = vmatprep.subr.mxu0 0.0
    %2005 = vmatpush2.msra.mxu0 0.0
    %2006 = vmatprep.subr.mxu0 0.0
    %2007 = vmatpush2.msra.mxu0 0.0
    %2008 = vmatprep.subr.mxu0 0.0
    %2009 = vmatpush2.msra.mxu0 0.0
    %2010 = vmatprep.subr.mxu0 0.0
    %2011 = vmatpush2.msra.mxu0 0.0
    %2012 = vmatprep.subr.mxu0 0.0
    %2013 = vmatpush2.msra.mxu0 0.0
    %2014 = vmatprep.subr.mxu0 0.0
    %2015 = vmatpush2.msra.mxu0 0.0
    %2016 = vmatprep.subr.mxu0 0.0
    %2017 = vmatpush2.msra.mxu0 0.0
    %2018 = vmatprep.subr.mxu0 0.0
    %2019 = vmatpush2.msra.mxu0 0.0
    %2020 = vmatprep.subr.mxu0 0.0
    %2021 = vmatpush2.msra.mxu0 0.0
    %2022 = vmatprep.subr.mxu0 0.0
    %2023 = vmatpush2.msra.mxu0 0.0
    %2024 = vmatprep.subr.mxu0 0.0
    %2025 = vmatpush2.msra.mxu0 0.0
    %2026 = vmatprep.subr.mxu0 0.0
    %2027 = vmatpush2.msra.mxu0 0.0
    %2028 = vmatprep.subr.mxu0 0.0
    %2029 = vmatpush2.msra.mxu0 0.0
    %2030 = vmatprep.subr.mxu0 0.0
    %2031 = vmatpush2.msra.mxu0 0.0
    %2032 = vmatprep.mubr.f32.mxu0 0.0
    %2033 = vmatmul.mubr.f32.gmra.mxu0 %v1824
    %v2034 = vpop.f32.mrf.mxu0
    %v2035 = vadd.f32 0.0, %v2034
    %v2036 = vpop.f32.mrf.mxu0
    %v2037 = vadd.f32 0.0, %v2036
    %2038 = vdwg.mxu0
    %2039 = vmatprep.subr.mxu0 0.0
    %2040 = vmatpush1.msra.mxu0 0.0
    %2041 = vmatprep.subr.mxu0 0.0
    %2042 = vmatpush1.msra.mxu0 0.0
    %2043 = vmatprep.subr.mxu0 0.0
    %2044 = vmatpush1.msra.mxu0 0.0
    %2045 = vmatprep.subr.mxu0 0.0
    %2046 = vmatpush1.msra.mxu0 0.0
    %2047 = vmatprep.subr.mxu0 0.0
    %2048 = vmatpush1.msra.mxu0 0.0
    %2049 = vmatprep.subr.mxu0 0.0
    %2050 = vmatpush1.msra.mxu0 0.0
    %2051 = vmatprep.subr.mxu0 0.0
    %2052 = vmatpush1.msra.mxu0 0.0
    %2053 = vmatprep.subr.mxu0 0.0
    %2054 = vmatpush1.msra.mxu0 0.0
    %2055 = vmatprep.subr.mxu0 0.0
    %2056 = vmatpush1.msra.mxu0 0.0
    %2057 = vmatprep.subr.mxu0 0.0
    %2058 = vmatpush1.msra.mxu0 0.0
    %2059 = vmatprep.subr.mxu0 0.0
    %2060 = vmatpush1.msra.mxu0 0.0
    %2061 = vmatprep.subr.mxu0 0.0
    %2062 = vmatpush1.msra.mxu0 0.0
    %2063 = vmatprep.subr.mxu0 %v99
    %2064 = vmatpush1.msra.mxu0 %v98
    %2065 = vmatprep.subr.mxu0 %v91
    %2066 = vmatpush1.msra.mxu0 %v90
    %2067 = vmatprep.subr.mxu0 %v83
    %2068 = vmatpush1.msra.mxu0 %v82
    %2069 = vmatprep.subr.mxu0 %v75
    %2070 = vmatpush1.msra.mxu0 %v74
    %2071 = vmatprep.subr.mxu0 0.0
    %2072 = vmatpush2.msra.mxu0 0.0
    %2073 = vmatprep.subr.mxu0 0.0
    %2074 = vmatpush2.msra.mxu0 0.0
    %2075 = vmatprep.subr.mxu0 0.0
    %2076 = vmatpush2.msra.mxu0 0.0
    %2077 = vmatprep.subr.mxu0 0.0
    %2078 = vmatpush2.msra.mxu0 0.0
    %2079 = vmatprep.subr.mxu0 0.0
    %2080 = vmatpush2.msra.mxu0 0.0
    %2081 = vmatprep.subr.mxu0 0.0
    %2082 = vmatpush2.msra.mxu0 0.0
    %2083 = vmatprep.subr.mxu0 0.0
    %2084 = vmatpush2.msra.mxu0 0.0
    %2085 = vmatprep.subr.mxu0 0.0
    %2086 = vmatpush2.msra.mxu0 0.0
    %2087 = vmatprep.subr.mxu0 0.0
    %2088 = vmatpush2.msra.mxu0 0.0
    %2089 = vmatprep.subr.mxu0 0.0
    %2090 = vmatpush2.msra.mxu0 0.0
    %2091 = vmatprep.subr.mxu0 0.0
    %2092 = vmatpush2.msra.mxu0 0.0
    %2093 = vmatprep.subr.mxu0 0.0
    %2094 = vmatpush2.msra.mxu0 0.0
    %2095 = vmatprep.subr.mxu0 0.0
    %2096 = vmatpush2.msra.mxu0 0.0
    %2097 = vmatprep.subr.mxu0 0.0
    %2098 = vmatpush2.msra.mxu0 0.0
    %2099 = vmatprep.subr.mxu0 0.0
    %2100 = vmatpush2.msra.mxu0 0.0
    %2101 = vmatprep.subr.mxu0 0.0
    %2102 = vmatpush2.msra.mxu0 0.0
    %2103 = vmatprep.mubr.f32.mxu0 0.0
    %2104 = vmatmul.mubr.f32.gmra.mxu0 %v1824
    %v2105 = vpop.f32.mrf.mxu0
    %v2106 = vadd.f32 0.0, %v2105
    %v2107 = vpop.f32.mrf.mxu0
    %v2108 = vadd.f32 0.0, %v2107
    %2109 = vdwg.mxu0
    %v2110 = vadd.f32 %v1893, %v655
    %v2111 = vadd.f32 %v1895, %v659
    %v2112 = vadd.f32 %v1964, %v663
    %v2113 = vadd.f32 %v1966, %v667
    %v2114 = vadd.f32 %v2110, %v1727
    %v2115 = vadd.f32 %v2111, %v1729
    %v2116 = vadd.f32 %v2112, %v1798
    %v2117 = vadd.f32 %v2113, %v1800
    %v2118 = vtanh.pop %v2114
    %v2119 = vtanh.pop %v2115
    %v2120 = vtanh.pop %v2116
    %v2121 = vtanh.pop %v2117
    %v2122 = vmul.f32 %v2118, %v335
    %v2123 = vmul.f32 %v2119, %v336
    %v2124 = vmul.f32 %v2120, %v337
    %v2125 = vmul.f32 %v2121, %v338
    %v2126 = vadd.f32 %v2122, %v339
    %v2127 = vadd.f32 %v2123, %v340
    %v2128 = vadd.f32 %v2124, %v341
    %v2129 = vadd.f32 %v2125, %v342
    %v2130 = vmul.f32 %v2127, %v1653
    %v2131 = vmul.f32 %v2126, %v2128
    %v2132 = vadd.f32 %v2130, %v2131
    %v2133 = vtanh.pop %v2132
    %v2134 = vmul.f32 %v2129, %v2133
    %2135 = vst [vmem:[#allocation2 + $0x6] sm:$0x3] %v2134
    %v2137 = vsel %vm698, %v2134, 0
    %2139 = vmatprep.subr.mxu0 0.0
    %2140 = vmatpush1.msra.mxu0 0.0
    %2141 = vmatprep.subr.mxu0 0.0
    %2142 = vmatpush1.msra.mxu0 0.0
    %2143 = vmatprep.subr.mxu0 0.0
    %2144 = vmatpush1.msra.mxu0 0.0
    %2145 = vmatprep.subr.mxu0 0.0
    %2146 = vmatpush1.msra.mxu0 0.0
    %2147 = vmatprep.subr.mxu0 0.0
    %2148 = vmatpush1.msra.mxu0 0.0
    %2149 = vmatprep.subr.mxu0 0.0
    %2150 = vmatpush1.msra.mxu0 0.0
    %2151 = vmatprep.subr.mxu0 0.0
    %2152 = vmatpush1.msra.mxu0 0.0
    %2153 = vmatprep.subr.mxu0 0.0
    %2154 = vmatpush1.msra.mxu0 0.0
    %2155 = vmatprep.subr.mxu0 %v129
    %2156 = vmatpush1.msra.mxu0 %v128
    %2157 = vmatprep.subr.mxu0 %v125
    %2158 = vmatpush1.msra.mxu0 %v124
    %2159 = vmatprep.subr.mxu0 %v121
    %2160 = vmatpush1.msra.mxu0 %v120
    %2161 = vmatprep.subr.mxu0 %v117
    %2162 = vmatpush1.msra.mxu0 %v116
    %2163 = vmatprep.subr.mxu0 %v113
    %2164 = vmatpush1.msra.mxu0 %v112
    %2165 = vmatprep.subr.mxu0 %v109
    %2166 = vmatpush1.msra.mxu0 %v108
    %2167 = vmatprep.subr.mxu0 %v105
    %2168 = vmatpush1.msra.mxu0 %v104
    %2169 = vmatprep.subr.mxu0 %v101
    %2170 = vmatpush1.msra.mxu0 %v100
    %2171 = vmatprep.subr.mxu0 0.0
    %2172 = vmatpush2.msra.mxu0 0.0
    %2173 = vmatprep.subr.mxu0 0.0
    %2174 = vmatpush2.msra.mxu0 0.0
    %2175 = vmatprep.subr.mxu0 0.0
    %2176 = vmatpush2.msra.mxu0 0.0
    %2177 = vmatprep.subr.mxu0 0.0
    %2178 = vmatpush2.msra.mxu0 0.0
    %2179 = vmatprep.subr.mxu0 0.0
    %2180 = vmatpush2.msra.mxu0 0.0
    %2181 = vmatprep.subr.mxu0 0.0
    %2182 = vmatpush2.msra.mxu0 0.0
    %2183 = vmatprep.subr.mxu0 0.0
    %2184 = vmatpush2.msra.mxu0 0.0
    %2185 = vmatprep.subr.mxu0 0.0
    %2186 = vmatpush2.msra.mxu0 0.0
    %2187 = vmatprep.subr.mxu0 0.0
    %2188 = vmatpush2.msra.mxu0 0.0
    %2189 = vmatprep.subr.mxu0 0.0
    %2190 = vmatpush2.msra.mxu0 0.0
    %2191 = vmatprep.subr.mxu0 0.0
    %2192 = vmatpush2.msra.mxu0 0.0
    %2193 = vmatprep.subr.mxu0 0.0
    %2194 = vmatpush2.msra.mxu0 0.0
    %2195 = vmatprep.subr.mxu0 0.0
    %2196 = vmatpush2.msra.mxu0 0.0
    %2197 = vmatprep.subr.mxu0 0.0
    %2198 = vmatpush2.msra.mxu0 0.0
    %2199 = vmatprep.subr.mxu0 0.0
    %2200 = vmatpush2.msra.mxu0 0.0
    %2201 = vmatprep.subr.mxu0 0.0
    %2202 = vmatpush2.msra.mxu0 0.0
    %2203 = vmatprep.mubr.f32.mxu0 0.0
    %2204 = vmatmul.mubr.f32.gmra.mxu0 %v2137
    %v2205 = vpop.f32.mrf.mxu0
    %v2206 = vadd.f32 0.0, %v2205
    %v2207 = vpop.f32.mrf.mxu0
    %v2208 = vadd.f32 0.0, %v2207
    %2209 = vdwg.mxu0
    %2210 = vmatprep.subr.mxu0 0.0
    %2211 = vmatpush1.msra.mxu0 0.0
    %2212 = vmatprep.subr.mxu0 0.0
    %2213 = vmatpush1.msra.mxu0 0.0
    %2214 = vmatprep.subr.mxu0 0.0
    %2215 = vmatpush1.msra.mxu0 0.0
    %2216 = vmatprep.subr.mxu0 0.0
    %2217 = vmatpush1.msra.mxu0 0.0
    %2218 = vmatprep.subr.mxu0 0.0
    %2219 = vmatpush1.msra.mxu0 0.0
    %2220 = vmatprep.subr.mxu0 0.0
    %2221 = vmatpush1.msra.mxu0 0.0
    %2222 = vmatprep.subr.mxu0 0.0
    %2223 = vmatpush1.msra.mxu0 0.0
    %2224 = vmatprep.subr.mxu0 0.0
    %2225 = vmatpush1.msra.mxu0 0.0
    %2226 = vmatprep.subr.mxu0 %v131
    %2227 = vmatpush1.msra.mxu0 %v130
    %2228 = vmatprep.subr.mxu0 %v127
    %2229 = vmatpush1.msra.mxu0 %v126
    %2230 = vmatprep.subr.mxu0 %v123
    %2231 = vmatpush1.msra.mxu0 %v122
    %2232 = vmatprep.subr.mxu0 %v119
    %2233 = vmatpush1.msra.mxu0 %v118
    %2234 = vmatprep.subr.mxu0 %v115
    %2235 = vmatpush1.msra.mxu0 %v114
    %2236 = vmatprep.subr.mxu0 %v111
    %2237 = vmatpush1.msra.mxu0 %v110
    %2238 = vmatprep.subr.mxu0 %v107
    %2239 = vmatpush1.msra.mxu0 %v106
    %2240 = vmatprep.subr.mxu0 %v103
    %2241 = vmatpush1.msra.mxu0 %v102
    %2242 = vmatprep.subr.mxu0 0.0
    %2243 = vmatpush2.msra.mxu0 0.0
    %2244 = vmatprep.subr.mxu0 0.0
    %2245 = vmatpush2.msra.mxu0 0.0
    %2246 = vmatprep.subr.mxu0 0.0
    %2247 = vmatpush2.msra.mxu0 0.0
    %2248 = vmatprep.subr.mxu0 0.0
    %2249 = vmatpush2.msra.mxu0 0.0
    %2250 = vmatprep.subr.mxu0 0.0
    %2251 = vmatpush2.msra.mxu0 0.0
    %2252 = vmatprep.subr.mxu0 0.0
    %2253 = vmatpush2.msra.mxu0 0.0
    %2254 = vmatprep.subr.mxu0 0.0
    %2255 = vmatpush2.msra.mxu0 0.0
    %2256 = vmatprep.subr.mxu0 0.0
    %2257 = vmatpush2.msra.mxu0 0.0
    %2258 = vmatprep.subr.mxu0 0.0
    %2259 = vmatpush2.msra.mxu0 0.0
    %2260 = vmatprep.subr.mxu0 0.0
    %2261 = vmatpush2.msra.mxu0 0.0
    %2262 = vmatprep.subr.mxu0 0.0
    %2263 = vmatpush2.msra.mxu0 0.0
    %2264 = vmatprep.subr.mxu0 0.0
    %2265 = vmatpush2.msra.mxu0 0.0
    %2266 = vmatprep.subr.mxu0 0.0
    %2267 = vmatpush2.msra.mxu0 0.0
    %2268 = vmatprep.subr.mxu0 0.0
    %2269 = vmatpush2.msra.mxu0 0.0
    %2270 = vmatprep.subr.mxu0 0.0
    %2271 = vmatpush2.msra.mxu0 0.0
    %2272 = vmatprep.subr.mxu0 0.0
    %2273 = vmatpush2.msra.mxu0 0.0
    %2274 = vmatprep.mubr.f32.mxu0 0.0
    %2275 = vmatmul.mubr.f32.gmra.mxu0 %v2137
    %v2276 = vpop.f32.mrf.mxu0
    %v2277 = vadd.f32 0.0, %v2276
    %v2278 = vpop.f32.mrf.mxu0
    %v2279 = vadd.f32 0.0, %v2278
    %2280 = vdwg.mxu0
    %v2281 = vadd.f32 %v243, %v2035
    %v2282 = vadd.f32 %v245, %v2037
    %v2283 = vadd.f32 %v314, %v2106
    %v2284 = vadd.f32 %v316, %v2108
    %v2285 = vtanh.pop %v2281
    %v2286 = vtanh.pop %v2282
    %v2287 = vtanh.pop %v2283
    %v2288 = vtanh.pop %v2284
    %v2289 = vmul.f32 %v2285, %v335
    %v2290 = vmul.f32 %v2286, %v336
    %v2291 = vmul.f32 %v2287, %v337
    %v2292 = vmul.f32 %v2288, %v338
    %v2293 = vadd.f32 %v2289, %v339
    %v2294 = vadd.f32 %v2290, %v340
    %v2295 = vadd.f32 %v2291, %v341
    %v2296 = vadd.f32 %v2292, %v342
    %v2297 = vmul.f32 %v2294, %v1820
    %v2298 = vmul.f32 %v2293, %v2295
    %v2299 = vadd.f32 %v2297, %v2298
    %v2300 = vtanh.pop %v2299
    %v2301 = vmul.f32 %v2296, %v2300
    %v2303 = vsel %vm172, %v2301, 0
    %2305 = vmatprep.subr.mxu0 0.0
    %2306 = vmatpush1.msra.mxu0 0.0
    %2307 = vmatprep.subr.mxu0 0.0
    %2308 = vmatpush1.msra.mxu0 0.0
    %2309 = vmatprep.subr.mxu0 0.0
    %2310 = vmatpush1.msra.mxu0 0.0
    %2311 = vmatprep.subr.mxu0 0.0
    %2312 = vmatpush1.msra.mxu0 0.0
    %2313 = vmatprep.subr.mxu0 0.0
    %2314 = vmatpush1.msra.mxu0 0.0
    %2315 = vmatprep.subr.mxu0 0.0
    %2316 = vmatpush1.msra.mxu0 0.0
    %2317 = vmatprep.subr.mxu0 0.0
    %2318 = vmatpush1.msra.mxu0 0.0
    %2319 = vmatprep.subr.mxu0 0.0
    %2320 = vmatpush1.msra.mxu0 0.0
    %2321 = vmatprep.subr.mxu0 0.0
    %2322 = vmatpush1.msra.mxu0 0.0
    %2323 = vmatprep.subr.mxu0 0.0
    %2324 = vmatpush1.msra.mxu0 0.0
    %2325 = vmatprep.subr.mxu0 0.0
    %2326 = vmatpush1.msra.mxu0 0.0
    %2327 = vmatprep.subr.mxu0 0.0
    %2328 = vmatpush1.msra.mxu0 0.0
    %2329 = vmatprep.subr.mxu0 %v93
    %2330 = vmatpush1.msra.mxu0 %v92
    %2331 = vmatprep.subr.mxu0 %v85
    %2332 = vmatpush1.msra.mxu0 %v84
    %2333 = vmatprep.subr.mxu0 %v77
    %2334 = vmatpush1.msra.mxu0 %v76
    %2335 = vmatprep.subr.mxu0 %v69
    %2336 = vmatpush1.msra.mxu0 %v68
    %2337 = vmatprep.subr.mxu0 0.0
    %2338 = vmatpush2.msra.mxu0 0.0
    %2339 = vmatprep.subr.mxu0 0.0
    %2340 = vmatpush2.msra.mxu0 0.0
    %2341 = vmatprep.subr.mxu0 0.0
    %2342 = vmatpush2.msra.mxu0 0.0
    %2343 = vmatprep.subr.mxu0 0.0
    %2344 = vmatpush2.msra.mxu0 0.0
    %2345 = vmatprep.subr.mxu0 0.0
    %2346 = vmatpush2.msra.mxu0 0.0
    %2347 = vmatprep.subr.mxu0 0.0
    %2348 = vmatpush2.msra.mxu0 0.0
    %2349 = vmatprep.subr.mxu0 0.0
    %2350 = vmatpush2.msra.mxu0 0.0
    %2351 = vmatprep.subr.mxu0 0.0
    %2352 = vmatpush2.msra.mxu0 0.0
    %2353 = vmatprep.subr.mxu0 0.0
    %2354 = vmatpush2.msra.mxu0 0.0
    %2355 = vmatprep.subr.mxu0 0.0
    %2356 = vmatpush2.msra.mxu0 0.0
    %2357 = vmatprep.subr.mxu0 0.0
    %2358 = vmatpush2.msra.mxu0 0.0
    %2359 = vmatprep.subr.mxu0 0.0
    %2360 = vmatpush2.msra.mxu0 0.0
    %2361 = vmatprep.subr.mxu0 0.0
    %2362 = vmatpush2.msra.mxu0 0.0
    %2363 = vmatprep.subr.mxu0 0.0
    %2364 = vmatpush2.msra.mxu0 0.0
    %2365 = vmatprep.subr.mxu0 0.0
    %2366 = vmatpush2.msra.mxu0 0.0
    %2367 = vmatprep.subr.mxu0 0.0
    %2368 = vmatpush2.msra.mxu0 0.0
    %2369 = vmatprep.mubr.f32.mxu0 0.0
    %2370 = vmatmul.mubr.f32.gmra.mxu0 %v2303
    %v2371 = vpop.f32.mrf.mxu0
    %v2372 = vadd.f32 0.0, %v2371
    %v2373 = vpop.f32.mrf.mxu0
    %v2374 = vadd.f32 0.0, %v2373
    %2375 = vdwg.mxu0
    %2376 = vmatprep.subr.mxu0 0.0
    %2377 = vmatpush1.msra.mxu0 0.0
    %2378 = vmatprep.subr.mxu0 0.0
    %2379 = vmatpush1.msra.mxu0 0.0
    %2380 = vmatprep.subr.mxu0 0.0
    %2381 = vmatpush1.msra.mxu0 0.0
    %2382 = vmatprep.subr.mxu0 0.0
    %2383 = vmatpush1.msra.mxu0 0.0
    %2384 = vmatprep.subr.mxu0 0.0
    %2385 = vmatpush1.msra.mxu0 0.0
    %2386 = vmatprep.subr.mxu0 0.0
    %2387 = vmatpush1.msra.mxu0 0.0
    %2388 = vmatprep.subr.mxu0 0.0
    %2389 = vmatpush1.msra.mxu0 0.0
    %2390 = vmatprep.subr.mxu0 0.0
    %2391 = vmatpush1.msra.mxu0 0.0
    %2392 = vmatprep.subr.mxu0 0.0
    %2393 = vmatpush1.msra.mxu0 0.0
    %2394 = vmatprep.subr.mxu0 0.0
    %2395 = vmatpush1.msra.mxu0 0.0
    %2396 = vmatprep.subr.mxu0 0.0
    %2397 = vmatpush1.msra.mxu0 0.0
    %2398 = vmatprep.subr.mxu0 0.0
    %2399 = vmatpush1.msra.mxu0 0.0
    %2400 = vmatprep.subr.mxu0 %v95
    %2401 = vmatpush1.msra.mxu0 %v94
    %2402 = vmatprep.subr.mxu0 %v87
    %2403 = vmatpush1.msra.mxu0 %v86
    %2404 = vmatprep.subr.mxu0 %v79
    %2405 = vmatpush1.msra.mxu0 %v78
    %2406 = vmatprep.subr.mxu0 %v71
    %2407 = vmatpush1.msra.mxu0 %v70
    %2408 = vmatprep.subr.mxu0 0.0
    %2409 = vmatpush2.msra.mxu0 0.0
    %2410 = vmatprep.subr.mxu0 0.0
    %2411 = vmatpush2.msra.mxu0 0.0
    %2412 = vmatprep.subr.mxu0 0.0
    %2413 = vmatpush2.msra.mxu0 0.0
    %2414 = vmatprep.subr.mxu0 0.0
    %2415 = vmatpush2.msra.mxu0 0.0
    %2416 = vmatprep.subr.mxu0 0.0
    %2417 = vmatpush2.msra.mxu0 0.0
    %2418 = vmatprep.subr.mxu0 0.0
    %2419 = vmatpush2.msra.mxu0 0.0
    %2420 = vmatprep.subr.mxu0 0.0
    %2421 = vmatpush2.msra.mxu0 0.0
    %2422 = vmatprep.subr.mxu0 0.0
    %2423 = vmatpush2.msra.mxu0 0.0
    %2424 = vmatprep.subr.mxu0 0.0
    %2425 = vmatpush2.msra.mxu0 0.0
    %2426 = vmatprep.subr.mxu0 0.0
    %2427 = vmatpush2.msra.mxu0 0.0
    %2428 = vmatprep.subr.mxu0 0.0
    %2429 = vmatpush2.msra.mxu0 0.0
    %2430 = vmatprep.subr.mxu0 0.0
    %2431 = vmatpush2.msra.mxu0 0.0
    %2432 = vmatprep.subr.mxu0 0.0
    %2433 = vmatpush2.msra.mxu0 0.0
    %2434 = vmatprep.subr.mxu0 0.0
    %2435 = vmatpush2.msra.mxu0 0.0
    %2436 = vmatprep.subr.mxu0 0.0
    %2437 = vmatpush2.msra.mxu0 0.0
    %2438 = vmatprep.subr.mxu0 0.0
    %2439 = vmatpush2.msra.mxu0 0.0
    %2440 = vmatprep.mubr.f32.mxu0 0.0
    %2441 = vmatmul.mubr.f32.gmra.mxu0 %v2303
    %v2442 = vpop.f32.mrf.mxu0
    %v2443 = vadd.f32 0.0, %v2442
    %v2444 = vpop.f32.mrf.mxu0
    %v2445 = vadd.f32 0.0, %v2444
    %2446 = vdwg.mxu0
    %2447 = vmatprep.subr.mxu0 0.0
    %2448 = vmatpush1.msra.mxu0 0.0
    %2449 = vmatprep.subr.mxu0 0.0
    %2450 = vmatpush1.msra.mxu0 0.0
    %2451 = vmatprep.subr.mxu0 0.0
    %2452 = vmatpush1.msra.mxu0 0.0
    %2453 = vmatprep.subr.mxu0 0.0
    %2454 = vmatpush1.msra.mxu0 0.0
    %2455 = vmatprep.subr.mxu0 0.0
    %2456 = vmatpush1.msra.mxu0 0.0
    %2457 = vmatprep.subr.mxu0 0.0
    %2458 = vmatpush1.msra.mxu0 0.0
    %2459 = vmatprep.subr.mxu0 0.0
    %2460 = vmatpush1.msra.mxu0 0.0
    %2461 = vmatprep.subr.mxu0 0.0
    %2462 = vmatpush1.msra.mxu0 0.0
    %2463 = vmatprep.subr.mxu0 0.0
    %2464 = vmatpush1.msra.mxu0 0.0
    %2465 = vmatprep.subr.mxu0 0.0
    %2466 = vmatpush1.msra.mxu0 0.0
    %2467 = vmatprep.subr.mxu0 0.0
    %2468 = vmatpush1.msra.mxu0 0.0
    %2469 = vmatprep.subr.mxu0 0.0
    %2470 = vmatpush1.msra.mxu0 0.0
    %2471 = vmatprep.subr.mxu0 %v97
    %2472 = vmatpush1.msra.mxu0 %v96
    %2473 = vmatprep.subr.mxu0 %v89
    %2474 = vmatpush1.msra.mxu0 %v88
    %2475 = vmatprep.subr.mxu0 %v81
    %2476 = vmatpush1.msra.mxu0 %v80
    %2477 = vmatprep.subr.mxu0 %v73
    %2478 = vmatpush1.msra.mxu0 %v72
    %2479 = vmatprep.subr.mxu0 0.0
    %2480 = vmatpush2.msra.mxu0 0.0
    %2481 = vmatprep.subr.mxu0 0.0
    %2482 = vmatpush2.msra.mxu0 0.0
    %2483 = vmatprep.subr.mxu0 0.0
    %2484 = vmatpush2.msra.mxu0 0.0
    %2485 = vmatprep.subr.mxu0 0.0
    %2486 = vmatpush2.msra.mxu0 0.0
    %2487 = vmatprep.subr.mxu0 0.0
    %2488 = vmatpush2.msra.mxu0 0.0
    %2489 = vmatprep.subr.mxu0 0.0
    %2490 = vmatpush2.msra.mxu0 0.0
    %2491 = vmatprep.subr.mxu0 0.0
    %2492 = vmatpush2.msra.mxu0 0.0
    %2493 = vmatprep.subr.mxu0 0.0
    %2494 = vmatpush2.msra.mxu0 0.0
    %2495 = vmatprep.subr.mxu0 0.0
    %2496 = vmatpush2.msra.mxu0 0.0
    %2497 = vmatprep.subr.mxu0 0.0
    %2498 = vmatpush2.msra.mxu0 0.0
    %2499 = vmatprep.subr.mxu0 0.0
    %2500 = vmatpush2.msra.mxu0 0.0
    %2501 = vmatprep.subr.mxu0 0.0
    %2502 = vmatpush2.msra.mxu0 0.0
    %2503 = vmatprep.subr.mxu0 0.0
    %2504 = vmatpush2.msra.mxu0 0.0
    %2505 = vmatprep.subr.mxu0 0.0
    %2506 = vmatpush2.msra.mxu0 0.0
    %2507 = vmatprep.subr.mxu0 0.0
    %2508 = vmatpush2.msra.mxu0 0.0
    %2509 = vmatprep.subr.mxu0 0.0
    %2510 = vmatpush2.msra.mxu0 0.0
    %2511 = vmatprep.mubr.f32.mxu0 0.0
    %2512 = vmatmul.mubr.f32.gmra.mxu0 %v2303
    %v2513 = vpop.f32.mrf.mxu0
    %v2514 = vadd.f32 0.0, %v2513
    %v2515 = vpop.f32.mrf.mxu0
    %v2516 = vadd.f32 0.0, %v2515
    %2517 = vdwg.mxu0
    %2518 = vmatprep.subr.mxu0 0.0
    %2519 = vmatpush1.msra.mxu0 0.0
    %2520 = vmatprep.subr.mxu0 0.0
    %2521 = vmatpush1.msra.mxu0 0.0
    %2522 = vmatprep.subr.mxu0 0.0
    %2523 = vmatpush1.msra.mxu0 0.0
    %2524 = vmatprep.subr.mxu0 0.0
    %2525 = vmatpush1.msra.mxu0 0.0
    %2526 = vmatprep.subr.mxu0 0.0
    %2527 = vmatpush1.msra.mxu0 0.0
    %2528 = vmatprep.subr.mxu0 0.0
    %2529 = vmatpush1.msra.mxu0 0.0
    %2530 = vmatprep.subr.mxu0 0.0
    %2531 = vmatpush1.msra.mxu0 0.0
    %2532 = vmatprep.subr.mxu0 0.0
    %2533 = vmatpush1.msra.mxu0 0.0
    %2534 = vmatprep.subr.mxu0 0.0
    %2535 = vmatpush1.msra.mxu0 0.0
    %2536 = vmatprep.subr.mxu0 0.0
    %2537 = vmatpush1.msra.mxu0 0.0
    %2538 = vmatprep.subr.mxu0 0.0
    %2539 = vmatpush1.msra.mxu0 0.0
    %2540 = vmatprep.subr.mxu0 0.0
    %2541 = vmatpush1.msra.mxu0 0.0
    %2542 = vmatprep.subr.mxu0 %v99
    %2543 = vmatpush1.msra.mxu0 %v98
    %2544 = vmatprep.subr.mxu0 %v91
    %2545 = vmatpush1.msra.mxu0 %v90
    %2546 = vmatprep.subr.mxu0 %v83
    %2547 = vmatpush1.msra.mxu0 %v82
    %2548 = vmatprep.subr.mxu0 %v75
    %2549 = vmatpush1.msra.mxu0 %v74
    %2550 = vmatprep.subr.mxu0 0.0
    %2551 = vmatpush2.msra.mxu0 0.0
    %2552 = vmatprep.subr.mxu0 0.0
    %2553 = vmatpush2.msra.mxu0 0.0
    %2554 = vmatprep.subr.mxu0 0.0
    %2555 = vmatpush2.msra.mxu0 0.0
    %2556 = vmatprep.subr.mxu0 0.0
    %2557 = vmatpush2.msra.mxu0 0.0
    %2558 = vmatprep.subr.mxu0 0.0
    %2559 = vmatpush2.msra.mxu0 0.0
    %2560 = vmatprep.subr.mxu0 0.0
    %2561 = vmatpush2.msra.mxu0 0.0
    %2562 = vmatprep.subr.mxu0 0.0
    %2563 = vmatpush2.msra.mxu0 0.0
    %2564 = vmatprep.subr.mxu0 0.0
    %2565 = vmatpush2.msra.mxu0 0.0
    %2566 = vmatprep.subr.mxu0 0.0
    %2567 = vmatpush2.msra.mxu0 0.0
    %2568 = vmatprep.subr.mxu0 0.0
    %2569 = vmatpush2.msra.mxu0 0.0
    %2570 = vmatprep.subr.mxu0 0.0
    %2571 = vmatpush2.msra.mxu0 0.0
    %2572 = vmatprep.subr.mxu0 0.0
    %2573 = vmatpush2.msra.mxu0 0.0
    %2574 = vmatprep.subr.mxu0 0.0
    %2575 = vmatpush2.msra.mxu0 0.0
    %2576 = vmatprep.subr.mxu0 0.0
    %2577 = vmatpush2.msra.mxu0 0.0
    %2578 = vmatprep.subr.mxu0 0.0
    %2579 = vmatpush2.msra.mxu0 0.0
    %2580 = vmatprep.subr.mxu0 0.0
    %2581 = vmatpush2.msra.mxu0 0.0
    %2582 = vmatprep.mubr.f32.mxu0 0.0
    %2583 = vmatmul.mubr.f32.gmra.mxu0 %v2303
    %v2584 = vpop.f32.mrf.mxu0
    %v2585 = vadd.f32 0.0, %v2584
    %v2586 = vpop.f32.mrf.mxu0
    %v2587 = vadd.f32 0.0, %v2586
    %2588 = vdwg.mxu0
    %v2589 = vadd.f32 %v2372, %v655
    %v2590 = vadd.f32 %v2374, %v659
    %v2591 = vadd.f32 %v2443, %v663
    %v2592 = vadd.f32 %v2445, %v667
    %v2593 = vadd.f32 %v2589, %v2206
    %v2594 = vadd.f32 %v2590, %v2208
    %v2595 = vadd.f32 %v2591, %v2277
    %v2596 = vadd.f32 %v2592, %v2279
    %v2597 = vtanh.pop %v2593
    %v2598 = vtanh.pop %v2594
    %v2599 = vtanh.pop %v2595
    %v2600 = vtanh.pop %v2596
    %v2601 = vmul.f32 %v2597, %v335
    %v2602 = vmul.f32 %v2598, %v336
    %v2603 = vmul.f32 %v2599, %v337
    %v2604 = vmul.f32 %v2600, %v338
    %v2605 = vadd.f32 %v2601, %v339
    %v2606 = vadd.f32 %v2602, %v340
    %v2607 = vadd.f32 %v2603, %v341
    %v2608 = vadd.f32 %v2604, %v342
    %v2609 = vmul.f32 %v2606, %v2132
    %v2610 = vmul.f32 %v2605, %v2607
    %v2611 = vadd.f32 %v2609, %v2610
    %v2612 = vtanh.pop %v2611
    %v2613 = vmul.f32 %v2608, %v2612
    %2614 = vst [vmem:[#allocation2 + $0x8] sm:$0x3] %v2613
    %v2616 = vsel %vm698, %v2613, 0
    %2618 = vmatprep.subr.mxu0 0.0
    %2619 = vmatpush1.msra.mxu0 0.0
    %2620 = vmatprep.subr.mxu0 0.0
    %2621 = vmatpush1.msra.mxu0 0.0
    %2622 = vmatprep.subr.mxu0 0.0
    %2623 = vmatpush1.msra.mxu0 0.0
    %2624 = vmatprep.subr.mxu0 0.0
    %2625 = vmatpush1.msra.mxu0 0.0
    %2626 = vmatprep.subr.mxu0 0.0
    %2627 = vmatpush1.msra.mxu0 0.0
    %2628 = vmatprep.subr.mxu0 0.0
    %2629 = vmatpush1.msra.mxu0 0.0
    %2630 = vmatprep.subr.mxu0 0.0
    %2631 = vmatpush1.msra.mxu0 0.0
    %2632 = vmatprep.subr.mxu0 0.0
    %2633 = vmatpush1.msra.mxu0 0.0
    %2634 = vmatprep.subr.mxu0 %v129
    %2635 = vmatpush1.msra.mxu0 %v128
    %2636 = vmatprep.subr.mxu0 %v125
    %2637 = vmatpush1.msra.mxu0 %v124
    %2638 = vmatprep.subr.mxu0 %v121
    %2639 = vmatpush1.msra.mxu0 %v120
    %2640 = vmatprep.subr.mxu0 %v117
    %2641 = vmatpush1.msra.mxu0 %v116
    %2642 = vmatprep.subr.mxu0 %v113
    %2643 = vmatpush1.msra.mxu0 %v112
    %2644 = vmatprep.subr.mxu0 %v109
    %2645 = vmatpush1.msra.mxu0 %v108
    %2646 = vmatprep.subr.mxu0 %v105
    %2647 = vmatpush1.msra.mxu0 %v104
    %2648 = vmatprep.subr.mxu0 %v101
    %2649 = vmatpush1.msra.mxu0 %v100
    %2650 = vmatprep.subr.mxu0 0.0
    %2651 = vmatpush2.msra.mxu0 0.0
    %2652 = vmatprep.subr.mxu0 0.0
    %2653 = vmatpush2.msra.mxu0 0.0
    %2654 = vmatprep.subr.mxu0 0.0
    %2655 = vmatpush2.msra.mxu0 0.0
    %2656 = vmatprep.subr.mxu0 0.0
    %2657 = vmatpush2.msra.mxu0 0.0
    %2658 = vmatprep.subr.mxu0 0.0
    %2659 = vmatpush2.msra.mxu0 0.0
    %2660 = vmatprep.subr.mxu0 0.0
    %2661 = vmatpush2.msra.mxu0 0.0
    %2662 = vmatprep.subr.mxu0 0.0
    %2663 = vmatpush2.msra.mxu0 0.0
    %2664 = vmatprep.subr.mxu0 0.0
    %2665 = vmatpush2.msra.mxu0 0.0
    %2666 = vmatprep.subr.mxu0 0.0
    %2667 = vmatpush2.msra.mxu0 0.0
    %2668 = vmatprep.subr.mxu0 0.0
    %2669 = vmatpush2.msra.mxu0 0.0
    %2670 = vmatprep.subr.mxu0 0.0
    %2671 = vmatpush2.msra.mxu0 0.0
    %2672 = vmatprep.subr.mxu0 0.0
    %2673 = vmatpush2.msra.mxu0 0.0
    %2674 = vmatprep.subr.mxu0 0.0
    %2675 = vmatpush2.msra.mxu0 0.0
    %2676 = vmatprep.subr.mxu0 0.0
    %2677 = vmatpush2.msra.mxu0 0.0
    %2678 = vmatprep.subr.mxu0 0.0
    %2679 = vmatpush2.msra.mxu0 0.0
    %2680 = vmatprep.subr.mxu0 0.0
    %2681 = vmatpush2.msra.mxu0 0.0
    %2682 = vmatprep.mubr.f32.mxu0 0.0
    %2683 = vmatmul.mubr.f32.gmra.mxu0 %v2616
    %v2684 = vpop.f32.mrf.mxu0
    %v2685 = vadd.f32 0.0, %v2684
    %v2686 = vpop.f32.mrf.mxu0
    %v2687 = vadd.f32 0.0, %v2686
    %2688 = vdwg.mxu0
    %2689 = vmatprep.subr.mxu0 0.0
    %2690 = vmatpush1.msra.mxu0 0.0
    %2691 = vmatprep.subr.mxu0 0.0
    %2692 = vmatpush1.msra.mxu0 0.0
    %2693 = vmatprep.subr.mxu0 0.0
    %2694 = vmatpush1.msra.mxu0 0.0
    %2695 = vmatprep.subr.mxu0 0.0
    %2696 = vmatpush1.msra.mxu0 0.0
    %2697 = vmatprep.subr.mxu0 0.0
    %2698 = vmatpush1.msra.mxu0 0.0
    %2699 = vmatprep.subr.mxu0 0.0
    %2700 = vmatpush1.msra.mxu0 0.0
    %2701 = vmatprep.subr.mxu0 0.0
    %2702 = vmatpush1.msra.mxu0 0.0
    %2703 = vmatprep.subr.mxu0 0.0
    %2704 = vmatpush1.msra.mxu0 0.0
    %2705 = vmatprep.subr.mxu0 %v131
    %2706 = vmatpush1.msra.mxu0 %v130
    %2707 = vmatprep.subr.mxu0 %v127
    %2708 = vmatpush1.msra.mxu0 %v126
    %2709 = vmatprep.subr.mxu0 %v123
    %2710 = vmatpush1.msra.mxu0 %v122
    %2711 = vmatprep.subr.mxu0 %v119
    %2712 = vmatpush1.msra.mxu0 %v118
    %2713 = vmatprep.subr.mxu0 %v115
    %2714 = vmatpush1.msra.mxu0 %v114
    %2715 = vmatprep.subr.mxu0 %v111
    %2716 = vmatpush1.msra.mxu0 %v110
    %2717 = vmatprep.subr.mxu0 %v107
    %2718 = vmatpush1.msra.mxu0 %v106
    %2719 = vmatprep.subr.mxu0 %v103
    %2720 = vmatpush1.msra.mxu0 %v102
    %2721 = vmatprep.subr.mxu0 0.0
    %2722 = vmatpush2.msra.mxu0 0.0
    %2723 = vmatprep.subr.mxu0 0.0
    %2724 = vmatpush2.msra.mxu0 0.0
    %2725 = vmatprep.subr.mxu0 0.0
    %2726 = vmatpush2.msra.mxu0 0.0
    %2727 = vmatprep.subr.mxu0 0.0
    %2728 = vmatpush2.msra.mxu0 0.0
    %2729 = vmatprep.subr.mxu0 0.0
    %2730 = vmatpush2.msra.mxu0 0.0
    %2731 = vmatprep.subr.mxu0 0.0
    %2732 = vmatpush2.msra.mxu0 0.0
    %2733 = vmatprep.subr.mxu0 0.0
    %2734 = vmatpush2.msra.mxu0 0.0
    %2735 = vmatprep.subr.mxu0 0.0
    %2736 = vmatpush2.msra.mxu0 0.0
    %2737 = vmatprep.subr.mxu0 0.0
    %2738 = vmatpush2.msra.mxu0 0.0
    %2739 = vmatprep.subr.mxu0 0.0
    %2740 = vmatpush2.msra.mxu0 0.0
    %2741 = vmatprep.subr.mxu0 0.0
    %2742 = vmatpush2.msra.mxu0 0.0
    %2743 = vmatprep.subr.mxu0 0.0
    %2744 = vmatpush2.msra.mxu0 0.0
    %2745 = vmatprep.subr.mxu0 0.0
    %2746 = vmatpush2.msra.mxu0 0.0
    %2747 = vmatprep.subr.mxu0 0.0
    %2748 = vmatpush2.msra.mxu0 0.0
    %2749 = vmatprep.subr.mxu0 0.0
    %2750 = vmatpush2.msra.mxu0 0.0
    %2751 = vmatprep.subr.mxu0 0.0
    %2752 = vmatpush2.msra.mxu0 0.0
    %2753 = vmatprep.mubr.f32.mxu0 0.0
    %2754 = vmatmul.mubr.f32.gmra.mxu0 %v2616
    %v2755 = vpop.f32.mrf.mxu0
    %v2756 = vadd.f32 0.0, %v2755
    %v2757 = vpop.f32.mrf.mxu0
    %v2758 = vadd.f32 0.0, %v2757
    %2759 = vdwg.mxu0
    %v2760 = vadd.f32 %v243, %v2514
    %v2761 = vadd.f32 %v245, %v2516
    %v2762 = vadd.f32 %v314, %v2585
    %v2763 = vadd.f32 %v316, %v2587
    %v2764 = vtanh.pop %v2760
    %v2765 = vtanh.pop %v2761
    %v2766 = vtanh.pop %v2762
    %v2767 = vtanh.pop %v2763
    %v2768 = vmul.f32 %v2764, %v335
    %v2769 = vmul.f32 %v2765, %v336
    %v2770 = vmul.f32 %v2766, %v337
    %v2771 = vmul.f32 %v2767, %v338
    %v2772 = vadd.f32 %v2768, %v339
    %v2773 = vadd.f32 %v2769, %v340
    %v2774 = vadd.f32 %v2770, %v341
    %v2775 = vadd.f32 %v2771, %v342
    %v2776 = vmul.f32 %v2773, %v2299
    %v2777 = vmul.f32 %v2772, %v2774
    %v2778 = vadd.f32 %v2776, %v2777
    %v2779 = vtanh.pop %v2778
    %v2780 = vmul.f32 %v2775, %v2779
    %v2782 = vsel %vm172, %v2780, 0
    %2784 = vmatprep.subr.mxu0 0.0
    %2785 = vmatpush1.msra.mxu0 0.0
    %2786 = vmatprep.subr.mxu0 0.0
    %2787 = vmatpush1.msra.mxu0 0.0
    %2788 = vmatprep.subr.mxu0 0.0
    %2789 = vmatpush1.msra.mxu0 0.0
    %2790 = vmatprep.subr.mxu0 0.0
    %2791 = vmatpush1.msra.mxu0 0.0
    %2792 = vmatprep.subr.mxu0 0.0
    %2793 = vmatpush1.msra.mxu0 0.0
    %2794 = vmatprep.subr.mxu0 0.0
    %2795 = vmatpush1.msra.mxu0 0.0
    %2796 = vmatprep.subr.mxu0 0.0
    %2797 = vmatpush1.msra.mxu0 0.0
    %2798 = vmatprep.subr.mxu0 0.0
    %2799 = vmatpush1.msra.mxu0 0.0
    %2800 = vmatprep.subr.mxu0 0.0
    %2801 = vmatpush1.msra.mxu0 0.0
    %2802 = vmatprep.subr.mxu0 0.0
    %2803 = vmatpush1.msra.mxu0 0.0
    %2804 = vmatprep.subr.mxu0 0.0
    %2805 = vmatpush1.msra.mxu0 0.0
    %2806 = vmatprep.subr.mxu0 0.0
    %2807 = vmatpush1.msra.mxu0 0.0
    %2808 = vmatprep.subr.mxu0 %v93
    %2809 = vmatpush1.msra.mxu0 %v92
    %2810 = vmatprep.subr.mxu0 %v85
    %2811 = vmatpush1.msra.mxu0 %v84
    %2812 = vmatprep.subr.mxu0 %v77
    %2813 = vmatpush1.msra.mxu0 %v76
    %2814 = vmatprep.subr.mxu0 %v69
    %2815 = vmatpush1.msra.mxu0 %v68
    %2816 = vmatprep.subr.mxu0 0.0
    %2817 = vmatpush2.msra.mxu0 0.0
    %2818 = vmatprep.subr.mxu0 0.0
    %2819 = vmatpush2.msra.mxu0 0.0
    %2820 = vmatprep.subr.mxu0 0.0
    %2821 = vmatpush2.msra.mxu0 0.0
    %2822 = vmatprep.subr.mxu0 0.0
    %2823 = vmatpush2.msra.mxu0 0.0
    %2824 = vmatprep.subr.mxu0 0.0
    %2825 = vmatpush2.msra.mxu0 0.0
    %2826 = vmatprep.subr.mxu0 0.0
    %2827 = vmatpush2.msra.mxu0 0.0
    %2828 = vmatprep.subr.mxu0 0.0
    %2829 = vmatpush2.msra.mxu0 0.0
    %2830 = vmatprep.subr.mxu0 0.0
    %2831 = vmatpush2.msra.mxu0 0.0
    %2832 = vmatprep.subr.mxu0 0.0
    %2833 = vmatpush2.msra.mxu0 0.0
    %2834 = vmatprep.subr.mxu0 0.0
    %2835 = vmatpush2.msra.mxu0 0.0
    %2836 = vmatprep.subr.mxu0 0.0
    %2837 = vmatpush2.msra.mxu0 0.0
    %2838 = vmatprep.subr.mxu0 0.0
    %2839 = vmatpush2.msra.mxu0 0.0
    %2840 = vmatprep.subr.mxu0 0.0
    %2841 = vmatpush2.msra.mxu0 0.0
    %2842 = vmatprep.subr.mxu0 0.0
    %2843 = vmatpush2.msra.mxu0 0.0
    %2844 = vmatprep.subr.mxu0 0.0
    %2845 = vmatpush2.msra.mxu0 0.0
    %2846 = vmatprep.subr.mxu0 0.0
    %2847 = vmatpush2.msra.mxu0 0.0
    %2848 = vmatprep.mubr.f32.mxu0 0.0
    %2849 = vmatmul.mubr.f32.gmra.mxu0 %v2782
    %v2850 = vpop.f32.mrf.mxu0
    %v2851 = vadd.f32 0.0, %v2850
    %v2852 = vpop.f32.mrf.mxu0
    %v2853 = vadd.f32 0.0, %v2852
    %2854 = vdwg.mxu0
    %2855 = vmatprep.subr.mxu0 0.0
    %2856 = vmatpush1.msra.mxu0 0.0
    %2857 = vmatprep.subr.mxu0 0.0
    %2858 = vmatpush1.msra.mxu0 0.0
    %2859 = vmatprep.subr.mxu0 0.0
    %2860 = vmatpush1.msra.mxu0 0.0
    %2861 = vmatprep.subr.mxu0 0.0
    %2862 = vmatpush1.msra.mxu0 0.0
    %2863 = vmatprep.subr.mxu0 0.0
    %2864 = vmatpush1.msra.mxu0 0.0
    %2865 = vmatprep.subr.mxu0 0.0
    %2866 = vmatpush1.msra.mxu0 0.0
    %2867 = vmatprep.subr.mxu0 0.0
    %2868 = vmatpush1.msra.mxu0 0.0
    %2869 = vmatprep.subr.mxu0 0.0
    %2870 = vmatpush1.msra.mxu0 0.0
    %2871 = vmatprep.subr.mxu0 0.0
    %2872 = vmatpush1.msra.mxu0 0.0
    %2873 = vmatprep.subr.mxu0 0.0
    %2874 = vmatpush1.msra.mxu0 0.0
    %2875 = vmatprep.subr.mxu0 0.0
    %2876 = vmatpush1.msra.mxu0 0.0
    %2877 = vmatprep.subr.mxu0 0.0
    %2878 = vmatpush1.msra.mxu0 0.0
    %2879 = vmatprep.subr.mxu0 %v95
    %2880 = vmatpush1.msra.mxu0 %v94
    %2881 = vmatprep.subr.mxu0 %v87
    %2882 = vmatpush1.msra.mxu0 %v86
    %2883 = vmatprep.subr.mxu0 %v79
    %2884 = vmatpush1.msra.mxu0 %v78
    %2885 = vmatprep.subr.mxu0 %v71
    %2886 = vmatpush1.msra.mxu0 %v70
    %2887 = vmatprep.subr.mxu0 0.0
    %2888 = vmatpush2.msra.mxu0 0.0
    %2889 = vmatprep.subr.mxu0 0.0
    %2890 = vmatpush2.msra.mxu0 0.0
    %2891 = vmatprep.subr.mxu0 0.0
    %2892 = vmatpush2.msra.mxu0 0.0
    %2893 = vmatprep.subr.mxu0 0.0
    %2894 = vmatpush2.msra.mxu0 0.0
    %2895 = vmatprep.subr.mxu0 0.0
    %2896 = vmatpush2.msra.mxu0 0.0
    %2897 = vmatprep.subr.mxu0 0.0
    %2898 = vmatpush2.msra.mxu0 0.0
    %2899 = vmatprep.subr.mxu0 0.0
    %2900 = vmatpush2.msra.mxu0 0.0
    %2901 = vmatprep.subr.mxu0 0.0
    %2902 = vmatpush2.msra.mxu0 0.0
    %2903 = vmatprep.subr.mxu0 0.0
    %2904 = vmatpush2.msra.mxu0 0.0
    %2905 = vmatprep.subr.mxu0 0.0
    %2906 = vmatpush2.msra.mxu0 0.0
    %2907 = vmatprep.subr.mxu0 0.0
    %2908 = vmatpush2.msra.mxu0 0.0
    %2909 = vmatprep.subr.mxu0 0.0
    %2910 = vmatpush2.msra.mxu0 0.0
    %2911 = vmatprep.subr.mxu0 0.0
    %2912 = vmatpush2.msra.mxu0 0.0
    %2913 = vmatprep.subr.mxu0 0.0
    %2914 = vmatpush2.msra.mxu0 0.0
    %2915 = vmatprep.subr.mxu0 0.0
    %2916 = vmatpush2.msra.mxu0 0.0
    %2917 = vmatprep.subr.mxu0 0.0
    %2918 = vmatpush2.msra.mxu0 0.0
    %2919 = vmatprep.mubr.f32.mxu0 0.0
    %2920 = vmatmul.mubr.f32.gmra.mxu0 %v2782
    %v2921 = vpop.f32.mrf.mxu0
    %v2922 = vadd.f32 0.0, %v2921
    %v2923 = vpop.f32.mrf.mxu0
    %v2924 = vadd.f32 0.0, %v2923
    %2925 = vdwg.mxu0
    %2926 = vmatprep.subr.mxu0 0.0
    %2927 = vmatpush1.msra.mxu0 0.0
    %2928 = vmatprep.subr.mxu0 0.0
    %2929 = vmatpush1.msra.mxu0 0.0
    %2930 = vmatprep.subr.mxu0 0.0
    %2931 = vmatpush1.msra.mxu0 0.0
    %2932 = vmatprep.subr.mxu0 0.0
    %2933 = vmatpush1.msra.mxu0 0.0
    %2934 = vmatprep.subr.mxu0 0.0
    %2935 = vmatpush1.msra.mxu0 0.0
    %2936 = vmatprep.subr.mxu0 0.0
    %2937 = vmatpush1.msra.mxu0 0.0
    %2938 = vmatprep.subr.mxu0 0.0
    %2939 = vmatpush1.msra.mxu0 0.0
    %2940 = vmatprep.subr.mxu0 0.0
    %2941 = vmatpush1.msra.mxu0 0.0
    %2942 = vmatprep.subr.mxu0 0.0
    %2943 = vmatpush1.msra.mxu0 0.0
    %2944 = vmatprep.subr.mxu0 0.0
    %2945 = vmatpush1.msra.mxu0 0.0
    %2946 = vmatprep.subr.mxu0 0.0
    %2947 = vmatpush1.msra.mxu0 0.0
    %2948 = vmatprep.subr.mxu0 0.0
    %2949 = vmatpush1.msra.mxu0 0.0
    %2950 = vmatprep.subr.mxu0 %v97
    %2951 = vmatpush1.msra.mxu0 %v96
    %2952 = vmatprep.subr.mxu0 %v89
    %2953 = vmatpush1.msra.mxu0 %v88
    %2954 = vmatprep.subr.mxu0 %v81
    %2955 = vmatpush1.msra.mxu0 %v80
    %2956 = vmatprep.subr.mxu0 %v73
    %2957 = vmatpush1.msra.mxu0 %v72
    %2958 = vmatprep.subr.mxu0 0.0
    %2959 = vmatpush2.msra.mxu0 0.0
    %2960 = vmatprep.subr.mxu0 0.0
    %2961 = vmatpush2.msra.mxu0 0.0
    %2962 = vmatprep.subr.mxu0 0.0
    %2963 = vmatpush2.msra.mxu0 0.0
    %2964 = vmatprep.subr.mxu0 0.0
    %2965 = vmatpush2.msra.mxu0 0.0
    %2966 = vmatprep.subr.mxu0 0.0
    %2967 = vmatpush2.msra.mxu0 0.0
    %2968 = vmatprep.subr.mxu0 0.0
    %2969 = vmatpush2.msra.mxu0 0.0
    %2970 = vmatprep.subr.mxu0 0.0
    %2971 = vmatpush2.msra.mxu0 0.0
    %2972 = vmatprep.subr.mxu0 0.0
    %2973 = vmatpush2.msra.mxu0 0.0
    %2974 = vmatprep.subr.mxu0 0.0
    %2975 = vmatpush2.msra.mxu0 0.0
    %2976 = vmatprep.subr.mxu0 0.0
    %2977 = vmatpush2.msra.mxu0 0.0
    %2978 = vmatprep.subr.mxu0 0.0
    %2979 = vmatpush2.msra.mxu0 0.0
    %2980 = vmatprep.subr.mxu0 0.0
    %2981 = vmatpush2.msra.mxu0 0.0
    %2982 = vmatprep.subr.mxu0 0.0
    %2983 = vmatpush2.msra.mxu0 0.0
    %2984 = vmatprep.subr.mxu0 0.0
    %2985 = vmatpush2.msra.mxu0 0.0
    %2986 = vmatprep.subr.mxu0 0.0
    %2987 = vmatpush2.msra.mxu0 0.0
    %2988 = vmatprep.subr.mxu0 0.0
    %2989 = vmatpush2.msra.mxu0 0.0
    %2990 = vmatprep.mubr.f32.mxu0 0.0
    %2991 = vmatmul.mubr.f32.gmra.mxu0 %v2782
    %v2992 = vpop.f32.mrf.mxu0
    %v2993 = vadd.f32 0.0, %v2992
    %v2994 = vpop.f32.mrf.mxu0
    %v2995 = vadd.f32 0.0, %v2994
    %2996 = vdwg.mxu0
    %2997 = vmatprep.subr.mxu0 0.0
    %2998 = vmatpush1.msra.mxu0 0.0
    %2999 = vmatprep.subr.mxu0 0.0
    %3000 = vmatpush1.msra.mxu0 0.0
    %3001 = vmatprep.subr.mxu0 0.0
    %3002 = vmatpush1.msra.mxu0 0.0
    %3003 = vmatprep.subr.mxu0 0.0
    %3004 = vmatpush1.msra.mxu0 0.0
    %3005 = vmatprep.subr.mxu0 0.0
    %3006 = vmatpush1.msra.mxu0 0.0
    %3007 = vmatprep.subr.mxu0 0.0
    %3008 = vmatpush1.msra.mxu0 0.0
    %3009 = vmatprep.subr.mxu0 0.0
    %3010 = vmatpush1.msra.mxu0 0.0
    %3011 = vmatprep.subr.mxu0 0.0
    %3012 = vmatpush1.msra.mxu0 0.0
    %3013 = vmatprep.subr.mxu0 0.0
    %3014 = vmatpush1.msra.mxu0 0.0
    %3015 = vmatprep.subr.mxu0 0.0
    %3016 = vmatpush1.msra.mxu0 0.0
    %3017 = vmatprep.subr.mxu0 0.0
    %3018 = vmatpush1.msra.mxu0 0.0
    %3019 = vmatprep.subr.mxu0 0.0
    %3020 = vmatpush1.msra.mxu0 0.0
    %3021 = vmatprep.subr.mxu0 %v99
    %3022 = vmatpush1.msra.mxu0 %v98
    %3023 = vmatprep.subr.mxu0 %v91
    %3024 = vmatpush1.msra.mxu0 %v90
    %3025 = vmatprep.subr.mxu0 %v83
    %3026 = vmatpush1.msra.mxu0 %v82
    %3027 = vmatprep.subr.mxu0 %v75
    %3028 = vmatpush1.msra.mxu0 %v74
    %3029 = vmatprep.subr.mxu0 0.0
    %3030 = vmatpush2.msra.mxu0 0.0
    %3031 = vmatprep.subr.mxu0 0.0
    %3032 = vmatpush2.msra.mxu0 0.0
    %3033 = vmatprep.subr.mxu0 0.0
    %3034 = vmatpush2.msra.mxu0 0.0
    %3035 = vmatprep.subr.mxu0 0.0
    %3036 = vmatpush2.msra.mxu0 0.0
    %3037 = vmatprep.subr.mxu0 0.0
    %3038 = vmatpush2.msra.mxu0 0.0
    %3039 = vmatprep.subr.mxu0 0.0
    %3040 = vmatpush2.msra.mxu0 0.0
    %3041 = vmatprep.subr.mxu0 0.0
    %3042 = vmatpush2.msra.mxu0 0.0
    %3043 = vmatprep.subr.mxu0 0.0
    %3044 = vmatpush2.msra.mxu0 0.0
    %3045 = vmatprep.subr.mxu0 0.0
    %3046 = vmatpush2.msra.mxu0 0.0
    %3047 = vmatprep.subr.mxu0 0.0
    %3048 = vmatpush2.msra.mxu0 0.0
    %3049 = vmatprep.subr.mxu0 0.0
    %3050 = vmatpush2.msra.mxu0 0.0
    %3051 = vmatprep.subr.mxu0 0.0
    %3052 = vmatpush2.msra.mxu0 0.0
    %3053 = vmatprep.subr.mxu0 0.0
    %3054 = vmatpush2.msra.mxu0 0.0
    %3055 = vmatprep.subr.mxu0 0.0
    %3056 = vmatpush2.msra.mxu0 0.0
    %3057 = vmatprep.subr.mxu0 0.0
    %3058 = vmatpush2.msra.mxu0 0.0
    %3059 = vmatprep.subr.mxu0 0.0
    %3060 = vmatpush2.msra.mxu0 0.0
    %3061 = vmatprep.mubr.f32.mxu0 0.0
    %3062 = vmatmul.mubr.f32.gmra.mxu0 %v2782
    %v3063 = vpop.f32.mrf.mxu0
    %v3064 = vadd.f32 0.0, %v3063
    %v3065 = vpop.f32.mrf.mxu0
    %v3066 = vadd.f32 0.0, %v3065
    %3067 = vdwg.mxu0
    %v3068 = vadd.f32 %v2851, %v655
    %v3069 = vadd.f32 %v2853, %v659
    %v3070 = vadd.f32 %v2922, %v663
    %v3071 = vadd.f32 %v2924, %v667
    %v3072 = vadd.f32 %v3068, %v2685
    %v3073 = vadd.f32 %v3069, %v2687
    %v3074 = vadd.f32 %v3070, %v2756
    %v3075 = vadd.f32 %v3071, %v2758
    %v3076 = vtanh.pop %v3072
    %v3077 = vtanh.pop %v3073
    %v3078 = vtanh.pop %v3074
    %v3079 = vtanh.pop %v3075
    %v3080 = vmul.f32 %v3076, %v335
    %v3081 = vmul.f32 %v3077, %v336
    %v3082 = vmul.f32 %v3078, %v337
    %v3083 = vmul.f32 %v3079, %v338
    %v3084 = vadd.f32 %v3080, %v339
    %v3085 = vadd.f32 %v3081, %v340
    %v3086 = vadd.f32 %v3082, %v341
    %v3087 = vadd.f32 %v3083, %v342
    %v3088 = vmul.f32 %v3085, %v2611
    %v3089 = vmul.f32 %v3084, %v3086
    %v3090 = vadd.f32 %v3088, %v3089
    %v3091 = vtanh.pop %v3090
    %v3092 = vmul.f32 %v3087, %v3091
    %3093 = vst [vmem:[#allocation2 + $0xa] sm:$0x3] %v3092
    %v3095 = vsel %vm698, %v3092, 0
    %3097 = vmatprep.subr.mxu0 0.0
    %3098 = vmatpush1.msra.mxu0 0.0
    %3099 = vmatprep.subr.mxu0 0.0
    %3100 = vmatpush1.msra.mxu0 0.0
    %3101 = vmatprep.subr.mxu0 0.0
    %3102 = vmatpush1.msra.mxu0 0.0
    %3103 = vmatprep.subr.mxu0 0.0
    %3104 = vmatpush1.msra.mxu0 0.0
    %3105 = vmatprep.subr.mxu0 0.0
    %3106 = vmatpush1.msra.mxu0 0.0
    %3107 = vmatprep.subr.mxu0 0.0
    %3108 = vmatpush1.msra.mxu0 0.0
    %3109 = vmatprep.subr.mxu0 0.0
    %3110 = vmatpush1.msra.mxu0 0.0
    %3111 = vmatprep.subr.mxu0 0.0
    %3112 = vmatpush1.msra.mxu0 0.0
    %3113 = vmatprep.subr.mxu0 %v129
    %3114 = vmatpush1.msra.mxu0 %v128
    %3115 = vmatprep.subr.mxu0 %v125
    %3116 = vmatpush1.msra.mxu0 %v124
    %3117 = vmatprep.subr.mxu0 %v121
    %3118 = vmatpush1.msra.mxu0 %v120
    %3119 = vmatprep.subr.mxu0 %v117
    %3120 = vmatpush1.msra.mxu0 %v116
    %3121 = vmatprep.subr.mxu0 %v113
    %3122 = vmatpush1.msra.mxu0 %v112
    %3123 = vmatprep.subr.mxu0 %v109
    %3124 = vmatpush1.msra.mxu0 %v108
    %3125 = vmatprep.subr.mxu0 %v105
    %3126 = vmatpush1.msra.mxu0 %v104
    %3127 = vmatprep.subr.mxu0 %v101
    %3128 = vmatpush1.msra.mxu0 %v100
    %3129 = vmatprep.subr.mxu0 0.0
    %3130 = vmatpush2.msra.mxu0 0.0
    %3131 = vmatprep.subr.mxu0 0.0
    %3132 = vmatpush2.msra.mxu0 0.0
    %3133 = vmatprep.subr.mxu0 0.0
    %3134 = vmatpush2.msra.mxu0 0.0
    %3135 = vmatprep.subr.mxu0 0.0
    %3136 = vmatpush2.msra.mxu0 0.0
    %3137 = vmatprep.subr.mxu0 0.0
    %3138 = vmatpush2.msra.mxu0 0.0
    %3139 = vmatprep.subr.mxu0 0.0
    %3140 = vmatpush2.msra.mxu0 0.0
    %3141 = vmatprep.subr.mxu0 0.0
    %3142 = vmatpush2.msra.mxu0 0.0
    %3143 = vmatprep.subr.mxu0 0.0
    %3144 = vmatpush2.msra.mxu0 0.0
    %3145 = vmatprep.subr.mxu0 0.0
    %3146 = vmatpush2.msra.mxu0 0.0
    %3147 = vmatprep.subr.mxu0 0.0
    %3148 = vmatpush2.msra.mxu0 0.0
    %3149 = vmatprep.subr.mxu0 0.0
    %3150 = vmatpush2.msra.mxu0 0.0
    %3151 = vmatprep.subr.mxu0 0.0
    %3152 = vmatpush2.msra.mxu0 0.0
    %3153 = vmatprep.subr.mxu0 0.0
    %3154 = vmatpush2.msra.mxu0 0.0
    %3155 = vmatprep.subr.mxu0 0.0
    %3156 = vmatpush2.msra.mxu0 0.0
    %3157 = vmatprep.subr.mxu0 0.0
    %3158 = vmatpush2.msra.mxu0 0.0
    %3159 = vmatprep.subr.mxu0 0.0
    %3160 = vmatpush2.msra.mxu0 0.0
    %3161 = vmatprep.mubr.f32.mxu0 0.0
    %3162 = vmatmul.mubr.f32.gmra.mxu0 %v3095
    %v3163 = vpop.f32.mrf.mxu0
    %v3164 = vadd.f32 0.0, %v3163
    %v3165 = vpop.f32.mrf.mxu0
    %v3166 = vadd.f32 0.0, %v3165
    %3167 = vdwg.mxu0
    %3168 = vmatprep.subr.mxu0 0.0
    %3169 = vmatpush1.msra.mxu0 0.0
    %3170 = vmatprep.subr.mxu0 0.0
    %3171 = vmatpush1.msra.mxu0 0.0
    %3172 = vmatprep.subr.mxu0 0.0
    %3173 = vmatpush1.msra.mxu0 0.0
    %3174 = vmatprep.subr.mxu0 0.0
    %3175 = vmatpush1.msra.mxu0 0.0
    %3176 = vmatprep.subr.mxu0 0.0
    %3177 = vmatpush1.msra.mxu0 0.0
    %3178 = vmatprep.subr.mxu0 0.0
    %3179 = vmatpush1.msra.mxu0 0.0
    %3180 = vmatprep.subr.mxu0 0.0
    %3181 = vmatpush1.msra.mxu0 0.0
    %3182 = vmatprep.subr.mxu0 0.0
    %3183 = vmatpush1.msra.mxu0 0.0
    %3184 = vmatprep.subr.mxu0 %v131
    %3185 = vmatpush1.msra.mxu0 %v130
    %3186 = vmatprep.subr.mxu0 %v127
    %3187 = vmatpush1.msra.mxu0 %v126
    %3188 = vmatprep.subr.mxu0 %v123
    %3189 = vmatpush1.msra.mxu0 %v122
    %3190 = vmatprep.subr.mxu0 %v119
    %3191 = vmatpush1.msra.mxu0 %v118
    %3192 = vmatprep.subr.mxu0 %v115
    %3193 = vmatpush1.msra.mxu0 %v114
    %3194 = vmatprep.subr.mxu0 %v111
    %3195 = vmatpush1.msra.mxu0 %v110
    %3196 = vmatprep.subr.mxu0 %v107
    %3197 = vmatpush1.msra.mxu0 %v106
    %3198 = vmatprep.subr.mxu0 %v103
    %3199 = vmatpush1.msra.mxu0 %v102
    %3200 = vmatprep.subr.mxu0 0.0
    %3201 = vmatpush2.msra.mxu0 0.0
    %3202 = vmatprep.subr.mxu0 0.0
    %3203 = vmatpush2.msra.mxu0 0.0
    %3204 = vmatprep.subr.mxu0 0.0
    %3205 = vmatpush2.msra.mxu0 0.0
    %3206 = vmatprep.subr.mxu0 0.0
    %3207 = vmatpush2.msra.mxu0 0.0
    %3208 = vmatprep.subr.mxu0 0.0
    %3209 = vmatpush2.msra.mxu0 0.0
    %3210 = vmatprep.subr.mxu0 0.0
    %3211 = vmatpush2.msra.mxu0 0.0
    %3212 = vmatprep.subr.mxu0 0.0
    %3213 = vmatpush2.msra.mxu0 0.0
    %3214 = vmatprep.subr.mxu0 0.0
    %3215 = vmatpush2.msra.mxu0 0.0
    %3216 = vmatprep.subr.mxu0 0.0
    %3217 = vmatpush2.msra.mxu0 0.0
    %3218 = vmatprep.subr.mxu0 0.0
    %3219 = vmatpush2.msra.mxu0 0.0
    %3220 = vmatprep.subr.mxu0 0.0
    %3221 = vmatpush2.msra.mxu0 0.0
    %3222 = vmatprep.subr.mxu0 0.0
    %3223 = vmatpush2.msra.mxu0 0.0
    %3224 = vmatprep.subr.mxu0 0.0
    %3225 = vmatpush2.msra.mxu0 0.0
    %3226 = vmatprep.subr.mxu0 0.0
    %3227 = vmatpush2.msra.mxu0 0.0
    %3228 = vmatprep.subr.mxu0 0.0
    %3229 = vmatpush2.msra.mxu0 0.0
    %3230 = vmatprep.subr.mxu0 0.0
    %3231 = vmatpush2.msra.mxu0 0.0
    %3232 = vmatprep.mubr.f32.mxu0 0.0
    %3233 = vmatmul.mubr.f32.gmra.mxu0 %v3095
    %v3234 = vpop.f32.mrf.mxu0
    %v3235 = vadd.f32 0.0, %v3234
    %v3236 = vpop.f32.mrf.mxu0
    %v3237 = vadd.f32 0.0, %v3236
    %3238 = vdwg.mxu0
    %v3239 = vadd.f32 %v243, %v2993
    %v3240 = vadd.f32 %v245, %v2995
    %v3241 = vadd.f32 %v314, %v3064
    %v3242 = vadd.f32 %v316, %v3066
    %v3243 = vtanh.pop %v3239
    %v3244 = vtanh.pop %v3240
    %v3245 = vtanh.pop %v3241
    %v3246 = vtanh.pop %v3242
    %v3247 = vmul.f32 %v3243, %v335
    %v3248 = vmul.f32 %v3244, %v336
    %v3249 = vmul.f32 %v3245, %v337
    %v3250 = vmul.f32 %v3246, %v338
    %v3251 = vadd.f32 %v3247, %v339
    %v3252 = vadd.f32 %v3248, %v340
    %v3253 = vadd.f32 %v3249, %v341
    %v3254 = vadd.f32 %v3250, %v342
    %v3255 = vmul.f32 %v3252, %v2778
    %v3256 = vmul.f32 %v3251, %v3253
    %v3257 = vadd.f32 %v3255, %v3256
    %v3258 = vtanh.pop %v3257
    %v3259 = vmul.f32 %v3254, %v3258
    %v3261 = vsel %vm172, %v3259, 0
    %3263 = vmatprep.subr.mxu0 0.0
    %3264 = vmatpush1.msra.mxu0 0.0
    %3265 = vmatprep.subr.mxu0 0.0
    %3266 = vmatpush1.msra.mxu0 0.0
    %3267 = vmatprep.subr.mxu0 0.0
    %3268 = vmatpush1.msra.mxu0 0.0
    %3269 = vmatprep.subr.mxu0 0.0
    %3270 = vmatpush1.msra.mxu0 0.0
    %3271 = vmatprep.subr.mxu0 0.0
    %3272 = vmatpush1.msra.mxu0 0.0
    %3273 = vmatprep.subr.mxu0 0.0
    %3274 = vmatpush1.msra.mxu0 0.0
    %3275 = vmatprep.subr.mxu0 0.0
    %3276 = vmatpush1.msra.mxu0 0.0
    %3277 = vmatprep.subr.mxu0 0.0
    %3278 = vmatpush1.msra.mxu0 0.0
    %3279 = vmatprep.subr.mxu0 0.0
    %3280 = vmatpush1.msra.mxu0 0.0
    %3281 = vmatprep.subr.mxu0 0.0
    %3282 = vmatpush1.msra.mxu0 0.0
    %3283 = vmatprep.subr.mxu0 0.0
    %3284 = vmatpush1.msra.mxu0 0.0
    %3285 = vmatprep.subr.mxu0 0.0
    %3286 = vmatpush1.msra.mxu0 0.0
    %3287 = vmatprep.subr.mxu0 %v93
    %3288 = vmatpush1.msra.mxu0 %v92
    %3289 = vmatprep.subr.mxu0 %v85
    %3290 = vmatpush1.msra.mxu0 %v84
    %3291 = vmatprep.subr.mxu0 %v77
    %3292 = vmatpush1.msra.mxu0 %v76
    %3293 = vmatprep.subr.mxu0 %v69
    %3294 = vmatpush1.msra.mxu0 %v68
    %3295 = vmatprep.subr.mxu0 0.0
    %3296 = vmatpush2.msra.mxu0 0.0
    %3297 = vmatprep.subr.mxu0 0.0
    %3298 = vmatpush2.msra.mxu0 0.0
    %3299 = vmatprep.subr.mxu0 0.0
    %3300 = vmatpush2.msra.mxu0 0.0
    %3301 = vmatprep.subr.mxu0 0.0
    %3302 = vmatpush2.msra.mxu0 0.0
    %3303 = vmatprep.subr.mxu0 0.0
    %3304 = vmatpush2.msra.mxu0 0.0
    %3305 = vmatprep.subr.mxu0 0.0
    %3306 = vmatpush2.msra.mxu0 0.0
    %3307 = vmatprep.subr.mxu0 0.0
    %3308 = vmatpush2.msra.mxu0 0.0
    %3309 = vmatprep.subr.mxu0 0.0
    %3310 = vmatpush2.msra.mxu0 0.0
    %3311 = vmatprep.subr.mxu0 0.0
    %3312 = vmatpush2.msra.mxu0 0.0
    %3313 = vmatprep.subr.mxu0 0.0
    %3314 = vmatpush2.msra.mxu0 0.0
    %3315 = vmatprep.subr.mxu0 0.0
    %3316 = vmatpush2.msra.mxu0 0.0
    %3317 = vmatprep.subr.mxu0 0.0
    %3318 = vmatpush2.msra.mxu0 0.0
    %3319 = vmatprep.subr.mxu0 0.0
    %3320 = vmatpush2.msra.mxu0 0.0
    %3321 = vmatprep.subr.mxu0 0.0
    %3322 = vmatpush2.msra.mxu0 0.0
    %3323 = vmatprep.subr.mxu0 0.0
    %3324 = vmatpush2.msra.mxu0 0.0
    %3325 = vmatprep.subr.mxu0 0.0
    %3326 = vmatpush2.msra.mxu0 0.0
    %3327 = vmatprep.mubr.f32.mxu0 0.0
    %3328 = vmatmul.mubr.f32.gmra.mxu0 %v3261
    %v3329 = vpop.f32.mrf.mxu0
    %v3330 = vadd.f32 0.0, %v3329
    %v3331 = vpop.f32.mrf.mxu0
    %v3332 = vadd.f32 0.0, %v3331
    %3333 = vdwg.mxu0
    %3334 = vmatprep.subr.mxu0 0.0
    %3335 = vmatpush1.msra.mxu0 0.0
    %3336 = vmatprep.subr.mxu0 0.0
    %3337 = vmatpush1.msra.mxu0 0.0
    %3338 = vmatprep.subr.mxu0 0.0
    %3339 = vmatpush1.msra.mxu0 0.0
    %3340 = vmatprep.subr.mxu0 0.0
    %3341 = vmatpush1.msra.mxu0 0.0
    %3342 = vmatprep.subr.mxu0 0.0
    %3343 = vmatpush1.msra.mxu0 0.0
    %3344 = vmatprep.subr.mxu0 0.0
    %3345 = vmatpush1.msra.mxu0 0.0
    %3346 = vmatprep.subr.mxu0 0.0
    %3347 = vmatpush1.msra.mxu0 0.0
    %3348 = vmatprep.subr.mxu0 0.0
    %3349 = vmatpush1.msra.mxu0 0.0
    %3350 = vmatprep.subr.mxu0 0.0
    %3351 = vmatpush1.msra.mxu0 0.0
    %3352 = vmatprep.subr.mxu0 0.0
    %3353 = vmatpush1.msra.mxu0 0.0
    %3354 = vmatprep.subr.mxu0 0.0
    %3355 = vmatpush1.msra.mxu0 0.0
    %3356 = vmatprep.subr.mxu0 0.0
    %3357 = vmatpush1.msra.mxu0 0.0
    %3358 = vmatprep.subr.mxu0 %v95
    %3359 = vmatpush1.msra.mxu0 %v94
    %3360 = vmatprep.subr.mxu0 %v87
    %3361 = vmatpush1.msra.mxu0 %v86
    %3362 = vmatprep.subr.mxu0 %v79
    %3363 = vmatpush1.msra.mxu0 %v78
    %3364 = vmatprep.subr.mxu0 %v71
    %3365 = vmatpush1.msra.mxu0 %v70
    %3366 = vmatprep.subr.mxu0 0.0
    %3367 = vmatpush2.msra.mxu0 0.0
    %3368 = vmatprep.subr.mxu0 0.0
    %3369 = vmatpush2.msra.mxu0 0.0
    %3370 = vmatprep.subr.mxu0 0.0
    %3371 = vmatpush2.msra.mxu0 0.0
    %3372 = vmatprep.subr.mxu0 0.0
    %3373 = vmatpush2.msra.mxu0 0.0
    %3374 = vmatprep.subr.mxu0 0.0
    %3375 = vmatpush2.msra.mxu0 0.0
    %3376 = vmatprep.subr.mxu0 0.0
    %3377 = vmatpush2.msra.mxu0 0.0
    %3378 = vmatprep.subr.mxu0 0.0
    %3379 = vmatpush2.msra.mxu0 0.0
    %3380 = vmatprep.subr.mxu0 0.0
    %3381 = vmatpush2.msra.mxu0 0.0
    %3382 = vmatprep.subr.mxu0 0.0
    %3383 = vmatpush2.msra.mxu0 0.0
    %3384 = vmatprep.subr.mxu0 0.0
    %3385 = vmatpush2.msra.mxu0 0.0
    %3386 = vmatprep.subr.mxu0 0.0
    %3387 = vmatpush2.msra.mxu0 0.0
    %3388 = vmatprep.subr.mxu0 0.0
    %3389 = vmatpush2.msra.mxu0 0.0
    %3390 = vmatprep.subr.mxu0 0.0
    %3391 = vmatpush2.msra.mxu0 0.0
    %3392 = vmatprep.subr.mxu0 0.0
    %3393 = vmatpush2.msra.mxu0 0.0
    %3394 = vmatprep.subr.mxu0 0.0
    %3395 = vmatpush2.msra.mxu0 0.0
    %3396 = vmatprep.subr.mxu0 0.0
    %3397 = vmatpush2.msra.mxu0 0.0
    %3398 = vmatprep.mubr.f32.mxu0 0.0
    %3399 = vmatmul.mubr.f32.gmra.mxu0 %v3261
    %v3400 = vpop.f32.mrf.mxu0
    %v3401 = vadd.f32 0.0, %v3400
    %v3402 = vpop.f32.mrf.mxu0
    %v3403 = vadd.f32 0.0, %v3402
    %3404 = vdwg.mxu0
    %3405 = vmatprep.subr.mxu0 0.0
    %3406 = vmatpush1.msra.mxu0 0.0
    %3407 = vmatprep.subr.mxu0 0.0
    %3408 = vmatpush1.msra.mxu0 0.0
    %3409 = vmatprep.subr.mxu0 0.0
    %3410 = vmatpush1.msra.mxu0 0.0
    %3411 = vmatprep.subr.mxu0 0.0
    %3412 = vmatpush1.msra.mxu0 0.0
    %3413 = vmatprep.subr.mxu0 0.0
    %3414 = vmatpush1.msra.mxu0 0.0
    %3415 = vmatprep.subr.mxu0 0.0
    %3416 = vmatpush1.msra.mxu0 0.0
    %3417 = vmatprep.subr.mxu0 0.0
    %3418 = vmatpush1.msra.mxu0 0.0
    %3419 = vmatprep.subr.mxu0 0.0
    %3420 = vmatpush1.msra.mxu0 0.0
    %3421 = vmatprep.subr.mxu0 0.0
    %3422 = vmatpush1.msra.mxu0 0.0
    %3423 = vmatprep.subr.mxu0 0.0
    %3424 = vmatpush1.msra.mxu0 0.0
    %3425 = vmatprep.subr.mxu0 0.0
    %3426 = vmatpush1.msra.mxu0 0.0
    %3427 = vmatprep.subr.mxu0 0.0
    %3428 = vmatpush1.msra.mxu0 0.0
    %3429 = vmatprep.subr.mxu0 %v97
    %3430 = vmatpush1.msra.mxu0 %v96
    %3431 = vmatprep.subr.mxu0 %v89
    %3432 = vmatpush1.msra.mxu0 %v88
    %3433 = vmatprep.subr.mxu0 %v81
    %3434 = vmatpush1.msra.mxu0 %v80
    %3435 = vmatprep.subr.mxu0 %v73
    %3436 = vmatpush1.msra.mxu0 %v72
    %3437 = vmatprep.subr.mxu0 0.0
    %3438 = vmatpush2.msra.mxu0 0.0
    %3439 = vmatprep.subr.mxu0 0.0
    %3440 = vmatpush2.msra.mxu0 0.0
    %3441 = vmatprep.subr.mxu0 0.0
    %3442 = vmatpush2.msra.mxu0 0.0
    %3443 = vmatprep.subr.mxu0 0.0
    %3444 = vmatpush2.msra.mxu0 0.0
    %3445 = vmatprep.subr.mxu0 0.0
    %3446 = vmatpush2.msra.mxu0 0.0
    %3447 = vmatprep.subr.mxu0 0.0
    %3448 = vmatpush2.msra.mxu0 0.0
    %3449 = vmatprep.subr.mxu0 0.0
    %3450 = vmatpush2.msra.mxu0 0.0
    %3451 = vmatprep.subr.mxu0 0.0
    %3452 = vmatpush2.msra.mxu0 0.0
    %3453 = vmatprep.subr.mxu0 0.0
    %3454 = vmatpush2.msra.mxu0 0.0
    %3455 = vmatprep.subr.mxu0 0.0
    %3456 = vmatpush2.msra.mxu0 0.0
    %3457 = vmatprep.subr.mxu0 0.0
    %3458 = vmatpush2.msra.mxu0 0.0
    %3459 = vmatprep.subr.mxu0 0.0
    %3460 = vmatpush2.msra.mxu0 0.0
    %3461 = vmatprep.subr.mxu0 0.0
    %3462 = vmatpush2.msra.mxu0 0.0
    %3463 = vmatprep.subr.mxu0 0.0
    %3464 = vmatpush2.msra.mxu0 0.0
    %3465 = vmatprep.subr.mxu0 0.0
    %3466 = vmatpush2.msra.mxu0 0.0
    %3467 = vmatprep.subr.mxu0 0.0
    %3468 = vmatpush2.msra.mxu0 0.0
    %3469 = vmatprep.mubr.f32.mxu0 0.0
    %3470 = vmatmul.mubr.f32.gmra.mxu0 %v3261
    %v3471 = vpop.f32.mrf.mxu0
    %v3472 = vadd.f32 0.0, %v3471
    %v3473 = vpop.f32.mrf.mxu0
    %v3474 = vadd.f32 0.0, %v3473
    %3475 = vdwg.mxu0
    %3476 = vmatprep.subr.mxu0 0.0
    %3477 = vmatpush1.msra.mxu0 0.0
    %3478 = vmatprep.subr.mxu0 0.0
    %3479 = vmatpush1.msra.mxu0 0.0
    %3480 = vmatprep.subr.mxu0 0.0
    %3481 = vmatpush1.msra.mxu0 0.0
    %3482 = vmatprep.subr.mxu0 0.0
    %3483 = vmatpush1.msra.mxu0 0.0
    %3484 = vmatprep.subr.mxu0 0.0
    %3485 = vmatpush1.msra.mxu0 0.0
    %3486 = vmatprep.subr.mxu0 0.0
    %3487 = vmatpush1.msra.mxu0 0.0
    %3488 = vmatprep.subr.mxu0 0.0
    %3489 = vmatpush1.msra.mxu0 0.0
    %3490 = vmatprep.subr.mxu0 0.0
    %3491 = vmatpush1.msra.mxu0 0.0
    %3492 = vmatprep.subr.mxu0 0.0
    %3493 = vmatpush1.msra.mxu0 0.0
    %3494 = vmatprep.subr.mxu0 0.0
    %3495 = vmatpush1.msra.mxu0 0.0
    %3496 = vmatprep.subr.mxu0 0.0
    %3497 = vmatpush1.msra.mxu0 0.0
    %3498 = vmatprep.subr.mxu0 0.0
    %3499 = vmatpush1.msra.mxu0 0.0
    %3500 = vmatprep.subr.mxu0 %v99
    %3501 = vmatpush1.msra.mxu0 %v98
    %3502 = vmatprep.subr.mxu0 %v91
    %3503 = vmatpush1.msra.mxu0 %v90
    %3504 = vmatprep.subr.mxu0 %v83
    %3505 = vmatpush1.msra.mxu0 %v82
    %3506 = vmatprep.subr.mxu0 %v75
    %3507 = vmatpush1.msra.mxu0 %v74
    %3508 = vmatprep.subr.mxu0 0.0
    %3509 = vmatpush2.msra.mxu0 0.0
    %3510 = vmatprep.subr.mxu0 0.0
    %3511 = vmatpush2.msra.mxu0 0.0
    %3512 = vmatprep.subr.mxu0 0.0
    %3513 = vmatpush2.msra.mxu0 0.0
    %3514 = vmatprep.subr.mxu0 0.0
    %3515 = vmatpush2.msra.mxu0 0.0
    %3516 = vmatprep.subr.mxu0 0.0
    %3517 = vmatpush2.msra.mxu0 0.0
    %3518 = vmatprep.subr.mxu0 0.0
    %3519 = vmatpush2.msra.mxu0 0.0
    %3520 = vmatprep.subr.mxu0 0.0
    %3521 = vmatpush2.msra.mxu0 0.0
    %3522 = vmatprep.subr.mxu0 0.0
    %3523 = vmatpush2.msra.mxu0 0.0
    %3524 = vmatprep.subr.mxu0 0.0
    %3525 = vmatpush2.msra.mxu0 0.0
    %3526 = vmatprep.subr.mxu0 0.0
    %3527 = vmatpush2.msra.mxu0 0.0
    %3528 = vmatprep.subr.mxu0 0.0
    %3529 = vmatpush2.msra.mxu0 0.0
    %3530 = vmatprep.subr.mxu0 0.0
    %3531 = vmatpush2.msra.mxu0 0.0
    %3532 = vmatprep.subr.mxu0 0.0
    %3533 = vmatpush2.msra.mxu0 0.0
    %3534 = vmatprep.subr.mxu0 0.0
    %3535 = vmatpush2.msra.mxu0 0.0
    %3536 = vmatprep.subr.mxu0 0.0
    %3537 = vmatpush2.msra.mxu0 0.0
    %3538 = vmatprep.subr.mxu0 0.0
    %3539 = vmatpush2.msra.mxu0 0.0
    %3540 = vmatprep.mubr.f32.mxu0 0.0
    %3541 = vmatmul.mubr.f32.gmra.mxu0 %v3261
    %v3542 = vpop.f32.mrf.mxu0
    %v3543 = vadd.f32 0.0, %v3542
    %v3544 = vpop.f32.mrf.mxu0
    %v3545 = vadd.f32 0.0, %v3544
    %3546 = vdwg.mxu0
    %v3547 = vadd.f32 %v3330, %v655
    %v3548 = vadd.f32 %v3332, %v659
    %v3549 = vadd.f32 %v3401, %v663
    %v3550 = vadd.f32 %v3403, %v667
    %v3551 = vadd.f32 %v3547, %v3164
    %v3552 = vadd.f32 %v3548, %v3166
    %v3553 = vadd.f32 %v3549, %v3235
    %v3554 = vadd.f32 %v3550, %v3237
    %v3555 = vtanh.pop %v3551
    %v3556 = vtanh.pop %v3552
    %v3557 = vtanh.pop %v3553
    %v3558 = vtanh.pop %v3554
    %v3559 = vmul.f32 %v3555, %v335
    %v3560 = vmul.f32 %v3556, %v336
    %v3561 = vmul.f32 %v3557, %v337
    %v3562 = vmul.f32 %v3558, %v338
    %v3563 = vadd.f32 %v3559, %v339
    %v3564 = vadd.f32 %v3560, %v340
    %v3565 = vadd.f32 %v3561, %v341
    %v3566 = vadd.f32 %v3562, %v342
    %v3567 = vmul.f32 %v3564, %v3090
    %v3568 = vmul.f32 %v3563, %v3565
    %v3569 = vadd.f32 %v3567, %v3568
    %v3570 = vtanh.pop %v3569
    %v3571 = vmul.f32 %v3566, %v3570
    %3572 = vst [vmem:[#allocation2 + $0xc] sm:$0x3] %v3571
    %v3574 = vsel %vm698, %v3571, 0
    %3576 = vmatprep.subr.mxu0 0.0
    %3577 = vmatpush1.msra.mxu0 0.0
    %3578 = vmatprep.subr.mxu0 0.0
    %3579 = vmatpush1.msra.mxu0 0.0
    %3580 = vmatprep.subr.mxu0 0.0
    %3581 = vmatpush1.msra.mxu0 0.0
    %3582 = vmatprep.subr.mxu0 0.0
    %3583 = vmatpush1.msra.mxu0 0.0
    %3584 = vmatprep.subr.mxu0 0.0
    %3585 = vmatpush1.msra.mxu0 0.0
    %3586 = vmatprep.subr.mxu0 0.0
    %3587 = vmatpush1.msra.mxu0 0.0
    %3588 = vmatprep.subr.mxu0 0.0
    %3589 = vmatpush1.msra.mxu0 0.0
    %3590 = vmatprep.subr.mxu0 0.0
    %3591 = vmatpush1.msra.mxu0 0.0
    %3592 = vmatprep.subr.mxu0 %v129
    %3593 = vmatpush1.msra.mxu0 %v128
    %3594 = vmatprep.subr.mxu0 %v125
    %3595 = vmatpush1.msra.mxu0 %v124
    %3596 = vmatprep.subr.mxu0 %v121
    %3597 = vmatpush1.msra.mxu0 %v120
    %3598 = vmatprep.subr.mxu0 %v117
    %3599 = vmatpush1.msra.mxu0 %v116
    %3600 = vmatprep.subr.mxu0 %v113
    %3601 = vmatpush1.msra.mxu0 %v112
    %3602 = vmatprep.subr.mxu0 %v109
    %3603 = vmatpush1.msra.mxu0 %v108
    %3604 = vmatprep.subr.mxu0 %v105
    %3605 = vmatpush1.msra.mxu0 %v104
    %3606 = vmatprep.subr.mxu0 %v101
    %3607 = vmatpush1.msra.mxu0 %v100
    %3608 = vmatprep.subr.mxu0 0.0
    %3609 = vmatpush2.msra.mxu0 0.0
    %3610 = vmatprep.subr.mxu0 0.0
    %3611 = vmatpush2.msra.mxu0 0.0
    %3612 = vmatprep.subr.mxu0 0.0
    %3613 = vmatpush2.msra.mxu0 0.0
    %3614 = vmatprep.subr.mxu0 0.0
    %3615 = vmatpush2.msra.mxu0 0.0
    %3616 = vmatprep.subr.mxu0 0.0
    %3617 = vmatpush2.msra.mxu0 0.0
    %3618 = vmatprep.subr.mxu0 0.0
    %3619 = vmatpush2.msra.mxu0 0.0
    %3620 = vmatprep.subr.mxu0 0.0
    %3621 = vmatpush2.msra.mxu0 0.0
    %3622 = vmatprep.subr.mxu0 0.0
    %3623 = vmatpush2.msra.mxu0 0.0
    %3624 = vmatprep.subr.mxu0 0.0
    %3625 = vmatpush2.msra.mxu0 0.0
    %3626 = vmatprep.subr.mxu0 0.0
    %3627 = vmatpush2.msra.mxu0 0.0
    %3628 = vmatprep.subr.mxu0 0.0
    %3629 = vmatpush2.msra.mxu0 0.0
    %3630 = vmatprep.subr.mxu0 0.0
    %3631 = vmatpush2.msra.mxu0 0.0
    %3632 = vmatprep.subr.mxu0 0.0
    %3633 = vmatpush2.msra.mxu0 0.0
    %3634 = vmatprep.subr.mxu0 0.0
    %3635 = vmatpush2.msra.mxu0 0.0
    %3636 = vmatprep.subr.mxu0 0.0
    %3637 = vmatpush2.msra.mxu0 0.0
    %3638 = vmatprep.subr.mxu0 0.0
    %3639 = vmatpush2.msra.mxu0 0.0
    %3640 = vmatprep.mubr.f32.mxu0 0.0
    %3641 = vmatmul.mubr.f32.gmra.mxu0 %v3574
    %v3642 = vpop.f32.mrf.mxu0
    %v3643 = vadd.f32 0.0, %v3642
    %v3644 = vpop.f32.mrf.mxu0
    %v3645 = vadd.f32 0.0, %v3644
    %3646 = vdwg.mxu0
    %3647 = vmatprep.subr.mxu0 0.0
    %3648 = vmatpush1.msra.mxu0 0.0
    %3649 = vmatprep.subr.mxu0 0.0
    %3650 = vmatpush1.msra.mxu0 0.0
    %3651 = vmatprep.subr.mxu0 0.0
    %3652 = vmatpush1.msra.mxu0 0.0
    %3653 = vmatprep.subr.mxu0 0.0
    %3654 = vmatpush1.msra.mxu0 0.0
    %3655 = vmatprep.subr.mxu0 0.0
    %3656 = vmatpush1.msra.mxu0 0.0
    %3657 = vmatprep.subr.mxu0 0.0
    %3658 = vmatpush1.msra.mxu0 0.0
    %3659 = vmatprep.subr.mxu0 0.0
    %3660 = vmatpush1.msra.mxu0 0.0
    %3661 = vmatprep.subr.mxu0 0.0
    %3662 = vmatpush1.msra.mxu0 0.0
    %3663 = vmatprep.subr.mxu0 %v131
    %3664 = vmatpush1.msra.mxu0 %v130
    %3665 = vmatprep.subr.mxu0 %v127
    %3666 = vmatpush1.msra.mxu0 %v126
    %3667 = vmatprep.subr.mxu0 %v123
    %3668 = vmatpush1.msra.mxu0 %v122
    %3669 = vmatprep.subr.mxu0 %v119
    %3670 = vmatpush1.msra.mxu0 %v118
    %3671 = vmatprep.subr.mxu0 %v115
    %3672 = vmatpush1.msra.mxu0 %v114
    %3673 = vmatprep.subr.mxu0 %v111
    %3674 = vmatpush1.msra.mxu0 %v110
    %3675 = vmatprep.subr.mxu0 %v107
    %3676 = vmatpush1.msra.mxu0 %v106
    %3677 = vmatprep.subr.mxu0 %v103
    %3678 = vmatpush1.msra.mxu0 %v102
    %3679 = vmatprep.subr.mxu0 0.0
    %3680 = vmatpush2.msra.mxu0 0.0
    %3681 = vmatprep.subr.mxu0 0.0
    %3682 = vmatpush2.msra.mxu0 0.0
    %3683 = vmatprep.subr.mxu0 0.0
    %3684 = vmatpush2.msra.mxu0 0.0
    %3685 = vmatprep.subr.mxu0 0.0
    %3686 = vmatpush2.msra.mxu0 0.0
    %3687 = vmatprep.subr.mxu0 0.0
    %3688 = vmatpush2.msra.mxu0 0.0
    %3689 = vmatprep.subr.mxu0 0.0
    %3690 = vmatpush2.msra.mxu0 0.0
    %3691 = vmatprep.subr.mxu0 0.0
    %3692 = vmatpush2.msra.mxu0 0.0
    %3693 = vmatprep.subr.mxu0 0.0
    %3694 = vmatpush2.msra.mxu0 0.0
    %3695 = vmatprep.subr.mxu0 0.0
    %3696 = vmatpush2.msra.mxu0 0.0
    %3697 = vmatprep.subr.mxu0 0.0
    %3698 = vmatpush2.msra.mxu0 0.0
    %3699 = vmatprep.subr.mxu0 0.0
    %3700 = vmatpush2.msra.mxu0 0.0
    %3701 = vmatprep.subr.mxu0 0.0
    %3702 = vmatpush2.msra.mxu0 0.0
    %3703 = vmatprep.subr.mxu0 0.0
    %3704 = vmatpush2.msra.mxu0 0.0
    %3705 = vmatprep.subr.mxu0 0.0
    %3706 = vmatpush2.msra.mxu0 0.0
    %3707 = vmatprep.subr.mxu0 0.0
    %3708 = vmatpush2.msra.mxu0 0.0
    %3709 = vmatprep.subr.mxu0 0.0
    %3710 = vmatpush2.msra.mxu0 0.0
    %3711 = vmatprep.mubr.f32.mxu0 0.0
    %3712 = vmatmul.mubr.f32.gmra.mxu0 %v3574
    %v3713 = vpop.f32.mrf.mxu0
    %v3714 = vadd.f32 0.0, %v3713
    %v3715 = vpop.f32.mrf.mxu0
    %v3716 = vadd.f32 0.0, %v3715
    %3717 = vdwg.mxu0
    %v3718 = vadd.f32 %v243, %v3472
    %v3719 = vadd.f32 %v245, %v3474
    %v3720 = vadd.f32 %v314, %v3543
    %v3721 = vadd.f32 %v316, %v3545
    %v3722 = vtanh.pop %v3718
    %v3723 = vtanh.pop %v3719
    %v3724 = vtanh.pop %v3720
    %v3725 = vtanh.pop %v3721
    %v3726 = vmul.f32 %v3722, %v335
    %v3727 = vmul.f32 %v3723, %v336
    %v3728 = vmul.f32 %v3724, %v337
    %v3729 = vmul.f32 %v3725, %v338
    %v3730 = vadd.f32 %v3726, %v339
    %v3731 = vadd.f32 %v3727, %v340
    %v3732 = vadd.f32 %v3728, %v341
    %v3733 = vadd.f32 %v3729, %v342
    %v3734 = vmul.f32 %v3731, %v3257
    %v3735 = vmul.f32 %v3730, %v3732
    %v3736 = vadd.f32 %v3734, %v3735
    %v3737 = vtanh.pop %v3736
    %v3738 = vmul.f32 %v3733, %v3737
    %v3740 = vsel %vm172, %v3738, 0
    %3742 = vmatprep.subr.mxu0 0.0
    %3743 = vmatpush1.msra.mxu0 0.0
    %3744 = vmatprep.subr.mxu0 0.0
    %3745 = vmatpush1.msra.mxu0 0.0
    %3746 = vmatprep.subr.mxu0 0.0
    %3747 = vmatpush1.msra.mxu0 0.0
    %3748 = vmatprep.subr.mxu0 0.0
    %3749 = vmatpush1.msra.mxu0 0.0
    %3750 = vmatprep.subr.mxu0 0.0
    %3751 = vmatpush1.msra.mxu0 0.0
    %3752 = vmatprep.subr.mxu0 0.0
    %3753 = vmatpush1.msra.mxu0 0.0
    %3754 = vmatprep.subr.mxu0 0.0
    %3755 = vmatpush1.msra.mxu0 0.0
    %3756 = vmatprep.subr.mxu0 0.0
    %3757 = vmatpush1.msra.mxu0 0.0
    %3758 = vmatprep.subr.mxu0 0.0
    %3759 = vmatpush1.msra.mxu0 0.0
    %3760 = vmatprep.subr.mxu0 0.0
    %3761 = vmatpush1.msra.mxu0 0.0
    %3762 = vmatprep.subr.mxu0 0.0
    %3763 = vmatpush1.msra.mxu0 0.0
    %3764 = vmatprep.subr.mxu0 0.0
    %3765 = vmatpush1.msra.mxu0 0.0
    %3766 = vmatprep.subr.mxu0 %v93
    %3767 = vmatpush1.msra.mxu0 %v92
    %3768 = vmatprep.subr.mxu0 %v85
    %3769 = vmatpush1.msra.mxu0 %v84
    %3770 = vmatprep.subr.mxu0 %v77
    %3771 = vmatpush1.msra.mxu0 %v76
    %3772 = vmatprep.subr.mxu0 %v69
    %3773 = vmatpush1.msra.mxu0 %v68
    %3774 = vmatprep.subr.mxu0 0.0
    %3775 = vmatpush2.msra.mxu0 0.0
    %3776 = vmatprep.subr.mxu0 0.0
    %3777 = vmatpush2.msra.mxu0 0.0
    %3778 = vmatprep.subr.mxu0 0.0
    %3779 = vmatpush2.msra.mxu0 0.0
    %3780 = vmatprep.subr.mxu0 0.0
    %3781 = vmatpush2.msra.mxu0 0.0
    %3782 = vmatprep.subr.mxu0 0.0
    %3783 = vmatpush2.msra.mxu0 0.0
    %3784 = vmatprep.subr.mxu0 0.0
    %3785 = vmatpush2.msra.mxu0 0.0
    %3786 = vmatprep.subr.mxu0 0.0
    %3787 = vmatpush2.msra.mxu0 0.0
    %3788 = vmatprep.subr.mxu0 0.0
    %3789 = vmatpush2.msra.mxu0 0.0
    %3790 = vmatprep.subr.mxu0 0.0
    %3791 = vmatpush2.msra.mxu0 0.0
    %3792 = vmatprep.subr.mxu0 0.0
    %3793 = vmatpush2.msra.mxu0 0.0
    %3794 = vmatprep.subr.mxu0 0.0
    %3795 = vmatpush2.msra.mxu0 0.0
    %3796 = vmatprep.subr.mxu0 0.0
    %3797 = vmatpush2.msra.mxu0 0.0
    %3798 = vmatprep.subr.mxu0 0.0
    %3799 = vmatpush2.msra.mxu0 0.0
    %3800 = vmatprep.subr.mxu0 0.0
    %3801 = vmatpush2.msra.mxu0 0.0
    %3802 = vmatprep.subr.mxu0 0.0
    %3803 = vmatpush2.msra.mxu0 0.0
    %3804 = vmatprep.subr.mxu0 0.0
    %3805 = vmatpush2.msra.mxu0 0.0
    %3806 = vmatprep.mubr.f32.mxu0 0.0
    %3807 = vmatmul.mubr.f32.gmra.mxu0 %v3740
    %v3808 = vpop.f32.mrf.mxu0
    %v3809 = vadd.f32 0.0, %v3808
    %v3810 = vpop.f32.mrf.mxu0
    %v3811 = vadd.f32 0.0, %v3810
    %3812 = vdwg.mxu0
    %3813 = vmatprep.subr.mxu0 0.0
    %3814 = vmatpush1.msra.mxu0 0.0
    %3815 = vmatprep.subr.mxu0 0.0
    %3816 = vmatpush1.msra.mxu0 0.0
    %3817 = vmatprep.subr.mxu0 0.0
    %3818 = vmatpush1.msra.mxu0 0.0
    %3819 = vmatprep.subr.mxu0 0.0
    %3820 = vmatpush1.msra.mxu0 0.0
    %3821 = vmatprep.subr.mxu0 0.0
    %3822 = vmatpush1.msra.mxu0 0.0
    %3823 = vmatprep.subr.mxu0 0.0
    %3824 = vmatpush1.msra.mxu0 0.0
    %3825 = vmatprep.subr.mxu0 0.0
    %3826 = vmatpush1.msra.mxu0 0.0
    %3827 = vmatprep.subr.mxu0 0.0
    %3828 = vmatpush1.msra.mxu0 0.0
    %3829 = vmatprep.subr.mxu0 0.0
    %3830 = vmatpush1.msra.mxu0 0.0
    %3831 = vmatprep.subr.mxu0 0.0
    %3832 = vmatpush1.msra.mxu0 0.0
    %3833 = vmatprep.subr.mxu0 0.0
    %3834 = vmatpush1.msra.mxu0 0.0
    %3835 = vmatprep.subr.mxu0 0.0
    %3836 = vmatpush1.msra.mxu0 0.0
    %3837 = vmatprep.subr.mxu0 %v95
    %3838 = vmatpush1.msra.mxu0 %v94
    %3839 = vmatprep.subr.mxu0 %v87
    %3840 = vmatpush1.msra.mxu0 %v86
    %3841 = vmatprep.subr.mxu0 %v79
    %3842 = vmatpush1.msra.mxu0 %v78
    %3843 = vmatprep.subr.mxu0 %v71
    %3844 = vmatpush1.msra.mxu0 %v70
    %3845 = vmatprep.subr.mxu0 0.0
    %3846 = vmatpush2.msra.mxu0 0.0
    %3847 = vmatprep.subr.mxu0 0.0
    %3848 = vmatpush2.msra.mxu0 0.0
    %3849 = vmatprep.subr.mxu0 0.0
    %3850 = vmatpush2.msra.mxu0 0.0
    %3851 = vmatprep.subr.mxu0 0.0
    %3852 = vmatpush2.msra.mxu0 0.0
    %3853 = vmatprep.subr.mxu0 0.0
    %3854 = vmatpush2.msra.mxu0 0.0
    %3855 = vmatprep.subr.mxu0 0.0
    %3856 = vmatpush2.msra.mxu0 0.0
    %3857 = vmatprep.subr.mxu0 0.0
    %3858 = vmatpush2.msra.mxu0 0.0
    %3859 = vmatprep.subr.mxu0 0.0
    %3860 = vmatpush2.msra.mxu0 0.0
    %3861 = vmatprep.subr.mxu0 0.0
    %3862 = vmatpush2.msra.mxu0 0.0
    %3863 = vmatprep.subr.mxu0 0.0
    %3864 = vmatpush2.msra.mxu0 0.0
    %3865 = vmatprep.subr.mxu0 0.0
    %3866 = vmatpush2.msra.mxu0 0.0
    %3867 = vmatprep.subr.mxu0 0.0
    %3868 = vmatpush2.msra.mxu0 0.0
    %3869 = vmatprep.subr.mxu0 0.0
    %3870 = vmatpush2.msra.mxu0 0.0
    %3871 = vmatprep.subr.mxu0 0.0
    %3872 = vmatpush2.msra.mxu0 0.0
    %3873 = vmatprep.subr.mxu0 0.0
    %3874 = vmatpush2.msra.mxu0 0.0
    %3875 = vmatprep.subr.mxu0 0.0
    %3876 = vmatpush2.msra.mxu0 0.0
    %3877 = vmatprep.mubr.f32.mxu0 0.0
    %3878 = vmatmul.mubr.f32.gmra.mxu0 %v3740
    %v3879 = vpop.f32.mrf.mxu0
    %v3880 = vadd.f32 0.0, %v3879
    %v3881 = vpop.f32.mrf.mxu0
    %v3882 = vadd.f32 0.0, %v3881
    %3883 = vdwg.mxu0
    %v3884 = vadd.f32 %v3809, %v655
    %v3885 = vadd.f32 %v3811, %v659
    %v3886 = vadd.f32 %v3880, %v663
    %v3887 = vadd.f32 %v3882, %v667
    %v3888 = vadd.f32 %v3884, %v3643
    %v3889 = vadd.f32 %v3885, %v3645
    %v3890 = vadd.f32 %v3886, %v3714
    %v3891 = vadd.f32 %v3887, %v3716
    %v3892 = vtanh.pop %v3888
    %v3893 = vtanh.pop %v3889
    %v3894 = vtanh.pop %v3890
    %v3895 = vtanh.pop %v3891
    %v3896 = vmul.f32 %v3892, %v335
    %v3897 = vmul.f32 %v3893, %v336
    %v3898 = vmul.f32 %v3894, %v337
    %v3899 = vmul.f32 %v3895, %v338
    %v3900 = vadd.f32 %v3896, %v339
    %v3901 = vadd.f32 %v3897, %v340
    %v3902 = vadd.f32 %v3898, %v341
    %v3903 = vadd.f32 %v3899, %v342
    %v3904 = vmul.f32 %v3901, %v3569
    %v3905 = vmul.f32 %v3900, %v3902
    %v3906 = vadd.f32 %v3904, %v3905
    %v3907 = vtanh.pop %v3906
    %v3908 = vmul.f32 %v3903, %v3907
    %3909 = vst [vmem:[#allocation2 + $0xe] sm:$0x3] %v3908
    %v3910 = vld [vmem:[#allocation2] sm:$0xff]
    %v3911 = vld [vmem:[#allocation2 + $0x8] sm:$0xff]
    %v3912 = vld [vmem:[%s6] sm:$0xff]
    %v3913 = vld [vmem:[%s6 + $0x8] sm:$0xff]
    %v3914 = vld [vmem:[%s6 + $0x10] sm:$0xff]
    %v3915 = vld [vmem:[%s6 + $0x18] sm:$0xff]
    %v3916 = vld [vmem:[%s6 + $0x20] sm:$0xff]
    %v3917 = vld [vmem:[%s6 + $0x28] sm:$0xff]
    %v3918 = vld [vmem:[%s6 + $0x30] sm:$0xff]
    %v3919 = vld [vmem:[%s6 + $0x38] sm:$0xff]
    %v3920 = vld [vmem:[%s6 + $0x40] sm:$0xff]
    %v3921 = vld [vmem:[%s6 + $0x48] sm:$0xff]
    %v3922 = vld [vmem:[%s6 + $0x50] sm:$0xff]
    %v3923 = vld [vmem:[%s6 + $0x58] sm:$0xff]
    %v3924 = vld [vmem:[%s6 + $0x60] sm:$0xff]
    %v3925 = vld [vmem:[%s6 + $0x68] sm:$0xff]
    %v3926 = vld [vmem:[%s6 + $0x70] sm:$0xff]
    %v3927 = vld [vmem:[%s6 + $0x78] sm:$0xff]
    %v3928 = vld [vmem:[%s7] sm:$0x1]
    %v3930 = vlaneseq
    %v3931 = vshrl.u32 %v3930, 7
    %v3932 = vsub.s32 0, %v3931
    %v3933 = vrot.slane %v3928, %v3932
    %3935 = vmatprep.subr.mxu0 0.0
    %3936 = vmatpush1.msra.mxu0 %v3927
    %3937 = vmatprep.subr.mxu0 0.0
    %3938 = vmatpush1.msra.mxu0 %v3926
    %3939 = vmatprep.subr.mxu0 0.0
    %3940 = vmatpush1.msra.mxu0 %v3925
    %3941 = vmatprep.subr.mxu0 0.0
    %3942 = vmatpush1.msra.mxu0 %v3924
    %3943 = vmatprep.subr.mxu0 0.0
    %3944 = vmatpush1.msra.mxu0 %v3923
    %3945 = vmatprep.subr.mxu0 0.0
    %3946 = vmatpush1.msra.mxu0 %v3922
    %3947 = vmatprep.subr.mxu0 0.0
    %3948 = vmatpush1.msra.mxu0 %v3921
    %3949 = vmatprep.subr.mxu0 0.0
    %3950 = vmatpush1.msra.mxu0 %v3920
    %3951 = vmatprep.subr.mxu0 0.0
    %3952 = vmatpush1.msra.mxu0 %v3919
    %3953 = vmatprep.subr.mxu0 0.0
    %3954 = vmatpush1.msra.mxu0 %v3918
    %3955 = vmatprep.subr.mxu0 0.0
    %3956 = vmatpush1.msra.mxu0 %v3917
    %3957 = vmatprep.subr.mxu0 0.0
    %3958 = vmatpush1.msra.mxu0 %v3916
    %3959 = vmatprep.subr.mxu0 0.0
    %3960 = vmatpush1.msra.mxu0 %v3915
    %3961 = vmatprep.subr.mxu0 0.0
    %3962 = vmatpush1.msra.mxu0 %v3914
    %3963 = vmatprep.subr.mxu0 0.0
    %3964 = vmatpush1.msra.mxu0 %v3913
    %3965 = vmatprep.subr.mxu0 0.0
    %3966 = vmatpush1.msra.mxu0 %v3912
    %3967 = vmatprep.subr.mxu0 0.0
    %3968 = vmatpush2.msra.mxu0 0.0
    %3969 = vmatprep.subr.mxu0 0.0
    %3970 = vmatpush2.msra.mxu0 0.0
    %3971 = vmatprep.subr.mxu0 0.0
    %3972 = vmatpush2.msra.mxu0 0.0
    %3973 = vmatprep.subr.mxu0 0.0
    %3974 = vmatpush2.msra.mxu0 0.0
    %3975 = vmatprep.subr.mxu0 0.0
    %3976 = vmatpush2.msra.mxu0 0.0
    %3977 = vmatprep.subr.mxu0 0.0
    %3978 = vmatpush2.msra.mxu0 0.0
    %3979 = vmatprep.subr.mxu0 0.0
    %3980 = vmatpush2.msra.mxu0 0.0
    %3981 = vmatprep.subr.mxu0 0.0
    %3982 = vmatpush2.msra.mxu0 0.0
    %3983 = vmatprep.subr.mxu0 0.0
    %3984 = vmatpush2.msra.mxu0 0.0
    %3985 = vmatprep.subr.mxu0 0.0
    %3986 = vmatpush2.msra.mxu0 0.0
    %3987 = vmatprep.subr.mxu0 0.0
    %3988 = vmatpush2.msra.mxu0 0.0
    %3989 = vmatprep.subr.mxu0 0.0
    %3990 = vmatpush2.msra.mxu0 0.0
    %3991 = vmatprep.subr.mxu0 0.0
    %3992 = vmatpush2.msra.mxu0 0.0
    %3993 = vmatprep.subr.mxu0 0.0
    %3994 = vmatpush2.msra.mxu0 0.0
    %3995 = vmatprep.subr.mxu0 0.0
    %3996 = vmatpush2.msra.mxu0 0.0
    %3997 = vmatprep.subr.mxu0 0.0
    %3998 = vmatpush2.msra.mxu0 0.0
    %3999 = vmatprep.mubr.f32.mxu0 0.0
    %4000 = vmatmul.mubr.f32.gmra.mxu0 %v3910
    %v4001 = vpop.f32.mrf.mxu0
    %v4002 = vadd.f32 %v3933, %v4001
    %v4003 = vpop.f32.mrf.mxu0
    %4004 = vmatprep.mubr.f32.mxu0 0.0
    %4005 = vmatmul.mubr.f32.gmra.mxu0 %v3911
    %v4006 = vpop.f32.mrf.mxu0
    %v4007 = vadd.f32 %v3933, %v4006
    %v4008 = vpop.f32.mrf.mxu0
    %4009 = vdwg.mxu0
    %vm4010 = vcmask 31744
    %4011 = vst.msk [vmem:[%s8] sm:$0xff] %vm4010, %v4002
    %4012 = vst.msk [vmem:[%s8 + $0x8] sm:$0xff] %vm4010, %v4007
    // Predicated region
    $region46: #{decoder_forward.1} parent=1 // pred_check
      _
    $region47: #{decoder_forward.1} parent=1 // pred_check_branch
      %4014 = sbr.rel (0) target = $region49
    $region48: #{decoder_forward.1} parent=1 // pred_region
      _
    $region49: #{decoder_forward.1} parent=1 // pred_fallthru
      _
    // Predicated region
    $region50: #{decoder_forward.1} parent=1 // pred_check
      _
    $region51: #{decoder_forward.1} parent=1 // pred_check_branch
      %4016 = sbr.rel (0) target = $region53
    $region52: #{decoder_forward.1} parent=1 // pred_region
      _
    $region53: #{decoder_forward.1} parent=1 // pred_fallthru
      _
    %4017 = vsyncpa [#allocation4], 1
    %4018 = vsyncpa [#allocation6], 1

</llo_original>
